<compile_context>
chip_gen: v7x
topology: tpu7x:2x2x1
jax: 0.10.0
libtpu: 0.0.40
codegen_flags: <defaults>
</compile_context>

<pallas_src>
import functools

import numpy as np
import jax
import jax.numpy as jnp
from jax import lax
from jax.experimental import pallas as pl
from jax.experimental.pallas import tpu as pltpu


def _rwkv5_block_kernel(
    hidden_ref,                                   # (T, H)
    ln1_w_ref, ln1_b_ref,                         # (1, H)
    tmk_ref, tmv_ref, tmr_ref, tmg_ref,           # (1, H)  time-mix coefficients
    wk_ref, wv_ref, wr_ref, wg_ref,               # (H, AH) bf16 projection weights
    td_ref, tf_ref,                               # (nH, hs) time_decay / time_faaaa (f32)
    lnx_w_ref, lnx_b_ref,                         # (1, H)  group-norm affine
    wo_ref,                                       # (AH, H) bf16 output projection
    ln2_w_ref, ln2_b_ref,                         # (1, H)
    ffn_tmk_ref, ffn_tmr_ref,                     # (1, H)
    ffn_wk_ref,                                   # (H, I)  bf16
    ffn_wr_ref,                                   # (H, H)  bf16
    ffn_wv_ref,                                   # (I, H)  bf16
    out_ref,                                      # (T, H)
    *, T, H, AH, nH, hs, C, eps_ln, eps_gn,
):
    f32 = jnp.float32
    x0 = hidden_ref[...].astype(f32)              # (T, H)

    def layernorm(x, w_ref, b_ref):
        m = jnp.mean(x, axis=-1, keepdims=True)
        v = jnp.mean((x - m) ** 2, axis=-1, keepdims=True)
        return (x - m) * lax.rsqrt(v + eps_ln) * w_ref[0, :] + b_ref[0, :]

    def time_shift(x):
        # shifted[t] = x[t-1], shifted[0] = 0   (nn.ZeroPad2d((0,0,1,-1)))
        rolled = pltpu.roll(x, shift=1, axis=0)
        row = lax.broadcasted_iota(jnp.int32, x.shape, 0)
        return jnp.where(row == 0, 0.0, rolled)

    def mxu(x, w_ref):
        # bf16 operands (native MXU path), f32 accumulation.
        return jnp.dot(x.astype(jnp.bfloat16), w_ref[...],
                       preferred_element_type=f32)

    # ---------------- attention (time-mix) branch ----------------
    x = layernorm(x0, ln1_w_ref, ln1_b_ref)       # ln1(hidden)
    sh = time_shift(x)

    def mix(m_ref):
        m = m_ref[0, :]
        return sh + m * (x - sh)                  # == x*m + sh*(1-m)

    k = mxu(mix(tmk_ref), wk_ref)                 # (T, AH) f32
    v = mxu(mix(tmv_ref), wv_ref)
    r = mxu(mix(tmr_ref), wr_ref)
    g = mxu(mix(tmg_ref), wg_ref)
    gate = g * jax.nn.sigmoid(g)                  # SiLU

    # ---------------- chunked WKV linear attention (all heads batched) -----
    # Sequential form (per head, per channel pair i,j, w = exp(-exp(td))):
    #   out_t[j]   = sum_i r_t[i] * (u[i] k_t[i] v_t[j] + S_t[i,j])
    #   S_{t+1}    = k_t v_t^T + diag(w) S_t
    # Chunked form (chunk length C): intra-chunk terms are decay-scaled batched
    # MXU matmuls under a strict causal mask; only the (nH, hs, hs) state
    # crosses chunk boundaries and lives in registers (no per-step VMEM
    # round trips, no T-length serial loop).
    n_chunks = T // C
    c0 = C // 2                                   # centre exponents -> bounded by w^{±C/2}

    def to_heads(a):                              # (T, AH) -> (nH, T, hs), done once
        return a.reshape(T, nH, hs).transpose(1, 0, 2)

    Kh, Vh, Rh = to_heads(k), to_heads(v), to_heads(r)

    ed = jnp.exp(td_ref[...].astype(f32))         # exp(time_decay)      (nH, hs)
    ed_b = ed[:, None, :]                         # (nH, 1, hs)
    u = tf_ref[...].astype(f32)[:, None, :]       # time_faaaa           (nH, 1, hs)

    tau = lax.broadcasted_iota(jnp.int32, (C, 1), 0).astype(f32)[None]   # (1, C, 1)
    row_i = lax.broadcasted_iota(jnp.int32, (C, C), 0)
    col_i = lax.broadcasted_iota(jnp.int32, (C, C), 1)
    strict_causal = (row_i > col_i)[None]          # (1, C, C), s < t

    dec_cross = jnp.exp(-tau * ed_b)               # w^tau          (nH, C, hs)
    dec_q = jnp.exp(-(tau - c0) * ed_b)            # w^(tau - c0)
    dec_k = jnp.exp((tau + 1.0 - c0) * ed_b)       # w^(c0 - s - 1)
    dec_kU = jnp.exp(-(C - 1.0 - tau) * ed_b)      # w^(C - 1 - s)
    dec_state = jnp.exp(-float(C) * ed)[:, :, None]  # w^C           (nH, hs, 1)

    S = jnp.zeros((nH, hs, hs), f32)               # carried state, in registers
    ys = []
    for c in range(n_chunks):
        sl = slice(c * C, (c + 1) * C)
        Rc, Kc, Vc = Rh[:, sl, :], Kh[:, sl, :], Vh[:, sl, :]   # (nH, C, hs) f32

        # intra-chunk strictly-causal part: A[n,t,s] = sum_i r k w^(t-s-1), s < t
        A = jnp.einsum('nci,nsi->ncs', Rc * dec_q, Kc * dec_k,
                       preferred_element_type=f32)               # (nH, C, C)
        A = jnp.where(strict_causal, A, 0.0)
        y = jnp.einsum('ncs,nsj->ncj', A, Vc, preferred_element_type=f32)
        # diagonal (s == t) "bonus" term
        y += jnp.sum(Rc * u * Kc, axis=-1, keepdims=True) * Vc
        # carried-state contribution (skip for the first chunk: state is zero)
        if c > 0:
            y += jnp.einsum('nci,nij->ncj', Rc * dec_cross, S,
                            preferred_element_type=f32)
        ys.append(y)

        if c + 1 < n_chunks:
            KUt = jnp.swapaxes(Kc * dec_kU, 1, 2)               # (nH, hs, C)
            S = dec_state * S + jnp.einsum('nic,ncj->nij', KUt, Vc,
                                           preferred_element_type=f32)

    Y = ys[0] if n_chunks == 1 else jnp.concatenate(ys, axis=1)  # (nH, T, hs)

    # group-norm (nH groups of hs channels) on the head-major tensor
    gm = jnp.mean(Y, axis=-1, keepdims=True)
    gv = jnp.mean((Y - gm) ** 2, axis=-1, keepdims=True)
    gn = (Y - gm) * lax.rsqrt(gv + eps_gn)                       # (nH, T, hs)
    gn = gn.transpose(1, 0, 2).reshape(T, AH)                    # lane-dense (T, AH)
    gn = gn * lnx_w_ref[0, :] + lnx_b_ref[0, :]

    attn = mxu(gn * gate, wo_ref)                 # (T, H)
    h1 = x0 + attn                                # residual

    # ---------------- feed-forward (channel-mix) branch ----------------
    x2 = layernorm(h1, ln2_w_ref, ln2_b_ref)
    sh2 = time_shift(x2)

    ffn_tmk = ffn_tmk_ref[0, :]
    ffn_tmr = ffn_tmr_ref[0, :]
    key_in = sh2 + ffn_tmk * (x2 - sh2)
    rec_in = sh2 + ffn_tmr * (x2 - sh2)

    kf = mxu(key_in, ffn_wk_ref)                  # (T, I)
    kf = jnp.square(jnp.maximum(kf, 0.0))
    vf = mxu(kf, ffn_wv_ref)                      # (T, H)
    rf = jax.nn.sigmoid(mxu(rec_in, ffn_wr_ref))

    out_ref[...] = (h1 + rf * vf).astype(out_ref.dtype)


def rwkv5_block_forward(hidden, p, *, head_size, layer_norm_eps=1e-5,
                        chunk_size=None):
    B, T, H = hidden.shape
    hs = head_size
    nH = H // hs
    AH = p["wk"].shape[1]
    I = p["ffn_wk"].shape[1]
    assert AH == nH * hs, "kernel assumes attention_hidden_size == num_heads * head_size"

    if chunk_size is None:
        # Largest divisor of T that is <= 64.  Larger chunks feed the MXU better;
        # the centred decay scaling stays within f32 range as long as
        # exp(time_decay) * chunk/2 is moderate (true for real RWKV-5 decays).
        chunk_size = min(T, 64)
        while T % chunk_size:
            chunk_size -= 1
    C = chunk_size

    # Weights are stored/passed in bf16: native MXU operand dtype, half the VMEM.
    def w(name):
        return p[name].astype(jnp.bfloat16)

    kernel = functools.partial(
        _rwkv5_block_kernel,
        T=T, H=H, AH=AH, nH=nH, hs=hs, C=C,
        eps_ln=layer_norm_eps, eps_gn=1e-5)

    def full(shape):
        return pl.BlockSpec(shape, lambda b, _s=shape: tuple(0 for _ in _s))

    in_specs = [
        pl.BlockSpec((pl.Squeezed(), T, H), lambda b: (b, 0, 0)),   # hidden
        full((1, H)), full((1, H)),                                 # ln1 w/b
        full((1, H)), full((1, H)), full((1, H)), full((1, H)),     # tmk tmv tmr tmg
        full((H, AH)), full((H, AH)), full((H, AH)), full((H, AH)), # wk wv wr wg
        full((nH, hs)), full((nH, hs)),                             # time_decay, time_faaaa
        full((1, H)), full((1, H)),                                 # ln_x w/b
        full((AH, H)),                                              # output proj
        full((1, H)), full((1, H)),                                 # ln2 w/b
        full((1, H)), full((1, H)),                                 # ffn tmk / tmr
        full((H, I)), full((H, H)), full((I, H)),                   # ffn wk / wr / wv
    ]
    out_spec = pl.BlockSpec((pl.Squeezed(), T, H), lambda b: (b, 0, 0))

    return pl.pallas_call(
        kernel,
        out_shape=jax.ShapeDtypeStruct((B, T, H), hidden.dtype),
        grid_spec=pltpu.PrefetchScalarGridSpec(
            num_scalar_prefetch=0,
            grid=(B,),
            in_specs=in_specs,
            out_specs=out_spec),
        compiler_params=pltpu.CompilerParams(
            dimension_semantics=("parallel",)),      # batches independent -> v7x megacore
    )(hidden,
      p["ln1_w"], p["ln1_b"],
      p["tmk"], p["tmv"], p["tmr"], p["tmg"],
      w("wk"), w("wv"), w("wr"), w("wg"),
      p["td"], p["tf"],
      p["lnx_w"], p["lnx_b"],
      w("wo"),
      p["ln2_w"], p["ln2_b"],
      p["ffn_tmk"], p["ffn_tmr"],
      w("ffn_wk"), w("ffn_wr"), w("ffn_wv"))


def ref_forward(hidden, p, *, head_size, eps=1e-5, matmul_dtype=jnp.bfloat16):
    """Pure-JAX reference reproducing the PyTorch Rwkv5Block forward (zero initial
    state).  Matmul operands are rounded to `matmul_dtype` (accumulation in f32)
    to mirror the kernel's mixed-precision policy; layernorm/group-norm and the
    WKV recurrence are computed in f32 exactly like the PyTorch CPU path."""
    B, T, H = hidden.shape
    hs = head_size
    nH = H // hs

    def mm(a, b):
        a = a.astype(matmul_dtype).astype(jnp.float32)
        b = b.astype(matmul_dtype).astype(jnp.float32)
        return a @ b

    def ln(x, w, b):
        m = jnp.mean(x, axis=-1, keepdims=True)
        v = jnp.mean((x - m) ** 2, axis=-1, keepdims=True)
        return (x - m) / jnp.sqrt(v + eps) * w[0] + b[0]

    def shift(x):
        return jnp.concatenate([jnp.zeros_like(x[:, :1]), x[:, :-1]], axis=1)

    x = ln(hidden, p["ln1_w"], p["ln1_b"])
    sh = shift(x)

    def mixf(m):
        return x * m[0] + sh * (1.0 - m[0])

    k = mm(mixf(p["tmk"]), p["wk"])
    v = mm(mixf(p["tmv"]), p["wv"])
    r = mm(mixf(p["tmr"]), p["wr"])
    g = mm(mixf(p["tmg"]), p["wg"])
    gate = g * jax.nn.sigmoid(g)

    kh = k.reshape(B, T, nH, hs)
    vh = v.reshape(B, T, nH, hs)
    rh = r.reshape(B, T, nH, hs)
    td = jnp.exp(-jnp.exp(p["td"]))     # (nH, hs)
    tf = p["tf"]
    S = jnp.zeros((B, nH, hs, hs), jnp.float32)
    outs = []
    for t in range(T):
        at = kh[:, t, :, :, None] * vh[:, t, :, None, :]
        ot = jnp.sum(rh[:, t, :, :, None] * (tf[None, :, :, None] * at + S), axis=2)
        outs.append(ot.reshape(B, H))
        S = at + td[None, :, :, None] * S
    wkv = jnp.stack(outs, axis=1)       # (B, T, H)

    wkvh = wkv.reshape(B, T, nH, hs)
    gm = jnp.mean(wkvh, axis=-1, keepdims=True)
    gv = jnp.mean((wkvh - gm) ** 2, axis=-1, keepdims=True)
    gn = ((wkvh - gm) / jnp.sqrt(gv + 1e-5)).reshape(B, T, H)
    gn = gn * p["lnx_w"][0] + p["lnx_b"][0]

    attn = mm(gn * gate, p["wo"])
    h1 = hidden + attn

    x2 = ln(h1, p["ln2_w"], p["ln2_b"])
    sh2 = shift(x2)
    ki = x2 * p["ffn_tmk"][0] + sh2 * (1.0 - p["ffn_tmk"][0])
    ri = x2 * p["ffn_tmr"][0] + sh2 * (1.0 - p["ffn_tmr"][0])
    kf = jnp.square(jnp.maximum(mm(ki, p["ffn_wk"]), 0.0))
    vf = mm(kf, p["ffn_wv"])
    rf = jax.nn.sigmoid(mm(ri, p["ffn_wr"]))
    return h1 + rf * vf


if __name__ == "__main__":
    # config: hidden_size=32, head_size=8 -> 4 heads, attention_hidden_size=32,
    # intermediate_size = int(32 * 3.5 // 32 * 32) = 96 ; batch=2, seq=8
    B, T, H, hs = 2, 8, 32, 8
    nH = H // hs
    AH = H
    I = int(H * 3.5 // 32 * 32)

    key = jax.random.PRNGKey(0)
    ks = jax.random.split(key, 24)

    def n(k, shape, scale=1.0):
        return (scale * jax.random.normal(k, shape)).astype(jnp.float32)

    params = dict(
        ln1_w=1.0 + 0.1 * n(ks[0], (1, H)),
        ln1_b=0.1 * n(ks[1], (1, H)),
        tmk=jax.random.uniform(ks[2], (1, H), dtype=jnp.float32),
        tmv=jax.random.uniform(ks[3], (1, H), dtype=jnp.float32),
        tmr=jax.random.uniform(ks[4], (1, H), dtype=jnp.float32),
        tmg=jax.random.uniform(ks[5], (1, H), dtype=jnp.float32),
        wk=n(ks[6], (H, AH), 1.0 / np.sqrt(H)),
        wv=n(ks[7], (H, AH), 1.0 / np.sqrt(H)),
        wr=n(ks[8], (H, AH), 1.0 / np.sqrt(H)),
        wg=n(ks[9], (H, AH), 1.0 / np.sqrt(H)),
        # realistic RWKV-5 decay_speed range (roughly [-6, -1] at init)
        td=jax.random.uniform(ks[10], (nH, hs), minval=-6.0, maxval=-1.0,
                              dtype=jnp.float32),
        tf=n(ks[11], (nH, hs), 0.5),
        lnx_w=1.0 + 0.1 * n(ks[12], (1, H)),
        lnx_b=0.1 * n(ks[13], (1, H)),
        wo=n(ks[14], (AH, H), 1.0 / np.sqrt(AH)),
        ln2_w=1.0 + 0.1 * n(ks[15], (1, H)),
        ln2_b=0.1 * n(ks[16], (1, H)),
        ffn_tmk=jax.random.uniform(ks[17], (1, H), dtype=jnp.float32),
        ffn_tmr=jax.random.uniform(ks[18], (1, H), dtype=jnp.float32),
        ffn_wk=n(ks[19], (H, I), 1.0 / np.sqrt(H)),
        ffn_wr=n(ks[20], (H, H), 1.0 / np.sqrt(H)),
        ffn_wv=n(ks[21], (I, H), 1.0 / np.sqrt(I)),
    )
    hidden = n(ks[22], (B, T, H))

    out = rwkv5_block_forward(hidden, params, head_size=hs)
    out = jax.block_until_ready(out)

    ref = ref_forward(hidden, params, head_size=hs)
    np.testing.assert_allclose(np.asarray(out), np.asarray(ref),
                               rtol=5e-2, atol=5e-2)

    print("KERNEL_OK")
</pallas_src>

<mosaic_0001>
module attributes {stable_mosaic.version = 11 : i64} {
  func.func @_rwkv5_block_kernel(%arg0: i32, %arg1: memref<1x8x32xf32, #tpu.memory_space<vmem>>, %arg2: memref<1x32xf32, #tpu.memory_space<vmem>>, %arg3: memref<1x32xf32, #tpu.memory_space<vmem>>, %arg4: memref<1x32xf32, #tpu.memory_space<vmem>>, %arg5: memref<1x32xf32, #tpu.memory_space<vmem>>, %arg6: memref<1x32xf32, #tpu.memory_space<vmem>>, %arg7: memref<1x32xf32, #tpu.memory_space<vmem>>, %arg8: memref<32x32xbf16, #tpu.memory_space<vmem>>, %arg9: memref<32x32xbf16, #tpu.memory_space<vmem>>, %arg10: memref<32x32xbf16, #tpu.memory_space<vmem>>, %arg11: memref<32x32xbf16, #tpu.memory_space<vmem>>, %arg12: memref<4x8xf32, #tpu.memory_space<vmem>>, %arg13: memref<4x8xf32, #tpu.memory_space<vmem>>, %arg14: memref<1x32xf32, #tpu.memory_space<vmem>>, %arg15: memref<1x32xf32, #tpu.memory_space<vmem>>, %arg16: memref<32x32xbf16, #tpu.memory_space<vmem>>, %arg17: memref<1x32xf32, #tpu.memory_space<vmem>>, %arg18: memref<1x32xf32, #tpu.memory_space<vmem>>, %arg19: memref<1x32xf32, #tpu.memory_space<vmem>>, %arg20: memref<1x32xf32, #tpu.memory_space<vmem>>, %arg21: memref<32x96xbf16, #tpu.memory_space<vmem>>, %arg22: memref<32x32xbf16, #tpu.memory_space<vmem>>, %arg23: memref<96x32xbf16, #tpu.memory_space<vmem>>, %arg24: memref<1x8x32xf32, #tpu.memory_space<vmem>>) attributes {dimension_semantics = [#tpu.dimension_semantics<parallel>], iteration_bounds = array<i64: 2>, scalar_prefetch = 0 : i64, scratch_operands = 0 : i64, tpu.core_type = #tpu.core_type<tc>, window_params = [{transform_indices = @transform_0, window_bounds = array<i64: 1, 8, 32>}, {pipeline_mode = #tpu.pipeline_mode<synchronous>, transform_indices = @transform_1, window_bounds = array<i64: 1, 32>}, {pipeline_mode = #tpu.pipeline_mode<synchronous>, transform_indices = @transform_2, window_bounds = array<i64: 1, 32>}, {pipeline_mode = #tpu.pipeline_mode<synchronous>, transform_indices = @transform_3, window_bounds = array<i64: 1, 32>}, {pipeline_mode = #tpu.pipeline_mode<synchronous>, transform_indices = @transform_4, window_bounds = array<i64: 1, 32>}, {pipeline_mode = #tpu.pipeline_mode<synchronous>, transform_indices = @transform_5, window_bounds = array<i64: 1, 32>}, {pipeline_mode = #tpu.pipeline_mode<synchronous>, transform_indices = @transform_6, window_bounds = array<i64: 1, 32>}, {pipeline_mode = #tpu.pipeline_mode<synchronous>, transform_indices = @transform_7, window_bounds = array<i64: 32, 32>}, {pipeline_mode = #tpu.pipeline_mode<synchronous>, transform_indices = @transform_8, window_bounds = array<i64: 32, 32>}, {pipeline_mode = #tpu.pipeline_mode<synchronous>, transform_indices = @transform_9, window_bounds = array<i64: 32, 32>}, {pipeline_mode = #tpu.pipeline_mode<synchronous>, transform_indices = @transform_10, window_bounds = array<i64: 32, 32>}, {pipeline_mode = #tpu.pipeline_mode<synchronous>, transform_indices = @transform_11, window_bounds = array<i64: 4, 8>}, {pipeline_mode = #tpu.pipeline_mode<synchronous>, transform_indices = @transform_12, window_bounds = array<i64: 4, 8>}, {pipeline_mode = #tpu.pipeline_mode<synchronous>, transform_indices = @transform_13, window_bounds = array<i64: 1, 32>}, {pipeline_mode = #tpu.pipeline_mode<synchronous>, transform_indices = @transform_14, window_bounds = array<i64: 1, 32>}, {pipeline_mode = #tpu.pipeline_mode<synchronous>, transform_indices = @transform_15, window_bounds = array<i64: 32, 32>}, {pipeline_mode = #tpu.pipeline_mode<synchronous>, transform_indices = @transform_16, window_bounds = array<i64: 1, 32>}, {pipeline_mode = #tpu.pipeline_mode<synchronous>, transform_indices = @transform_17, window_bounds = array<i64: 1, 32>}, {pipeline_mode = #tpu.pipeline_mode<synchronous>, transform_indices = @transform_18, window_bounds = array<i64: 1, 32>}, {pipeline_mode = #tpu.pipeline_mode<synchronous>, transform_indices = @transform_19, window_bounds = array<i64: 1, 32>}, {pipeline_mode = #tpu.pipeline_mode<synchronous>, transform_indices = @transform_20, window_bounds = array<i64: 32, 96>}, {pipeline_mode = #tpu.pipeline_mode<synchronous>, transform_indices = @transform_21, window_bounds = array<i64: 32, 32>}, {pipeline_mode = #tpu.pipeline_mode<synchronous>, transform_indices = @transform_22, window_bounds = array<i64: 96, 32>}, {transform_indices = @transform_23, window_bounds = array<i64: 1, 8, 32>}]} {
    %c0 = arith.constant 0 : index
    %c0_0 = arith.constant 0 : index
    %c0_1 = arith.constant 0 : index
    %0 = vector.load %arg1[%c0, %c0_0, %c0_1] : memref<1x8x32xf32, #tpu.memory_space<vmem>>, vector<1x8x32xf32>
    %1 = vector.shape_cast %0 : vector<1x8x32xf32> to vector<8x32xf32>
    %cst = arith.constant dense<0.000000e+00> : vector<8xf32>
    %2 = vector.multi_reduction <add>, %1, %cst [1] : vector<8x32xf32> to vector<8xf32>
    %3 = vector.shape_cast %2 : vector<8xf32> to vector<8x1xf32>
    %cst_2 = arith.constant 3.200000e+01 : f32
    %4 = vector.broadcast %cst_2 : f32 to vector<8x1xf32>
    %5 = arith.divf %3, %4 : vector<8x1xf32>
    %6 = vector.broadcast %5 : vector<8x1xf32> to vector<8x32xf32>
    %7 = arith.subf %1, %6 : vector<8x32xf32>
    %8 = arith.mulf %7, %7 : vector<8x32xf32>
    %cst_3 = arith.constant dense<0.000000e+00> : vector<8xf32>
    %9 = vector.multi_reduction <add>, %8, %cst_3 [1] : vector<8x32xf32> to vector<8xf32>
    %10 = vector.shape_cast %9 : vector<8xf32> to vector<8x1xf32>
    %cst_4 = arith.constant 3.200000e+01 : f32
    %11 = vector.broadcast %cst_4 : f32 to vector<8x1xf32>
    %12 = arith.divf %10, %11 : vector<8x1xf32>
    %13 = vector.broadcast %5 : vector<8x1xf32> to vector<8x32xf32>
    %14 = arith.subf %1, %13 : vector<8x32xf32>
    %cst_5 = arith.constant 9.99999974E-6 : f32
    %15 = vector.broadcast %cst_5 : f32 to vector<8x1xf32>
    %16 = arith.addf %12, %15 : vector<8x1xf32>
    %17 = math.rsqrt %16 : vector<8x1xf32>
    %18 = vector.broadcast %17 : vector<8x1xf32> to vector<8x32xf32>
    %19 = arith.mulf %14, %18 : vector<8x32xf32>
    %c0_6 = arith.constant 0 : index
    %c0_7 = arith.constant 0 : index
    %20 = vector.load %arg2[%c0_6, %c0_7] : memref<1x32xf32, #tpu.memory_space<vmem>>, vector<1x32xf32>
    %21 = vector.shape_cast %20 : vector<1x32xf32> to vector<32xf32>
    %22 = vector.shape_cast %21 : vector<32xf32> to vector<1x32xf32>
    %23 = vector.broadcast %22 : vector<1x32xf32> to vector<8x32xf32>
    %24 = arith.mulf %19, %23 : vector<8x32xf32>
    %c0_8 = arith.constant 0 : index
    %c0_9 = arith.constant 0 : index
    %25 = vector.load %arg3[%c0_8, %c0_9] : memref<1x32xf32, #tpu.memory_space<vmem>>, vector<1x32xf32>
    %26 = vector.shape_cast %25 : vector<1x32xf32> to vector<32xf32>
    %27 = vector.shape_cast %26 : vector<32xf32> to vector<1x32xf32>
    %28 = vector.broadcast %27 : vector<1x32xf32> to vector<8x32xf32>
    %29 = arith.addf %24, %28 : vector<8x32xf32>
    %c1_i32 = arith.constant 1 : i32
    %30 = tpu.dynamic_rotate %29 by %c1_i32 dim 0 : vector<8x32xf32>, i32 -> vector<8x32xf32>
    %31 = tpu.iota {dimensions = array<i32: 0>} : vector<8x32xi32>
    %c0_i32 = arith.constant 0 : i32
    %32 = vector.broadcast %c0_i32 : i32 to vector<8x32xi32>
    %33 = arith.cmpi eq, %31, %32 : vector<8x32xi32>
    %cst_10 = arith.constant 0.000000e+00 : f32
    %34 = vector.broadcast %cst_10 : f32 to vector<8x32xf32>
    %35 = arith.select %33, %34, %30 : vector<8x32xi1>, vector<8x32xf32>
    %c0_11 = arith.constant 0 : index
    %c0_12 = arith.constant 0 : index
    %36 = vector.load %arg4[%c0_11, %c0_12] : memref<1x32xf32, #tpu.memory_space<vmem>>, vector<1x32xf32>
    %37 = vector.shape_cast %36 : vector<1x32xf32> to vector<32xf32>
    %38 = arith.subf %29, %35 : vector<8x32xf32>
    %39 = vector.shape_cast %37 : vector<32xf32> to vector<1x32xf32>
    %40 = vector.broadcast %39 : vector<1x32xf32> to vector<8x32xf32>
    %41 = arith.mulf %40, %38 : vector<8x32xf32>
    %42 = arith.addf %35, %41 : vector<8x32xf32>
    %43 = arith.truncf %42 : vector<8x32xf32> to vector<8x32xbf16>
    %c0_13 = arith.constant 0 : index
    %c0_14 = arith.constant 0 : index
    %44 = vector.load %arg8[%c0_13, %c0_14] : memref<32x32xbf16, #tpu.memory_space<vmem>>, vector<32x32xbf16>
    %cst_15 = arith.constant dense<0.000000e+00> : vector<8x32xf32>
    %45 = tpu.matmul %43, %44, %cst_15 {dimension_numbers = #tpu.dot_dimension_numbers<[1], [0], [0], [1], [0, 0, 1, 1], [], []>} : vector<8x32xbf16>, vector<32x32xbf16>, vector<8x32xf32> -> vector<8x32xf32>
    %c0_16 = arith.constant 0 : index
    %c0_17 = arith.constant 0 : index
    %46 = vector.load %arg5[%c0_16, %c0_17] : memref<1x32xf32, #tpu.memory_space<vmem>>, vector<1x32xf32>
    %47 = vector.shape_cast %46 : vector<1x32xf32> to vector<32xf32>
    %48 = arith.subf %29, %35 : vector<8x32xf32>
    %49 = vector.shape_cast %47 : vector<32xf32> to vector<1x32xf32>
    %50 = vector.broadcast %49 : vector<1x32xf32> to vector<8x32xf32>
    %51 = arith.mulf %50, %48 : vector<8x32xf32>
    %52 = arith.addf %35, %51 : vector<8x32xf32>
    %53 = arith.truncf %52 : vector<8x32xf32> to vector<8x32xbf16>
    %c0_18 = arith.constant 0 : index
    %c0_19 = arith.constant 0 : index
    %54 = vector.load %arg9[%c0_18, %c0_19] : memref<32x32xbf16, #tpu.memory_space<vmem>>, vector<32x32xbf16>
    %cst_20 = arith.constant dense<0.000000e+00> : vector<8x32xf32>
    %55 = tpu.matmul %53, %54, %cst_20 {dimension_numbers = #tpu.dot_dimension_numbers<[1], [0], [0], [1], [0, 0, 1, 1], [], []>} : vector<8x32xbf16>, vector<32x32xbf16>, vector<8x32xf32> -> vector<8x32xf32>
    %c0_21 = arith.constant 0 : index
    %c0_22 = arith.constant 0 : index
    %56 = vector.load %arg6[%c0_21, %c0_22] : memref<1x32xf32, #tpu.memory_space<vmem>>, vector<1x32xf32>
    %57 = vector.shape_cast %56 : vector<1x32xf32> to vector<32xf32>
    %58 = arith.subf %29, %35 : vector<8x32xf32>
    %59 = vector.shape_cast %57 : vector<32xf32> to vector<1x32xf32>
    %60 = vector.broadcast %59 : vector<1x32xf32> to vector<8x32xf32>
    %61 = arith.mulf %60, %58 : vector<8x32xf32>
    %62 = arith.addf %35, %61 : vector<8x32xf32>
    %63 = arith.truncf %62 : vector<8x32xf32> to vector<8x32xbf16>
    %c0_23 = arith.constant 0 : index
    %c0_24 = arith.constant 0 : index
    %64 = vector.load %arg10[%c0_23, %c0_24] : memref<32x32xbf16, #tpu.memory_space<vmem>>, vector<32x32xbf16>
    %cst_25 = arith.constant dense<0.000000e+00> : vector<8x32xf32>
    %65 = tpu.matmul %63, %64, %cst_25 {dimension_numbers = #tpu.dot_dimension_numbers<[1], [0], [0], [1], [0, 0, 1, 1], [], []>} : vector<8x32xbf16>, vector<32x32xbf16>, vector<8x32xf32> -> vector<8x32xf32>
    %c0_26 = arith.constant 0 : index
    %c0_27 = arith.constant 0 : index
    %66 = vector.load %arg7[%c0_26, %c0_27] : memref<1x32xf32, #tpu.memory_space<vmem>>, vector<1x32xf32>
    %67 = vector.shape_cast %66 : vector<1x32xf32> to vector<32xf32>
    %68 = arith.subf %29, %35 : vector<8x32xf32>
    %69 = vector.shape_cast %67 : vector<32xf32> to vector<1x32xf32>
    %70 = vector.broadcast %69 : vector<1x32xf32> to vector<8x32xf32>
    %71 = arith.mulf %70, %68 : vector<8x32xf32>
    %72 = arith.addf %35, %71 : vector<8x32xf32>
    %73 = arith.truncf %72 : vector<8x32xf32> to vector<8x32xbf16>
    %c0_28 = arith.constant 0 : index
    %c0_29 = arith.constant 0 : index
    %74 = vector.load %arg11[%c0_28, %c0_29] : memref<32x32xbf16, #tpu.memory_space<vmem>>, vector<32x32xbf16>
    %cst_30 = arith.constant dense<0.000000e+00> : vector<8x32xf32>
    %75 = tpu.matmul %73, %74, %cst_30 {dimension_numbers = #tpu.dot_dimension_numbers<[1], [0], [0], [1], [0, 0, 1, 1], [], []>} : vector<8x32xbf16>, vector<32x32xbf16>, vector<8x32xf32> -> vector<8x32xf32>
    %76 = arith.negf %75 : vector<8x32xf32>
    %77 = math.exp %76 : vector<8x32xf32>
    %cst_31 = arith.constant 1.000000e+00 : f32
    %78 = vector.broadcast %cst_31 : f32 to vector<8x32xf32>
    %79 = arith.addf %78, %77 : vector<8x32xf32>
    %80 = arith.divf %78, %79 : vector<8x32xf32>
    %81 = arith.mulf %75, %80 : vector<8x32xf32>
    %82 = vector.shape_cast %45 : vector<8x32xf32> to vector<8x4x8xf32>
    %83 = tpu.transpose %82, [1, 0, 2] : vector<8x4x8xf32> -> vector<4x8x8xf32>
    %84 = vector.shape_cast %55 : vector<8x32xf32> to vector<8x4x8xf32>
    %85 = tpu.transpose %84, [1, 0, 2] : vector<8x4x8xf32> -> vector<4x8x8xf32>
    %86 = vector.shape_cast %65 : vector<8x32xf32> to vector<8x4x8xf32>
    %87 = tpu.transpose %86, [1, 0, 2] : vector<8x4x8xf32> -> vector<4x8x8xf32>
    %c0_32 = arith.constant 0 : index
    %c0_33 = arith.constant 0 : index
    %88 = vector.load %arg12[%c0_32, %c0_33] : memref<4x8xf32, #tpu.memory_space<vmem>>, vector<4x8xf32>
    %89 = math.exp %88 : vector<4x8xf32>
    %90 = vector.shape_cast %89 : vector<4x8xf32> to vector<4x1x8xf32>
    %c0_34 = arith.constant 0 : index
    %c0_35 = arith.constant 0 : index
    %91 = vector.load %arg13[%c0_34, %c0_35] : memref<4x8xf32, #tpu.memory_space<vmem>>, vector<4x8xf32>
    %92 = vector.shape_cast %91 : vector<4x8xf32> to vector<4x1x8xf32>
    %93 = tpu.iota {dimensions = array<i32: 0>} : vector<8x1xi32>
    %94 = arith.sitofp %93 : vector<8x1xi32> to vector<8x1xf32>
    %95 = vector.shape_cast %94 : vector<8x1xf32> to vector<1x8x1xf32>
    %96 = tpu.iota {dimensions = array<i32: 0>} : vector<8x8xi32>
    %97 = tpu.iota {dimensions = array<i32: 1>} : vector<8x8xi32>
    %98 = arith.cmpi sgt, %96, %97 : vector<8x8xi32>
    %99 = vector.shape_cast %98 : vector<8x8xi1> to vector<1x8x8xi1>
    %cst_36 = arith.constant 4.000000e+00 : f32
    %100 = vector.broadcast %cst_36 : f32 to vector<1x8x1xf32>
    %101 = arith.subf %95, %100 : vector<1x8x1xf32>
    %cst_37 = arith.constant 0.000000e+00 : f32
    %102 = vector.broadcast %cst_37 : f32 to vector<1x8x1xf32>
    %103 = arith.subf %102, %101 : vector<1x8x1xf32>
    %104 = vector.broadcast %103 : vector<1x8x1xf32> to vector<4x8x8xf32>
    %105 = vector.broadcast %90 : vector<4x1x8xf32> to vector<4x8x8xf32>
    %106 = arith.mulf %104, %105 : vector<4x8x8xf32>
    %107 = math.exp %106 : vector<4x8x8xf32>
    %cst_38 = arith.constant 1.000000e+00 : f32
    %108 = vector.broadcast %cst_38 : f32 to vector<1x8x1xf32>
    %109 = arith.addf %95, %108 : vector<1x8x1xf32>
    %cst_39 = arith.constant 4.000000e+00 : f32
    %110 = vector.broadcast %cst_39 : f32 to vector<1x8x1xf32>
    %111 = arith.subf %109, %110 : vector<1x8x1xf32>
    %112 = vector.broadcast %111 : vector<1x8x1xf32> to vector<4x8x8xf32>
    %113 = vector.broadcast %90 : vector<4x1x8xf32> to vector<4x8x8xf32>
    %114 = arith.mulf %112, %113 : vector<4x8x8xf32>
    %115 = math.exp %114 : vector<4x8x8xf32>
    %116 = arith.mulf %87, %107 : vector<4x8x8xf32>
    %117 = arith.mulf %83, %115 : vector<4x8x8xf32>
    "tpu.trace_start"() <{level = 10 : i32, message = "nci,nsi->ncs"}> : () -> ()
    %cst_40 = arith.constant dense<0.000000e+00> : vector<4x8x8xf32>
    %118 = tpu.matmul %116, %117, %cst_40 {dimension_numbers = #tpu.dot_dimension_numbers<[2], [2], [1], [1], [0, 0, 0, 1, 1, 1], [0], [0]>} : vector<4x8x8xf32>, vector<4x8x8xf32>, vector<4x8x8xf32> -> vector<4x8x8xf32>
    %cst_41 = arith.constant 0.000000e+00 : f32
    "tpu.trace_stop"() : () -> ()
    %119 = vector.shape_cast %99 : vector<1x8x8xi1> to vector<1x8x8xi1>
    %120 = vector.broadcast %119 : vector<1x8x8xi1> to vector<4x8x8xi1>
    %121 = vector.broadcast %cst_41 : f32 to vector<4x8x8xf32>
    %122 = arith.select %120, %118, %121 : vector<4x8x8xi1>, vector<4x8x8xf32>
    "tpu.trace_start"() <{level = 10 : i32, message = "ncs,nsj->ncj"}> : () -> ()
    %cst_42 = arith.constant dense<0.000000e+00> : vector<4x8x8xf32>
    %123 = tpu.matmul %122, %85, %cst_42 {dimension_numbers = #tpu.dot_dimension_numbers<[2], [1], [1], [2], [0, 0, 0, 1, 1, 2], [0], [0]>} : vector<4x8x8xf32>, vector<4x8x8xf32>, vector<4x8x8xf32> -> vector<4x8x8xf32>
    "tpu.trace_stop"() : () -> ()
    %124 = vector.broadcast %92 : vector<4x1x8xf32> to vector<4x8x8xf32>
    %125 = arith.mulf %87, %124 : vector<4x8x8xf32>
    %126 = arith.mulf %125, %83 : vector<4x8x8xf32>
    %cst_43 = arith.constant dense<0.000000e+00> : vector<4x8xf32>
    %127 = vector.multi_reduction <add>, %126, %cst_43 [2] : vector<4x8x8xf32> to vector<4x8xf32>
    %128 = vector.shape_cast %127 : vector<4x8xf32> to vector<4x8x1xf32>
    %129 = vector.broadcast %128 : vector<4x8x1xf32> to vector<4x8x8xf32>
    %130 = arith.mulf %129, %85 : vector<4x8x8xf32>
    %131 = arith.addf %123, %130 : vector<4x8x8xf32>
    %cst_44 = arith.constant dense<0.000000e+00> : vector<4x8xf32>
    %132 = vector.multi_reduction <add>, %131, %cst_44 [2] : vector<4x8x8xf32> to vector<4x8xf32>
    %133 = vector.shape_cast %132 : vector<4x8xf32> to vector<4x8x1xf32>
    %cst_45 = arith.constant 8.000000e+00 : f32
    %134 = vector.broadcast %cst_45 : f32 to vector<4x8x1xf32>
    %135 = arith.divf %133, %134 : vector<4x8x1xf32>
    %136 = vector.broadcast %135 : vector<4x8x1xf32> to vector<4x8x8xf32>
    %137 = arith.subf %131, %136 : vector<4x8x8xf32>
    %138 = arith.mulf %137, %137 : vector<4x8x8xf32>
    %cst_46 = arith.constant dense<0.000000e+00> : vector<4x8xf32>
    %139 = vector.multi_reduction <add>, %138, %cst_46 [2] : vector<4x8x8xf32> to vector<4x8xf32>
    %140 = vector.shape_cast %139 : vector<4x8xf32> to vector<4x8x1xf32>
    %cst_47 = arith.constant 8.000000e+00 : f32
    %141 = vector.broadcast %cst_47 : f32 to vector<4x8x1xf32>
    %142 = arith.divf %140, %141 : vector<4x8x1xf32>
    %143 = vector.broadcast %135 : vector<4x8x1xf32> to vector<4x8x8xf32>
    %144 = arith.subf %131, %143 : vector<4x8x8xf32>
    %cst_48 = arith.constant 9.99999974E-6 : f32
    %145 = vector.broadcast %cst_48 : f32 to vector<4x8x1xf32>
    %146 = arith.addf %142, %145 : vector<4x8x1xf32>
    %147 = math.rsqrt %146 : vector<4x8x1xf32>
    %148 = vector.broadcast %147 : vector<4x8x1xf32> to vector<4x8x8xf32>
    %149 = arith.mulf %144, %148 : vector<4x8x8xf32>
    %150 = tpu.transpose %149, [1, 0, 2] : vector<4x8x8xf32> -> vector<8x4x8xf32>
    %151 = vector.shape_cast %150 : vector<8x4x8xf32> to vector<8x32xf32>
    %c0_49 = arith.constant 0 : index
    %c0_50 = arith.constant 0 : index
    %152 = vector.load %arg14[%c0_49, %c0_50] : memref<1x32xf32, #tpu.memory_space<vmem>>, vector<1x32xf32>
    %153 = vector.shape_cast %152 : vector<1x32xf32> to vector<32xf32>
    %154 = vector.shape_cast %153 : vector<32xf32> to vector<1x32xf32>
    %155 = vector.broadcast %154 : vector<1x32xf32> to vector<8x32xf32>
    %156 = arith.mulf %151, %155 : vector<8x32xf32>
    %c0_51 = arith.constant 0 : index
    %c0_52 = arith.constant 0 : index
    %157 = vector.load %arg15[%c0_51, %c0_52] : memref<1x32xf32, #tpu.memory_space<vmem>>, vector<1x32xf32>
    %158 = vector.shape_cast %157 : vector<1x32xf32> to vector<32xf32>
    %159 = vector.shape_cast %158 : vector<32xf32> to vector<1x32xf32>
    %160 = vector.broadcast %159 : vector<1x32xf32> to vector<8x32xf32>
    %161 = arith.addf %156, %160 : vector<8x32xf32>
    %162 = arith.mulf %161, %81 : vector<8x32xf32>
    %163 = arith.truncf %162 : vector<8x32xf32> to vector<8x32xbf16>
    %c0_53 = arith.constant 0 : index
    %c0_54 = arith.constant 0 : index
    %164 = vector.load %arg16[%c0_53, %c0_54] : memref<32x32xbf16, #tpu.memory_space<vmem>>, vector<32x32xbf16>
    %cst_55 = arith.constant dense<0.000000e+00> : vector<8x32xf32>
    %165 = tpu.matmul %163, %164, %cst_55 {dimension_numbers = #tpu.dot_dimension_numbers<[1], [0], [0], [1], [0, 0, 1, 1], [], []>} : vector<8x32xbf16>, vector<32x32xbf16>, vector<8x32xf32> -> vector<8x32xf32>
    %166 = arith.addf %1, %165 : vector<8x32xf32>
    %cst_56 = arith.constant dense<0.000000e+00> : vector<8xf32>
    %167 = vector.multi_reduction <add>, %166, %cst_56 [1] : vector<8x32xf32> to vector<8xf32>
    %168 = vector.shape_cast %167 : vector<8xf32> to vector<8x1xf32>
    %cst_57 = arith.constant 3.200000e+01 : f32
    %169 = vector.broadcast %cst_57 : f32 to vector<8x1xf32>
    %170 = arith.divf %168, %169 : vector<8x1xf32>
    %171 = vector.broadcast %170 : vector<8x1xf32> to vector<8x32xf32>
    %172 = arith.subf %166, %171 : vector<8x32xf32>
    %173 = arith.mulf %172, %172 : vector<8x32xf32>
    %cst_58 = arith.constant dense<0.000000e+00> : vector<8xf32>
    %174 = vector.multi_reduction <add>, %173, %cst_58 [1] : vector<8x32xf32> to vector<8xf32>
    %175 = vector.shape_cast %174 : vector<8xf32> to vector<8x1xf32>
    %cst_59 = arith.constant 3.200000e+01 : f32
    %176 = vector.broadcast %cst_59 : f32 to vector<8x1xf32>
    %177 = arith.divf %175, %176 : vector<8x1xf32>
    %178 = vector.broadcast %170 : vector<8x1xf32> to vector<8x32xf32>
    %179 = arith.subf %166, %178 : vector<8x32xf32>
    %cst_60 = arith.constant 9.99999974E-6 : f32
    %180 = vector.broadcast %cst_60 : f32 to vector<8x1xf32>
    %181 = arith.addf %177, %180 : vector<8x1xf32>
    %182 = math.rsqrt %181 : vector<8x1xf32>
    %183 = vector.broadcast %182 : vector<8x1xf32> to vector<8x32xf32>
    %184 = arith.mulf %179, %183 : vector<8x32xf32>
    %c0_61 = arith.constant 0 : index
    %c0_62 = arith.constant 0 : index
    %185 = vector.load %arg17[%c0_61, %c0_62] : memref<1x32xf32, #tpu.memory_space<vmem>>, vector<1x32xf32>
    %186 = vector.shape_cast %185 : vector<1x32xf32> to vector<32xf32>
    %187 = vector.shape_cast %186 : vector<32xf32> to vector<1x32xf32>
    %188 = vector.broadcast %187 : vector<1x32xf32> to vector<8x32xf32>
    %189 = arith.mulf %184, %188 : vector<8x32xf32>
    %c0_63 = arith.constant 0 : index
    %c0_64 = arith.constant 0 : index
    %190 = vector.load %arg18[%c0_63, %c0_64] : memref<1x32xf32, #tpu.memory_space<vmem>>, vector<1x32xf32>
    %191 = vector.shape_cast %190 : vector<1x32xf32> to vector<32xf32>
    %192 = vector.shape_cast %191 : vector<32xf32> to vector<1x32xf32>
    %193 = vector.broadcast %192 : vector<1x32xf32> to vector<8x32xf32>
    %194 = arith.addf %189, %193 : vector<8x32xf32>
    %c1_i32_65 = arith.constant 1 : i32
    %195 = tpu.dynamic_rotate %194 by %c1_i32_65 dim 0 : vector<8x32xf32>, i32 -> vector<8x32xf32>
    %196 = tpu.iota {dimensions = array<i32: 0>} : vector<8x32xi32>
    %c0_i32_66 = arith.constant 0 : i32
    %197 = vector.broadcast %c0_i32_66 : i32 to vector<8x32xi32>
    %198 = arith.cmpi eq, %196, %197 : vector<8x32xi32>
    %cst_67 = arith.constant 0.000000e+00 : f32
    %199 = vector.broadcast %cst_67 : f32 to vector<8x32xf32>
    %200 = arith.select %198, %199, %195 : vector<8x32xi1>, vector<8x32xf32>
    %c0_68 = arith.constant 0 : index
    %c0_69 = arith.constant 0 : index
    %201 = vector.load %arg19[%c0_68, %c0_69] : memref<1x32xf32, #tpu.memory_space<vmem>>, vector<1x32xf32>
    %202 = vector.shape_cast %201 : vector<1x32xf32> to vector<32xf32>
    %c0_70 = arith.constant 0 : index
    %c0_71 = arith.constant 0 : index
    %203 = vector.load %arg20[%c0_70, %c0_71] : memref<1x32xf32, #tpu.memory_space<vmem>>, vector<1x32xf32>
    %204 = vector.shape_cast %203 : vector<1x32xf32> to vector<32xf32>
    %205 = arith.subf %194, %200 : vector<8x32xf32>
    %206 = vector.shape_cast %202 : vector<32xf32> to vector<1x32xf32>
    %207 = vector.broadcast %206 : vector<1x32xf32> to vector<8x32xf32>
    %208 = arith.mulf %207, %205 : vector<8x32xf32>
    %209 = arith.addf %200, %208 : vector<8x32xf32>
    %210 = arith.subf %194, %200 : vector<8x32xf32>
    %211 = vector.shape_cast %204 : vector<32xf32> to vector<1x32xf32>
    %212 = vector.broadcast %211 : vector<1x32xf32> to vector<8x32xf32>
    %213 = arith.mulf %212, %210 : vector<8x32xf32>
    %214 = arith.addf %200, %213 : vector<8x32xf32>
    %215 = arith.truncf %209 : vector<8x32xf32> to vector<8x32xbf16>
    %c0_72 = arith.constant 0 : index
    %c0_73 = arith.constant 0 : index
    %216 = vector.load %arg21[%c0_72, %c0_73] : memref<32x96xbf16, #tpu.memory_space<vmem>>, vector<32x96xbf16>
    %cst_74 = arith.constant dense<0.000000e+00> : vector<8x96xf32>
    %217 = tpu.matmul %215, %216, %cst_74 {dimension_numbers = #tpu.dot_dimension_numbers<[1], [0], [0], [1], [0, 0, 1, 1], [], []>} : vector<8x32xbf16>, vector<32x96xbf16>, vector<8x96xf32> -> vector<8x96xf32>
    %cst_75 = arith.constant 0.000000e+00 : f32
    %218 = vector.broadcast %cst_75 : f32 to vector<8x96xf32>
    %219 = arith.maximumf %217, %218 : vector<8x96xf32>
    %220 = arith.mulf %219, %219 : vector<8x96xf32>
    %221 = arith.truncf %220 : vector<8x96xf32> to vector<8x96xbf16>
    %c0_76 = arith.constant 0 : index
    %c0_77 = arith.constant 0 : index
    %222 = vector.load %arg23[%c0_76, %c0_77] : memref<96x32xbf16, #tpu.memory_space<vmem>>, vector<96x32xbf16>
    %cst_78 = arith.constant dense<0.000000e+00> : vector<8x32xf32>
    %223 = tpu.matmul %221, %222, %cst_78 {dimension_numbers = #tpu.dot_dimension_numbers<[1], [0], [0], [1], [0, 0, 1, 1], [], []>} : vector<8x96xbf16>, vector<96x32xbf16>, vector<8x32xf32> -> vector<8x32xf32>
    %224 = arith.truncf %214 : vector<8x32xf32> to vector<8x32xbf16>
    %c0_79 = arith.constant 0 : index
    %c0_80 = arith.constant 0 : index
    %225 = vector.load %arg22[%c0_79, %c0_80] : memref<32x32xbf16, #tpu.memory_space<vmem>>, vector<32x32xbf16>
    %cst_81 = arith.constant dense<0.000000e+00> : vector<8x32xf32>
    %226 = tpu.matmul %224, %225, %cst_81 {dimension_numbers = #tpu.dot_dimension_numbers<[1], [0], [0], [1], [0, 0, 1, 1], [], []>} : vector<8x32xbf16>, vector<32x32xbf16>, vector<8x32xf32> -> vector<8x32xf32>
    %227 = arith.negf %226 : vector<8x32xf32>
    %228 = math.exp %227 : vector<8x32xf32>
    %cst_82 = arith.constant 1.000000e+00 : f32
    %229 = vector.broadcast %cst_82 : f32 to vector<8x32xf32>
    %230 = arith.addf %229, %228 : vector<8x32xf32>
    %231 = arith.divf %229, %230 : vector<8x32xf32>
    %232 = arith.mulf %231, %223 : vector<8x32xf32>
    %233 = arith.addf %166, %232 : vector<8x32xf32>
    %c0_83 = arith.constant 0 : index
    %c0_84 = arith.constant 0 : index
    %c0_85 = arith.constant 0 : index
    %234 = vector.load %arg24[%c0_83, %c0_84, %c0_85] : memref<1x8x32xf32, #tpu.memory_space<vmem>>, vector<1x8x32xf32>
    %235 = vector.shape_cast %234 : vector<1x8x32xf32> to vector<8x32xf32>
    %236 = vector.shape_cast %233 : vector<8x32xf32> to vector<1x8x32xf32>
    tpu.vector_store %arg24[%c0_83, %c0_84, %c0_85], %236 {strides = array<i32>} : memref<1x8x32xf32, #tpu.memory_space<vmem>>, vector<1x8x32xf32>,
    return
  }
  func.func @transform_0(%arg0: i32) -> (i32, i32, i32) {
    %c0_i32 = arith.constant 0 : i32
    %c0_i32_0 = arith.constant 0 : i32
    %c0_i32_1 = arith.constant 0 : i32
    return %arg0, %c0_i32, %c0_i32_0 : i32, i32, i32
  }
  func.func @transform_1(%arg0: i32) -> (i32, i32) {
    %c0_i32 = arith.constant 0 : i32
    %c0_i32_0 = arith.constant 0 : i32
    %c0_i32_1 = arith.constant 0 : i32
    return %c0_i32, %c0_i32_0 : i32, i32
  }
  func.func @transform_2(%arg0: i32) -> (i32, i32) {
    %c0_i32 = arith.constant 0 : i32
    %c0_i32_0 = arith.constant 0 : i32
    %c0_i32_1 = arith.constant 0 : i32
    return %c0_i32, %c0_i32_0 : i32, i32
  }
  func.func @transform_3(%arg0: i32) -> (i32, i32) {
    %c0_i32 = arith.constant 0 : i32
    %c0_i32_0 = arith.constant 0 : i32
    %c0_i32_1 = arith.constant 0 : i32
    return %c0_i32, %c0_i32_0 : i32, i32
  }
  func.func @transform_4(%arg0: i32) -> (i32, i32) {
    %c0_i32 = arith.constant 0 : i32
    %c0_i32_0 = arith.constant 0 : i32
    %c0_i32_1 = arith.constant 0 : i32
    return %c0_i32, %c0_i32_0 : i32, i32
  }
  func.func @transform_5(%arg0: i32) -> (i32, i32) {
    %c0_i32 = arith.constant 0 : i32
    %c0_i32_0 = arith.constant 0 : i32
    %c0_i32_1 = arith.constant 0 : i32
    return %c0_i32, %c0_i32_0 : i32, i32
  }
  func.func @transform_6(%arg0: i32) -> (i32, i32) {
    %c0_i32 = arith.constant 0 : i32
    %c0_i32_0 = arith.constant 0 : i32
    %c0_i32_1 = arith.constant 0 : i32
    return %c0_i32, %c0_i32_0 : i32, i32
  }
  func.func @transform_7(%arg0: i32) -> (i32, i32) {
    %c0_i32 = arith.constant 0 : i32
    %c0_i32_0 = arith.constant 0 : i32
    %c0_i32_1 = arith.constant 0 : i32
    return %c0_i32, %c0_i32_0 : i32, i32
  }
  func.func @transform_8(%arg0: i32) -> (i32, i32) {
    %c0_i32 = arith.constant 0 : i32
    %c0_i32_0 = arith.constant 0 : i32
    %c0_i32_1 = arith.constant 0 : i32
    return %c0_i32, %c0_i32_0 : i32, i32
  }
  func.func @transform_9(%arg0: i32) -> (i32, i32) {
    %c0_i32 = arith.constant 0 : i32
    %c0_i32_0 = arith.constant 0 : i32
    %c0_i32_1 = arith.constant 0 : i32
    return %c0_i32, %c0_i32_0 : i32, i32
  }
  func.func @transform_10(%arg0: i32) -> (i32, i32) {
    %c0_i32 = arith.constant 0 : i32
    %c0_i32_0 = arith.constant 0 : i32
    %c0_i32_1 = arith.constant 0 : i32
    return %c0_i32, %c0_i32_0 : i32, i32
  }
  func.func @transform_11(%arg0: i32) -> (i32, i32) {
    %c0_i32 = arith.constant 0 : i32
    %c0_i32_0 = arith.constant 0 : i32
    %c0_i32_1 = arith.constant 0 : i32
    return %c0_i32, %c0_i32_0 : i32, i32
  }
  func.func @transform_12(%arg0: i32) -> (i32, i32) {
    %c0_i32 = arith.constant 0 : i32
    %c0_i32_0 = arith.constant 0 : i32
    %c0_i32_1 = arith.constant 0 : i32
    return %c0_i32, %c0_i32_0 : i32, i32
  }
  func.func @transform_13(%arg0: i32) -> (i32, i32) {
    %c0_i32 = arith.constant 0 : i32
    %c0_i32_0 = arith.constant 0 : i32
    %c0_i32_1 = arith.constant 0 : i32
    return %c0_i32, %c0_i32_0 : i32, i32
  }
  func.func @transform_14(%arg0: i32) -> (i32, i32) {
    %c0_i32 = arith.constant 0 : i32
    %c0_i32_0 = arith.constant 0 : i32
    %c0_i32_1 = arith.constant 0 : i32
    return %c0_i32, %c0_i32_0 : i32, i32
  }
  func.func @transform_15(%arg0: i32) -> (i32, i32) {
    %c0_i32 = arith.constant 0 : i32
    %c0_i32_0 = arith.constant 0 : i32
    %c0_i32_1 = arith.constant 0 : i32
    return %c0_i32, %c0_i32_0 : i32, i32
  }
  func.func @transform_16(%arg0: i32) -> (i32, i32) {
    %c0_i32 = arith.constant 0 : i32
    %c0_i32_0 = arith.constant 0 : i32
    %c0_i32_1 = arith.constant 0 : i32
    return %c0_i32, %c0_i32_0 : i32, i32
  }
  func.func @transform_17(%arg0: i32) -> (i32, i32) {
    %c0_i32 = arith.constant 0 : i32
    %c0_i32_0 = arith.constant 0 : i32
    %c0_i32_1 = arith.constant 0 : i32
    return %c0_i32, %c0_i32_0 : i32, i32
  }
  func.func @transform_18(%arg0: i32) -> (i32, i32) {
    %c0_i32 = arith.constant 0 : i32
    %c0_i32_0 = arith.constant 0 : i32
    %c0_i32_1 = arith.constant 0 : i32
    return %c0_i32, %c0_i32_0 : i32, i32
  }
  func.func @transform_19(%arg0: i32) -> (i32, i32) {
    %c0_i32 = arith.constant 0 : i32
    %c0_i32_0 = arith.constant 0 : i32
    %c0_i32_1 = arith.constant 0 : i32
    return %c0_i32, %c0_i32_0 : i32, i32
  }
  func.func @transform_20(%arg0: i32) -> (i32, i32) {
    %c0_i32 = arith.constant 0 : i32
    %c0_i32_0 = arith.constant 0 : i32
    %c0_i32_1 = arith.constant 0 : i32
    return %c0_i32, %c0_i32_0 : i32, i32
  }
  func.func @transform_21(%arg0: i32) -> (i32, i32) {
    %c0_i32 = arith.constant 0 : i32
    %c0_i32_0 = arith.constant 0 : i32
    %c0_i32_1 = arith.constant 0 : i32
    return %c0_i32, %c0_i32_0 : i32, i32
  }
  func.func @transform_22(%arg0: i32) -> (i32, i32) {
    %c0_i32 = arith.constant 0 : i32
    %c0_i32_0 = arith.constant 0 : i32
    %c0_i32_1 = arith.constant 0 : i32
    return %c0_i32, %c0_i32_0 : i32, i32
  }
  func.func @transform_23(%arg0: i32) -> (i32, i32, i32) {
    %c0_i32 = arith.constant 0 : i32
    %c0_i32_0 = arith.constant 0 : i32
    %c0_i32_1 = arith.constant 0 : i32
    return %arg0, %c0_i32, %c0_i32_0 : i32, i32, i32
  }
}

</mosaic_0001>

<llo_original>
// kernel: tpu_custom_call.1
$region0: #{tpu_custom_call.1}
  #allocation0 [shape = 'u32[]', space=smem, size = 0x4, offset = 0x4, fixed_abs, tag = 'smem constant byte address 0x4 - core index']
  #allocation1 [shape = 'u32[144,128]{1,0:T(1,128)}', space=vmem, size = 0x12000, scoped, tag = 'internal scratch']
  %s0 = inlined_call_operand.vmem [shape: f32[2,8,32], index: 0, kind: input, shape index: {}]
  %s1 = inlined_call_operand.hbm [shape: f32[1,32], index: 1, kind: input, shape index: {}]
  %s2 = inlined_call_operand.hbm [shape: f32[1,32], index: 2, kind: input, shape index: {}]
  %s3 = inlined_call_operand.hbm [shape: f32[1,32], index: 3, kind: input, shape index: {}]
  %s4 = inlined_call_operand.hbm [shape: f32[1,32], index: 4, kind: input, shape index: {}]
  %s5 = inlined_call_operand.hbm [shape: f32[1,32], index: 5, kind: input, shape index: {}]
  %s6 = inlined_call_operand.hbm [shape: f32[1,32], index: 6, kind: input, shape index: {}]
  %s7 = inlined_call_operand.vmem [shape: bf16[32,32], index: 7, kind: input, shape index: {}]
  %s8 = inlined_call_operand.vmem [shape: bf16[32,32], index: 8, kind: input, shape index: {}]
  %s9 = inlined_call_operand.vmem [shape: bf16[32,32], index: 9, kind: input, shape index: {}]
  %s10 = inlined_call_operand.vmem [shape: bf16[32,32], index: 10, kind: input, shape index: {}]
  %s11 = inlined_call_operand.hbm [shape: f32[4,8], index: 11, kind: input, shape index: {}]
  %s12 = inlined_call_operand.hbm [shape: f32[4,8], index: 12, kind: input, shape index: {}]
  %s13 = inlined_call_operand.hbm [shape: f32[1,32], index: 13, kind: input, shape index: {}]
  %s14 = inlined_call_operand.hbm [shape: f32[1,32], index: 14, kind: input, shape index: {}]
  %s15 = inlined_call_operand.vmem [shape: bf16[32,32], index: 15, kind: input, shape index: {}]
  %s16 = inlined_call_operand.hbm [shape: f32[1,32], index: 16, kind: input, shape index: {}]
  %s17 = inlined_call_operand.hbm [shape: f32[1,32], index: 17, kind: input, shape index: {}]
  %s18 = inlined_call_operand.vmem [shape: f32[1,32], index: 18, kind: input, shape index: {}]
  %s19 = inlined_call_operand.vmem [shape: f32[1,32], index: 19, kind: input, shape index: {}]
  %s20 = inlined_call_operand.vmem [shape: bf16[32,96], index: 20, kind: input, shape index: {}]
  %s21 = inlined_call_operand.hbm [shape: bf16[32,32], index: 21, kind: input, shape index: {}]
  %s22 = inlined_call_operand.vmem [shape: bf16[96,32], index: 22, kind: input, shape index: {}]
  %s23 = inlined_call_operand.hbm [shape: f32[2,8,32], index: 23, kind: output, shape index: {}]
  %s24 = sld [smem:[#allocation0]]
  $region177: #{tpu_custom_call.1} parent=0
    _
  %s26 = ssub.s32 1, %s24
  %s27 = scalar_select 0, %s26, %s24
  $region1: #{tpu_custom_call.1} parent=0
    #allocation2 [shape = 'u8[512]{0}', space=vmem, size = 0x400, scoped, tag = 'input window, operand 1, single buffered']
    #allocation3 [shape = 's32[2]{0}', space=sflag, size = 0x8, scoped, tag = 'scoped memory for tpu_custom_call.1']
    #allocation4 [shape = 's32[2]{0}', space=sflag, size = 0x8, scoped, tag = 'scoped memory for tpu_custom_call.1']
    #allocation5 [shape = 'u8[512]{0}', space=vmem, size = 0x400, scoped, tag = 'input window, operand 2, single buffered']
    #allocation6 [shape = 's32[1]{0}', space=sflag, size = 0x4, scoped, tag = 'scoped memory for tpu_custom_call.1']
    #allocation7 [shape = 'u8[512]{0}', space=vmem, size = 0x400, scoped, tag = 'input window, operand 3, single buffered']
    #allocation8 [shape = 'u8[512]{0}', space=vmem, size = 0x400, scoped, tag = 'input window, operand 4, single buffered']
    #allocation9 [shape = 's32[1]{0}', space=sflag, size = 0x4, scoped, tag = 'scoped memory for tpu_custom_call.1']
    #allocation10 [shape = 'u8[512]{0}', space=vmem, size = 0x400, scoped, tag = 'input window, operand 5, single buffered']
    #allocation11 [shape = 'u8[512]{0}', space=vmem, size = 0x400, scoped, tag = 'input window, operand 6, single buffered']
    #allocation12 [shape = 's32[1]{0}', space=sflag, size = 0x4, scoped, tag = 'scoped memory for tpu_custom_call.1']
    #allocation13 [shape = 'u8[2048]{0}', space=vmem, size = 0x800, scoped, tag = 'input window, operand 11, single buffered']
    #allocation14 [shape = 'u8[2048]{0}', space=vmem, size = 0x800, scoped, tag = 'input window, operand 12, single buffered']
    #allocation15 [shape = 's32[1]{0}', space=sflag, size = 0x4, scoped, tag = 'scoped memory for tpu_custom_call.1']
    #allocation16 [shape = 'u8[512]{0}', space=vmem, size = 0x400, scoped, tag = 'input window, operand 13, single buffered']
    #allocation17 [shape = 'u8[512]{0}', space=vmem, size = 0x400, scoped, tag = 'input window, operand 14, single buffered']
    #allocation18 [shape = 's32[1]{0}', space=sflag, size = 0x4, scoped, tag = 'scoped memory for tpu_custom_call.1']
    #allocation19 [shape = 'u8[512]{0}', space=vmem, size = 0x400, scoped, tag = 'input window, operand 16, single buffered']
    #allocation20 [shape = 'u8[512]{0}', space=vmem, size = 0x400, scoped, tag = 'input window, operand 17, single buffered']
    #allocation21 [shape = 's32[1]{0}', space=sflag, size = 0x4, scoped, tag = 'scoped memory for tpu_custom_call.1']
    #allocation22 [shape = 'u8[8192]{0}', space=vmem, size = 0x2000, scoped, tag = 'input window, operand 21, single buffered']
    #allocation23 [shape = 'u8[8192]{0}', space=vmem, size = 0x2000, scoped, tag = 'output window, operand 0']
    %28 = vsyncpa [#allocation3], 0
    %29 = vsyncpa [#allocation6], 0
    %30 = vsyncpa [#allocation9], 0
    %31 = vsyncpa [#allocation12], 0
    %32 = vsyncpa [#allocation15], 0
    %33 = vsyncpa [#allocation18], 0
    %34 = vsyncpa [#allocation21], 0
    %35 = vsyncpa [#allocation4], 0
    %s36 = scalar_lea.sflag [#allocation4], 1
    %37 = vsyncpa %s36, 0
    loop: start=0, step=1, limit=4
    $region2: #{tpu_custom_call.1} parent=1 // loop_pre_header
      _
    $region3: #{tpu_custom_call.1} parent=1 // loop_header
      %s39 = sphi 0, %s43
      %p40 = scmp.ge.s32.totalorder %s39, 4
      %s49 = sphi 0, %s51
      %s52 = sphi 0, %s49
      %s53 = sphi 0, %s52
      %s69 = sphi 0, %s53
      %s73 = sphi 0, %s73
      %s75 = sphi 0, %s73
      %s76 = sphi 0, %s75
      %s90 = sphi 0, %s76
      %s94 = sphi 0, %s94
      %s96 = sphi 0, %s94
      %s97 = sphi 0, %s96
      %s111 = sphi 0, %s97
      %s115 = sphi 0, %s115
      %s117 = sphi 0, %s115
      %s118 = sphi 0, %s117
      %s132 = sphi 0, %s118
      %s136 = sphi 0, %s136
      %s138 = sphi 0, %s136
      %s139 = sphi 0, %s138
      %s153 = sphi 0, %s139
      %s157 = sphi 0, %s157
      %s159 = sphi 0, %s157
      %s160 = sphi 0, %s159
      %s174 = sphi 0, %s160
      %s178 = sphi 0, %s178
      %s180 = sphi 0, %s178
      %s181 = sphi 0, %s180
      %s195 = sphi 0, %s181
      %s199 = sphi 0, %s199
      %s201 = sphi 0, %s199
      %s202 = sphi 0, %s201
      %s216 = sphi 0, %s202
      %s220 = sphi 0, %s220
      %s222 = sphi 0, %s220
      %s223 = sphi 0, %s222
      %s237 = sphi 0, %s223
      %s241 = sphi 0, %s241
      %s243 = sphi 0, %s241
      %s244 = sphi 0, %s243
      %s258 = sphi 0, %s244
      %s262 = sphi 0, %s262
      %s264 = sphi 0, %s262
      %s265 = sphi 0, %s264
      %s279 = sphi 0, %s265
      %s283 = sphi 0, %s283
      %s285 = sphi 0, %s283
      %s286 = sphi 0, %s285
      %s300 = sphi 0, %s286
      %s304 = sphi 0, %s304
      %s306 = sphi 0, %s304
      %s307 = sphi 0, %s306
      %s321 = sphi 0, %s307
      %s325 = sphi 0, %s325
      %s327 = sphi 0, %s325
      %s328 = sphi 0, %s327
      %s342 = sphi 0, %s328
      %s346 = sphi 0, %s346
      %s348 = sphi 0, %s346
      %s349 = sphi 0, %s348
      %s363 = sphi 0, %s349
      %s367 = sphi 0, %s367
      %s369 = sphi 0, %s367
      %s370 = sphi 0, %s369
      %s384 = sphi 0, %s370
      %s388 = sphi 0, %s388
      %s390 = sphi 0, %s388
      %s391 = sphi 0, %s390
      %s405 = sphi 0, %s391
      %s409 = sphi 0, %s409
      %s411 = sphi 0, %s409
      %s412 = sphi 0, %s411
      %s426 = sphi 0, %s412
      %s430 = sphi 0, %s430
      %s432 = sphi 0, %s430
      %s433 = sphi 0, %s432
      %s447 = sphi 0, %s433
      %s451 = sphi 0, %s451
      %s453 = sphi 0, %s451
      %s454 = sphi 0, %s453
      %s468 = sphi 0, %s454
      %s472 = sphi 0, %s472
      %s474 = sphi 0, %s472
      %s475 = sphi 0, %s474
      %s489 = sphi 0, %s475
      %s493 = sphi 0, %s493
      %s495 = sphi 0, %s493
      %s496 = sphi 0, %s495
      %s510 = sphi 0, %s496
      %s514 = sphi 0, %s514
      %s516 = sphi 0, %s514
      %s517 = sphi 0, %s516
      %s531 = sphi 0, %s517
      %s537 = sphi 0, %s539
      %s540 = sphi 0, %s537
      %s541 = sphi 0, %s540
      %s557 = sphi 0, %s541
    $region4: #{tpu_custom_call.1} parent=1 // loop_header_branch
      %42 = sbr.rel (%p40) target = $region8
    $region5: #{tpu_custom_call.1} parent=1 // loop_body
      %s44 = ssub.s32 %s39, 1
      %s45 = ssub.s32 %s39, 2
      %s46 = sadd.s32 %s39, 1
      %s47 = ssub.s32 %s39, %s46
      %p48 = scmp.eq.s32.totalorder %s47, 0
      %s50 = sadd.s32 %s49, 1
      %s51 = scalar_select %p48, %s49, %s50
      %p54 = pneg %p48
      %p55 = scmp.eq.s32.totalorder %s39, 1
      %p56 = por %p54, %p55
      %p57 = scmp.ne.s32.totalorder %s49, %s52
      %p58 = scmp.eq.s32.totalorder %s39, 0
      %p59 = por %p57, %p58
      %p60 = scmp.ne.s32.totalorder %s49, %s52
      %p61 = scmp.eq.s32.totalorder %s44, 1
      %p62 = por %p60, %p61
      %p63 = scmp.ne.s32.totalorder %s52, %s53
      %p64 = scmp.eq.s32.totalorder %s44, 0
      %p65 = por %p63, %p64
      %p66 = scmp.ne.s32.totalorder %s52, %s53
      %p67 = scmp.eq.s32.totalorder %s45, 1
      %p68 = por %p66, %p67
      %p70 = scmp.ne.s32.totalorder %s53, %s69
      %p71 = scmp.eq.s32.totalorder %s45, 0
      %p72 = por %p70, %p71
      %s74 = sadd.s32 %s73, 1
      %p77 = scmp.eq.s32.totalorder %s39, 1
      %p78 = scmp.ne.s32.totalorder %s73, %s75
      %p79 = scmp.eq.s32.totalorder %s39, 0
      %p80 = por %p78, %p79
      %p81 = scmp.ne.s32.totalorder %s73, %s75
      %p82 = scmp.eq.s32.totalorder %s44, 1
      %p83 = por %p81, %p82
      %p84 = scmp.ne.s32.totalorder %s75, %s76
      %p85 = scmp.eq.s32.totalorder %s44, 0
      %p86 = por %p84, %p85
      %p87 = scmp.ne.s32.totalorder %s75, %s76
      %p88 = scmp.eq.s32.totalorder %s45, 1
      %p89 = por %p87, %p88
      %p91 = scmp.ne.s32.totalorder %s76, %s90
      %p92 = scmp.eq.s32.totalorder %s45, 0
      %p93 = por %p91, %p92
      %s95 = sadd.s32 %s94, 1
      %p98 = scmp.eq.s32.totalorder %s39, 1
      %p99 = scmp.ne.s32.totalorder %s94, %s96
      %p100 = scmp.eq.s32.totalorder %s39, 0
      %p101 = por %p99, %p100
      %p102 = scmp.ne.s32.totalorder %s94, %s96
      %p103 = scmp.eq.s32.totalorder %s44, 1
      %p104 = por %p102, %p103
      %p105 = scmp.ne.s32.totalorder %s96, %s97
      %p106 = scmp.eq.s32.totalorder %s44, 0
      %p107 = por %p105, %p106
      %p108 = scmp.ne.s32.totalorder %s96, %s97
      %p109 = scmp.eq.s32.totalorder %s45, 1
      %p110 = por %p108, %p109
      %p112 = scmp.ne.s32.totalorder %s97, %s111
      %p113 = scmp.eq.s32.totalorder %s45, 0
      %p114 = por %p112, %p113
      %s116 = sadd.s32 %s115, 1
      %p119 = scmp.eq.s32.totalorder %s39, 1
      %p120 = scmp.ne.s32.totalorder %s115, %s117
      %p121 = scmp.eq.s32.totalorder %s39, 0
      %p122 = por %p120, %p121
      %p123 = scmp.ne.s32.totalorder %s115, %s117
      %p124 = scmp.eq.s32.totalorder %s44, 1
      %p125 = por %p123, %p124
      %p126 = scmp.ne.s32.totalorder %s117, %s118
      %p127 = scmp.eq.s32.totalorder %s44, 0
      %p128 = por %p126, %p127
      %p129 = scmp.ne.s32.totalorder %s117, %s118
      %p130 = scmp.eq.s32.totalorder %s45, 1
      %p131 = por %p129, %p130
      %p133 = scmp.ne.s32.totalorder %s118, %s132
      %p134 = scmp.eq.s32.totalorder %s45, 0
      %p135 = por %p133, %p134
      %s137 = sadd.s32 %s136, 1
      %p140 = scmp.eq.s32.totalorder %s39, 1
      %p141 = scmp.ne.s32.totalorder %s136, %s138
      %p142 = scmp.eq.s32.totalorder %s39, 0
      %p143 = por %p141, %p142
      %p144 = scmp.ne.s32.totalorder %s136, %s138
      %p145 = scmp.eq.s32.totalorder %s44, 1
      %p146 = por %p144, %p145
      %p147 = scmp.ne.s32.totalorder %s138, %s139
      %p148 = scmp.eq.s32.totalorder %s44, 0
      %p149 = por %p147, %p148
      %p150 = scmp.ne.s32.totalorder %s138, %s139
      %p151 = scmp.eq.s32.totalorder %s45, 1
      %p152 = por %p150, %p151
      %p154 = scmp.ne.s32.totalorder %s139, %s153
      %p155 = scmp.eq.s32.totalorder %s45, 0
      %p156 = por %p154, %p155
      %s158 = sadd.s32 %s157, 1
      %p161 = scmp.eq.s32.totalorder %s39, 1
      %p162 = scmp.ne.s32.totalorder %s157, %s159
      %p163 = scmp.eq.s32.totalorder %s39, 0
      %p164 = por %p162, %p163
      %p165 = scmp.ne.s32.totalorder %s157, %s159
      %p166 = scmp.eq.s32.totalorder %s44, 1
      %p167 = por %p165, %p166
      %p168 = scmp.ne.s32.totalorder %s159, %s160
      %p169 = scmp.eq.s32.totalorder %s44, 0
      %p170 = por %p168, %p169
      %p171 = scmp.ne.s32.totalorder %s159, %s160
      %p172 = scmp.eq.s32.totalorder %s45, 1
      %p173 = por %p171, %p172
      %p175 = scmp.ne.s32.totalorder %s160, %s174
      %p176 = scmp.eq.s32.totalorder %s45, 0
      %p177 = por %p175, %p176
      %s179 = sadd.s32 %s178, 1
      %p182 = scmp.eq.s32.totalorder %s39, 1
      %p183 = scmp.ne.s32.totalorder %s178, %s180
      %p184 = scmp.eq.s32.totalorder %s39, 0
      %p185 = por %p183, %p184
      %p186 = scmp.ne.s32.totalorder %s178, %s180
      %p187 = scmp.eq.s32.totalorder %s44, 1
      %p188 = por %p186, %p187
      %p189 = scmp.ne.s32.totalorder %s180, %s181
      %p190 = scmp.eq.s32.totalorder %s44, 0
      %p191 = por %p189, %p190
      %p192 = scmp.ne.s32.totalorder %s180, %s181
      %p193 = scmp.eq.s32.totalorder %s45, 1
      %p194 = por %p192, %p193
      %p196 = scmp.ne.s32.totalorder %s181, %s195
      %p197 = scmp.eq.s32.totalorder %s45, 0
      %p198 = por %p196, %p197
      %s200 = sadd.s32 %s199, 1
      %p203 = scmp.eq.s32.totalorder %s39, 1
      %p204 = scmp.ne.s32.totalorder %s199, %s201
      %p205 = scmp.eq.s32.totalorder %s39, 0
      %p206 = por %p204, %p205
      %p207 = scmp.ne.s32.totalorder %s199, %s201
      %p208 = scmp.eq.s32.totalorder %s44, 1
      %p209 = por %p207, %p208
      %p210 = scmp.ne.s32.totalorder %s201, %s202
      %p211 = scmp.eq.s32.totalorder %s44, 0
      %p212 = por %p210, %p211
      %p213 = scmp.ne.s32.totalorder %s201, %s202
      %p214 = scmp.eq.s32.totalorder %s45, 1
      %p215 = por %p213, %p214
      %p217 = scmp.ne.s32.totalorder %s202, %s216
      %p218 = scmp.eq.s32.totalorder %s45, 0
      %p219 = por %p217, %p218
      %s221 = sadd.s32 %s220, 1
      %p224 = scmp.eq.s32.totalorder %s39, 1
      %p225 = scmp.ne.s32.totalorder %s220, %s222
      %p226 = scmp.eq.s32.totalorder %s39, 0
      %p227 = por %p225, %p226
      %p228 = scmp.ne.s32.totalorder %s220, %s222
      %p229 = scmp.eq.s32.totalorder %s44, 1
      %p230 = por %p228, %p229
      %p231 = scmp.ne.s32.totalorder %s222, %s223
      %p232 = scmp.eq.s32.totalorder %s44, 0
      %p233 = por %p231, %p232
      %p234 = scmp.ne.s32.totalorder %s222, %s223
      %p235 = scmp.eq.s32.totalorder %s45, 1
      %p236 = por %p234, %p235
      %p238 = scmp.ne.s32.totalorder %s223, %s237
      %p239 = scmp.eq.s32.totalorder %s45, 0
      %p240 = por %p238, %p239
      %s242 = sadd.s32 %s241, 1
      %p245 = scmp.eq.s32.totalorder %s39, 1
      %p246 = scmp.ne.s32.totalorder %s241, %s243
      %p247 = scmp.eq.s32.totalorder %s39, 0
      %p248 = por %p246, %p247
      %p249 = scmp.ne.s32.totalorder %s241, %s243
      %p250 = scmp.eq.s32.totalorder %s44, 1
      %p251 = por %p249, %p250
      %p252 = scmp.ne.s32.totalorder %s243, %s244
      %p253 = scmp.eq.s32.totalorder %s44, 0
      %p254 = por %p252, %p253
      %p255 = scmp.ne.s32.totalorder %s243, %s244
      %p256 = scmp.eq.s32.totalorder %s45, 1
      %p257 = por %p255, %p256
      %p259 = scmp.ne.s32.totalorder %s244, %s258
      %p260 = scmp.eq.s32.totalorder %s45, 0
      %p261 = por %p259, %p260
      %s263 = sadd.s32 %s262, 1
      %p266 = scmp.eq.s32.totalorder %s39, 1
      %p267 = scmp.ne.s32.totalorder %s262, %s264
      %p268 = scmp.eq.s32.totalorder %s39, 0
      %p269 = por %p267, %p268
      %p270 = scmp.ne.s32.totalorder %s262, %s264
      %p271 = scmp.eq.s32.totalorder %s44, 1
      %p272 = por %p270, %p271
      %p273 = scmp.ne.s32.totalorder %s264, %s265
      %p274 = scmp.eq.s32.totalorder %s44, 0
      %p275 = por %p273, %p274
      %p276 = scmp.ne.s32.totalorder %s264, %s265
      %p277 = scmp.eq.s32.totalorder %s45, 1
      %p278 = por %p276, %p277
      %p280 = scmp.ne.s32.totalorder %s265, %s279
      %p281 = scmp.eq.s32.totalorder %s45, 0
      %p282 = por %p280, %p281
      %s284 = sadd.s32 %s283, 1
      %p287 = scmp.eq.s32.totalorder %s39, 1
      %p288 = scmp.ne.s32.totalorder %s283, %s285
      %p289 = scmp.eq.s32.totalorder %s39, 0
      %p290 = por %p288, %p289
      %p291 = scmp.ne.s32.totalorder %s283, %s285
      %p292 = scmp.eq.s32.totalorder %s44, 1
      %p293 = por %p291, %p292
      %p294 = scmp.ne.s32.totalorder %s285, %s286
      %p295 = scmp.eq.s32.totalorder %s44, 0
      %p296 = por %p294, %p295
      %p297 = scmp.ne.s32.totalorder %s285, %s286
      %p298 = scmp.eq.s32.totalorder %s45, 1
      %p299 = por %p297, %p298
      %p301 = scmp.ne.s32.totalorder %s286, %s300
      %p302 = scmp.eq.s32.totalorder %s45, 0
      %p303 = por %p301, %p302
      %s305 = sadd.s32 %s304, 1
      %p308 = scmp.eq.s32.totalorder %s39, 1
      %p309 = scmp.ne.s32.totalorder %s304, %s306
      %p310 = scmp.eq.s32.totalorder %s39, 0
      %p311 = por %p309, %p310
      %p312 = scmp.ne.s32.totalorder %s304, %s306
      %p313 = scmp.eq.s32.totalorder %s44, 1
      %p314 = por %p312, %p313
      %p315 = scmp.ne.s32.totalorder %s306, %s307
      %p316 = scmp.eq.s32.totalorder %s44, 0
      %p317 = por %p315, %p316
      %p318 = scmp.ne.s32.totalorder %s306, %s307
      %p319 = scmp.eq.s32.totalorder %s45, 1
      %p320 = por %p318, %p319
      %p322 = scmp.ne.s32.totalorder %s307, %s321
      %p323 = scmp.eq.s32.totalorder %s45, 0
      %p324 = por %p322, %p323
      %s326 = sadd.s32 %s325, 1
      %p329 = scmp.eq.s32.totalorder %s39, 1
      %p330 = scmp.ne.s32.totalorder %s325, %s327
      %p331 = scmp.eq.s32.totalorder %s39, 0
      %p332 = por %p330, %p331
      %p333 = scmp.ne.s32.totalorder %s325, %s327
      %p334 = scmp.eq.s32.totalorder %s44, 1
      %p335 = por %p333, %p334
      %p336 = scmp.ne.s32.totalorder %s327, %s328
      %p337 = scmp.eq.s32.totalorder %s44, 0
      %p338 = por %p336, %p337
      %p339 = scmp.ne.s32.totalorder %s327, %s328
      %p340 = scmp.eq.s32.totalorder %s45, 1
      %p341 = por %p339, %p340
      %p343 = scmp.ne.s32.totalorder %s328, %s342
      %p344 = scmp.eq.s32.totalorder %s45, 0
      %p345 = por %p343, %p344
      %s347 = sadd.s32 %s346, 1
      %p350 = scmp.eq.s32.totalorder %s39, 1
      %p351 = scmp.ne.s32.totalorder %s346, %s348
      %p352 = scmp.eq.s32.totalorder %s39, 0
      %p353 = por %p351, %p352
      %p354 = scmp.ne.s32.totalorder %s346, %s348
      %p355 = scmp.eq.s32.totalorder %s44, 1
      %p356 = por %p354, %p355
      %p357 = scmp.ne.s32.totalorder %s348, %s349
      %p358 = scmp.eq.s32.totalorder %s44, 0
      %p359 = por %p357, %p358
      %p360 = scmp.ne.s32.totalorder %s348, %s349
      %p361 = scmp.eq.s32.totalorder %s45, 1
      %p362 = por %p360, %p361
      %p364 = scmp.ne.s32.totalorder %s349, %s363
      %p365 = scmp.eq.s32.totalorder %s45, 0
      %p366 = por %p364, %p365
      %s368 = sadd.s32 %s367, 1
      %p371 = scmp.eq.s32.totalorder %s39, 1
      %p372 = scmp.ne.s32.totalorder %s367, %s369
      %p373 = scmp.eq.s32.totalorder %s39, 0
      %p374 = por %p372, %p373
      %p375 = scmp.ne.s32.totalorder %s367, %s369
      %p376 = scmp.eq.s32.totalorder %s44, 1
      %p377 = por %p375, %p376
      %p378 = scmp.ne.s32.totalorder %s369, %s370
      %p379 = scmp.eq.s32.totalorder %s44, 0
      %p380 = por %p378, %p379
      %p381 = scmp.ne.s32.totalorder %s369, %s370
      %p382 = scmp.eq.s32.totalorder %s45, 1
      %p383 = por %p381, %p382
      %p385 = scmp.ne.s32.totalorder %s370, %s384
      %p386 = scmp.eq.s32.totalorder %s45, 0
      %p387 = por %p385, %p386
      %s389 = sadd.s32 %s388, 1
      %p392 = scmp.eq.s32.totalorder %s39, 1
      %p393 = scmp.ne.s32.totalorder %s388, %s390
      %p394 = scmp.eq.s32.totalorder %s39, 0
      %p395 = por %p393, %p394
      %p396 = scmp.ne.s32.totalorder %s388, %s390
      %p397 = scmp.eq.s32.totalorder %s44, 1
      %p398 = por %p396, %p397
      %p399 = scmp.ne.s32.totalorder %s390, %s391
      %p400 = scmp.eq.s32.totalorder %s44, 0
      %p401 = por %p399, %p400
      %p402 = scmp.ne.s32.totalorder %s390, %s391
      %p403 = scmp.eq.s32.totalorder %s45, 1
      %p404 = por %p402, %p403
      %p406 = scmp.ne.s32.totalorder %s391, %s405
      %p407 = scmp.eq.s32.totalorder %s45, 0
      %p408 = por %p406, %p407
      %s410 = sadd.s32 %s409, 1
      %p413 = scmp.eq.s32.totalorder %s39, 1
      %p414 = scmp.ne.s32.totalorder %s409, %s411
      %p415 = scmp.eq.s32.totalorder %s39, 0
      %p416 = por %p414, %p415
      %p417 = scmp.ne.s32.totalorder %s409, %s411
      %p418 = scmp.eq.s32.totalorder %s44, 1
      %p419 = por %p417, %p418
      %p420 = scmp.ne.s32.totalorder %s411, %s412
      %p421 = scmp.eq.s32.totalorder %s44, 0
      %p422 = por %p420, %p421
      %p423 = scmp.ne.s32.totalorder %s411, %s412
      %p424 = scmp.eq.s32.totalorder %s45, 1
      %p425 = por %p423, %p424
      %p427 = scmp.ne.s32.totalorder %s412, %s426
      %p428 = scmp.eq.s32.totalorder %s45, 0
      %p429 = por %p427, %p428
      %s431 = sadd.s32 %s430, 1
      %p434 = scmp.eq.s32.totalorder %s39, 1
      %p435 = scmp.ne.s32.totalorder %s430, %s432
      %p436 = scmp.eq.s32.totalorder %s39, 0
      %p437 = por %p435, %p436
      %p438 = scmp.ne.s32.totalorder %s430, %s432
      %p439 = scmp.eq.s32.totalorder %s44, 1
      %p440 = por %p438, %p439
      %p441 = scmp.ne.s32.totalorder %s432, %s433
      %p442 = scmp.eq.s32.totalorder %s44, 0
      %p443 = por %p441, %p442
      %p444 = scmp.ne.s32.totalorder %s432, %s433
      %p445 = scmp.eq.s32.totalorder %s45, 1
      %p446 = por %p444, %p445
      %p448 = scmp.ne.s32.totalorder %s433, %s447
      %p449 = scmp.eq.s32.totalorder %s45, 0
      %p450 = por %p448, %p449
      %s452 = sadd.s32 %s451, 1
      %p455 = scmp.eq.s32.totalorder %s39, 1
      %p456 = scmp.ne.s32.totalorder %s451, %s453
      %p457 = scmp.eq.s32.totalorder %s39, 0
      %p458 = por %p456, %p457
      %p459 = scmp.ne.s32.totalorder %s451, %s453
      %p460 = scmp.eq.s32.totalorder %s44, 1
      %p461 = por %p459, %p460
      %p462 = scmp.ne.s32.totalorder %s453, %s454
      %p463 = scmp.eq.s32.totalorder %s44, 0
      %p464 = por %p462, %p463
      %p465 = scmp.ne.s32.totalorder %s453, %s454
      %p466 = scmp.eq.s32.totalorder %s45, 1
      %p467 = por %p465, %p466
      %p469 = scmp.ne.s32.totalorder %s454, %s468
      %p470 = scmp.eq.s32.totalorder %s45, 0
      %p471 = por %p469, %p470
      %s473 = sadd.s32 %s472, 1
      %p476 = scmp.eq.s32.totalorder %s39, 1
      %p477 = scmp.ne.s32.totalorder %s472, %s474
      %p478 = scmp.eq.s32.totalorder %s39, 0
      %p479 = por %p477, %p478
      %p480 = scmp.ne.s32.totalorder %s472, %s474
      %p481 = scmp.eq.s32.totalorder %s44, 1
      %p482 = por %p480, %p481
      %p483 = scmp.ne.s32.totalorder %s474, %s475
      %p484 = scmp.eq.s32.totalorder %s44, 0
      %p485 = por %p483, %p484
      %p486 = scmp.ne.s32.totalorder %s474, %s475
      %p487 = scmp.eq.s32.totalorder %s45, 1
      %p488 = por %p486, %p487
      %p490 = scmp.ne.s32.totalorder %s475, %s489
      %p491 = scmp.eq.s32.totalorder %s45, 0
      %p492 = por %p490, %p491
      %s494 = sadd.s32 %s493, 1
      %p497 = scmp.eq.s32.totalorder %s39, 1
      %p498 = scmp.ne.s32.totalorder %s493, %s495
      %p499 = scmp.eq.s32.totalorder %s39, 0
      %p500 = por %p498, %p499
      %p501 = scmp.ne.s32.totalorder %s493, %s495
      %p502 = scmp.eq.s32.totalorder %s44, 1
      %p503 = por %p501, %p502
      %p504 = scmp.ne.s32.totalorder %s495, %s496
      %p505 = scmp.eq.s32.totalorder %s44, 0
      %p506 = por %p504, %p505
      %p507 = scmp.ne.s32.totalorder %s495, %s496
      %p508 = scmp.eq.s32.totalorder %s45, 1
      %p509 = por %p507, %p508
      %p511 = scmp.ne.s32.totalorder %s496, %s510
      %p512 = scmp.eq.s32.totalorder %s45, 0
      %p513 = por %p511, %p512
      %s515 = sadd.s32 %s514, 1
      %p518 = scmp.eq.s32.totalorder %s39, 1
      %p519 = scmp.ne.s32.totalorder %s514, %s516
      %p520 = scmp.eq.s32.totalorder %s39, 0
      %p521 = por %p519, %p520
      %p522 = scmp.ne.s32.totalorder %s514, %s516
      %p523 = scmp.eq.s32.totalorder %s44, 1
      %p524 = por %p522, %p523
      %p525 = scmp.ne.s32.totalorder %s516, %s517
      %p526 = scmp.eq.s32.totalorder %s44, 0
      %p527 = por %p525, %p526
      %p528 = scmp.ne.s32.totalorder %s516, %s517
      %p529 = scmp.eq.s32.totalorder %s45, 1
      %p530 = por %p528, %p529
      %p532 = scmp.ne.s32.totalorder %s517, %s531
      %p533 = scmp.eq.s32.totalorder %s45, 0
      %p534 = por %p532, %p533
      %s535 = ssub.s32 %s39, %s46
      %p536 = scmp.eq.s32.totalorder %s535, 0
      %s538 = sadd.s32 %s537, 1
      %s539 = scalar_select %p536, %s537, %s538
      %p542 = pneg %p536
      %p543 = scmp.eq.s32.totalorder %s39, 1
      %p544 = por %p542, %p543
      %p545 = scmp.ne.s32.totalorder %s537, %s540
      %p546 = scmp.eq.s32.totalorder %s39, 0
      %p547 = por %p545, %p546
      %p548 = scmp.ne.s32.totalorder %s537, %s540
      %p549 = scmp.eq.s32.totalorder %s44, 1
      %p550 = por %p548, %p549
      %p551 = scmp.ne.s32.totalorder %s540, %s541
      %p552 = scmp.eq.s32.totalorder %s44, 0
      %p553 = por %p551, %p552
      %p554 = scmp.ne.s32.totalorder %s540, %s541
      %p555 = scmp.eq.s32.totalorder %s45, 1
      %p556 = por %p554, %p555
      %p558 = scmp.ne.s32.totalorder %s541, %s557
      %p559 = scmp.eq.s32.totalorder %s45, 0
      %p560 = por %p558, %p559
      %p561 = scmp.le.s32.totalorder 1, %s39
      %p562 = scmp.lt.s32.totalorder %s39, 3
      %p563 = pnand %p561, %p562
      %p564 = pneg %p563
      // Predicated region
      $region9: #{tpu_custom_call.1} parent=5 // pred_check
        _
      $region10: #{tpu_custom_call.1} parent=5 // pred_check_branch
        %566 = sbr.rel (%p563) target = $region12
      $region11: #{tpu_custom_call.1} parent=5 // pred_region
        %s567 = ssub.s32 %s39, 1
        // Predicated region
        $region13: #{tpu_custom_call.1} parent=11 // pred_check
          %p568 = pneg %p86
        $region14: #{tpu_custom_call.1} parent=11 // pred_check_branch
          %570 = sbr.rel (%p568) target = $region16
        $region15: #{tpu_custom_call.1} parent=11 // pred_region
          %s572 = ssub.s32 16, 16
          %573 = vsyncadd [#allocation3], %s572
          %s575 = sshll.u32 [#allocation2], 4
          %s576 = int_to_ptr.vmem [resolvable:$true] %s575
          %578 = dma.hbm_to_vmem [thread:$0]  %s1, 16, %s576, [#allocation3]
        $region16: #{tpu_custom_call.1} parent=11 // pred_fallthru
          _
        // Predicated region
        $region17: #{tpu_custom_call.1} parent=11 // pred_check
          %p579 = pneg %p107
        $region18: #{tpu_custom_call.1} parent=11 // pred_check_branch
          %581 = sbr.rel (%p579) target = $region20
        $region19: #{tpu_custom_call.1} parent=11 // pred_region
          %s583 = ssub.s32 16, 16
          %584 = vsyncadd [#allocation6], %s583
          %s586 = sshll.u32 [#allocation5], 4
          %s587 = int_to_ptr.vmem [resolvable:$true] %s586
          %589 = dma.hbm_to_vmem [thread:$0]  %s2, 16, %s587, [#allocation6]
        $region20: #{tpu_custom_call.1} parent=11 // pred_fallthru
          _
        // Predicated region
        $region21: #{tpu_custom_call.1} parent=11 // pred_check
          %p590 = pneg %p128
        $region22: #{tpu_custom_call.1} parent=11 // pred_check_branch
          %592 = sbr.rel (%p590) target = $region24
        $region23: #{tpu_custom_call.1} parent=11 // pred_region
          %s594 = ssub.s32 16, 16
          %595 = vsyncadd [#allocation6], %s594
          %s597 = sshll.u32 [#allocation7], 4
          %s598 = int_to_ptr.vmem [resolvable:$true] %s597
          %600 = dma.hbm_to_vmem [thread:$0]  %s3, 16, %s598, [#allocation6]
        $region24: #{tpu_custom_call.1} parent=11 // pred_fallthru
          _
        // Predicated region
        $region25: #{tpu_custom_call.1} parent=11 // pred_check
          %p601 = pneg %p149
        $region26: #{tpu_custom_call.1} parent=11 // pred_check_branch
          %603 = sbr.rel (%p601) target = $region28
        $region27: #{tpu_custom_call.1} parent=11 // pred_region
          %s605 = ssub.s32 16, 16
          %606 = vsyncadd [#allocation9], %s605
          %s608 = sshll.u32 [#allocation8], 4
          %s609 = int_to_ptr.vmem [resolvable:$true] %s608
          %611 = dma.hbm_to_vmem [thread:$0]  %s4, 16, %s609, [#allocation9]
        $region28: #{tpu_custom_call.1} parent=11 // pred_fallthru
          _
        // Predicated region
        $region29: #{tpu_custom_call.1} parent=11 // pred_check
          %p612 = pneg %p170
        $region30: #{tpu_custom_call.1} parent=11 // pred_check_branch
          %614 = sbr.rel (%p612) target = $region32
        $region31: #{tpu_custom_call.1} parent=11 // pred_region
          %s616 = ssub.s32 16, 16
          %617 = vsyncadd [#allocation9], %s616
          %s619 = sshll.u32 [#allocation10], 4
          %s620 = int_to_ptr.vmem [resolvable:$true] %s619
          %622 = dma.hbm_to_vmem [thread:$0]  %s5, 16, %s620, [#allocation9]
        $region32: #{tpu_custom_call.1} parent=11 // pred_fallthru
          _
        // Predicated region
        $region33: #{tpu_custom_call.1} parent=11 // pred_check
          %p623 = pneg %p191
        $region34: #{tpu_custom_call.1} parent=11 // pred_check_branch
          %625 = sbr.rel (%p623) target = $region36
        $region35: #{tpu_custom_call.1} parent=11 // pred_region
          %s627 = ssub.s32 16, 16
          %628 = vsyncadd [#allocation12], %s627
          %s630 = sshll.u32 [#allocation11], 4
          %s631 = int_to_ptr.vmem [resolvable:$true] %s630
          %633 = dma.hbm_to_vmem [thread:$0]  %s6, 16, %s631, [#allocation12]
        $region36: #{tpu_custom_call.1} parent=11 // pred_fallthru
          _
        // Predicated region
        $region37: #{tpu_custom_call.1} parent=11 // pred_check
          %p634 = pneg %p212
        $region38: #{tpu_custom_call.1} parent=11 // pred_check_branch
          %636 = sbr.rel (%p634) target = $region40
        $region39: #{tpu_custom_call.1} parent=11 // pred_region
          _
        $region40: #{tpu_custom_call.1} parent=11 // pred_fallthru
          _
        // Predicated region
        $region41: #{tpu_custom_call.1} parent=11 // pred_check
          %p637 = pneg %p233
        $region42: #{tpu_custom_call.1} parent=11 // pred_check_branch
          %639 = sbr.rel (%p637) target = $region44
        $region43: #{tpu_custom_call.1} parent=11 // pred_region
          _
        $region44: #{tpu_custom_call.1} parent=11 // pred_fallthru
          _
        // Predicated region
        $region45: #{tpu_custom_call.1} parent=11 // pred_check
          %p640 = pneg %p254
        $region46: #{tpu_custom_call.1} parent=11 // pred_check_branch
          %642 = sbr.rel (%p640) target = $region48
        $region47: #{tpu_custom_call.1} parent=11 // pred_region
          _
        $region48: #{tpu_custom_call.1} parent=11 // pred_fallthru
          _
        // Predicated region
        $region49: #{tpu_custom_call.1} parent=11 // pred_check
          %p643 = pneg %p275
        $region50: #{tpu_custom_call.1} parent=11 // pred_check_branch
          %645 = sbr.rel (%p643) target = $region52
        $region51: #{tpu_custom_call.1} parent=11 // pred_region
          _
        $region52: #{tpu_custom_call.1} parent=11 // pred_fallthru
          _
        // Predicated region
        $region53: #{tpu_custom_call.1} parent=11 // pred_check
          %p646 = pneg %p296
        $region54: #{tpu_custom_call.1} parent=11 // pred_check_branch
          %648 = sbr.rel (%p646) target = $region56
        $region55: #{tpu_custom_call.1} parent=11 // pred_region
          %s650 = ssub.s32 64, 64
          %651 = vsyncadd [#allocation12], %s650
          %s653 = sshll.u32 [#allocation13], 4
          %s654 = int_to_ptr.vmem [resolvable:$true] %s653
          %656 = dma.hbm_to_vmem [thread:$0]  %s11, 64, %s654, [#allocation12]
        $region56: #{tpu_custom_call.1} parent=11 // pred_fallthru
          _
        // Predicated region
        $region57: #{tpu_custom_call.1} parent=11 // pred_check
          %p657 = pneg %p317
        $region58: #{tpu_custom_call.1} parent=11 // pred_check_branch
          %659 = sbr.rel (%p657) target = $region60
        $region59: #{tpu_custom_call.1} parent=11 // pred_region
          %s661 = ssub.s32 64, 64
          %662 = vsyncadd [#allocation15], %s661
          %s664 = sshll.u32 [#allocation14], 4
          %s665 = int_to_ptr.vmem [resolvable:$true] %s664
          %667 = dma.hbm_to_vmem [thread:$0]  %s12, 64, %s665, [#allocation15]
        $region60: #{tpu_custom_call.1} parent=11 // pred_fallthru
          _
        // Predicated region
        $region61: #{tpu_custom_call.1} parent=11 // pred_check
          %p668 = pneg %p338
        $region62: #{tpu_custom_call.1} parent=11 // pred_check_branch
          %670 = sbr.rel (%p668) target = $region64
        $region63: #{tpu_custom_call.1} parent=11 // pred_region
          %s672 = ssub.s32 16, 16
          %673 = vsyncadd [#allocation15], %s672
          %s675 = sshll.u32 [#allocation16], 4
          %s676 = int_to_ptr.vmem [resolvable:$true] %s675
          %678 = dma.hbm_to_vmem [thread:$0]  %s13, 16, %s676, [#allocation15]
        $region64: #{tpu_custom_call.1} parent=11 // pred_fallthru
          _
        // Predicated region
        $region65: #{tpu_custom_call.1} parent=11 // pred_check
          %p679 = pneg %p359
        $region66: #{tpu_custom_call.1} parent=11 // pred_check_branch
          %681 = sbr.rel (%p679) target = $region68
        $region67: #{tpu_custom_call.1} parent=11 // pred_region
          %s683 = ssub.s32 16, 16
          %684 = vsyncadd [#allocation18], %s683
          %s686 = sshll.u32 [#allocation17], 4
          %s687 = int_to_ptr.vmem [resolvable:$true] %s686
          %689 = dma.hbm_to_vmem [thread:$0]  %s14, 16, %s687, [#allocation18]
        $region68: #{tpu_custom_call.1} parent=11 // pred_fallthru
          _
        // Predicated region
        $region69: #{tpu_custom_call.1} parent=11 // pred_check
          %p690 = pneg %p380
        $region70: #{tpu_custom_call.1} parent=11 // pred_check_branch
          %692 = sbr.rel (%p690) target = $region72
        $region71: #{tpu_custom_call.1} parent=11 // pred_region
          _
        $region72: #{tpu_custom_call.1} parent=11 // pred_fallthru
          _
        // Predicated region
        $region73: #{tpu_custom_call.1} parent=11 // pred_check
          %p693 = pneg %p401
        $region74: #{tpu_custom_call.1} parent=11 // pred_check_branch
          %695 = sbr.rel (%p693) target = $region76
        $region75: #{tpu_custom_call.1} parent=11 // pred_region
          %s697 = ssub.s32 16, 16
          %698 = vsyncadd [#allocation18], %s697
          %s700 = sshll.u32 [#allocation19], 4
          %s701 = int_to_ptr.vmem [resolvable:$true] %s700
          %703 = dma.hbm_to_vmem [thread:$0]  %s16, 16, %s701, [#allocation18]
        $region76: #{tpu_custom_call.1} parent=11 // pred_fallthru
          _
        // Predicated region
        $region77: #{tpu_custom_call.1} parent=11 // pred_check
          %p704 = pneg %p422
        $region78: #{tpu_custom_call.1} parent=11 // pred_check_branch
          %706 = sbr.rel (%p704) target = $region80
        $region79: #{tpu_custom_call.1} parent=11 // pred_region
          %s708 = ssub.s32 16, 16
          %709 = vsyncadd [#allocation21], %s708
          %s711 = sshll.u32 [#allocation20], 4
          %s712 = int_to_ptr.vmem [resolvable:$true] %s711
          %714 = dma.hbm_to_vmem [thread:$0]  %s17, 16, %s712, [#allocation21]
        $region80: #{tpu_custom_call.1} parent=11 // pred_fallthru
          _
        // Predicated region
        $region81: #{tpu_custom_call.1} parent=11 // pred_check
          %p715 = pneg %p443
        $region82: #{tpu_custom_call.1} parent=11 // pred_check_branch
          %717 = sbr.rel (%p715) target = $region84
        $region83: #{tpu_custom_call.1} parent=11 // pred_region
          _
        $region84: #{tpu_custom_call.1} parent=11 // pred_fallthru
          _
        // Predicated region
        $region85: #{tpu_custom_call.1} parent=11 // pred_check
          %p718 = pneg %p464
        $region86: #{tpu_custom_call.1} parent=11 // pred_check_branch
          %720 = sbr.rel (%p718) target = $region88
        $region87: #{tpu_custom_call.1} parent=11 // pred_region
          _
        $region88: #{tpu_custom_call.1} parent=11 // pred_fallthru
          _
        // Predicated region
        $region89: #{tpu_custom_call.1} parent=11 // pred_check
          %p721 = pneg %p485
        $region90: #{tpu_custom_call.1} parent=11 // pred_check_branch
          %723 = sbr.rel (%p721) target = $region92
        $region91: #{tpu_custom_call.1} parent=11 // pred_region
          _
        $region92: #{tpu_custom_call.1} parent=11 // pred_fallthru
          _
        // Predicated region
        $region93: #{tpu_custom_call.1} parent=11 // pred_check
          %p724 = pneg %p506
        $region94: #{tpu_custom_call.1} parent=11 // pred_check_branch
          %726 = sbr.rel (%p724) target = $region96
        $region95: #{tpu_custom_call.1} parent=11 // pred_region
          %s728 = ssub.s32 256, 256
          %729 = vsyncadd [#allocation21], %s728
          %s730 = sshll.u32 [#allocation22], 4
          %s731 = int_to_ptr.vmem [resolvable:$true] %s730
          %736 = dma.hbm_to_vmem [thread:$0]  %s21, 256, %s731, [#allocation21], 64, 64, 4
        $region96: #{tpu_custom_call.1} parent=11 // pred_fallthru
          _
        // Predicated region
        $region97: #{tpu_custom_call.1} parent=11 // pred_check
          %p737 = pneg %p527
        $region98: #{tpu_custom_call.1} parent=11 // pred_check_branch
          %739 = sbr.rel (%p737) target = $region100
        $region99: #{tpu_custom_call.1} parent=11 // pred_region
          _
        $region100: #{tpu_custom_call.1} parent=11 // pred_fallthru
          _
      $region12: #{tpu_custom_call.1} parent=5 // pred_fallthru
        _
      %p740 = scmp.lt.s32.totalorder %s39, 2
      // Predicated region
      $region101: #{tpu_custom_call.1} parent=5 // pred_check
        %p741 = pneg %p740
      $region102: #{tpu_custom_call.1} parent=5 // pred_check_branch
        %743 = sbr.rel (%p741) target = $region104
      $region103: #{tpu_custom_call.1} parent=5 // pred_region
        // Predicated region
        $region105: #{tpu_custom_call.1} parent=103 // pred_check
          %p744 = pneg %p59
        $region106: #{tpu_custom_call.1} parent=103 // pred_check_branch
          %746 = sbr.rel (%p744) target = $region108
        $region107: #{tpu_custom_call.1} parent=103 // pred_region
          %p747 = scmp.lt.s32.totalorder %s39, 1
          %s748 = scalar_select %p747, %s39, 1
          %s749 = smul.addr %s748, 8
          %s750 = scalar_lea.vmem %s0, %s749
        $region108: #{tpu_custom_call.1} parent=103 // pred_fallthru
          _
      $region104: #{tpu_custom_call.1} parent=5 // pred_fallthru
        _
      %p751 = scmp.le.s32.totalorder 1, %s39
      %p752 = scmp.lt.s32.totalorder %s39, 3
      %p753 = pnand %p751, %p752
      %p754 = pneg %p753
      // Predicated region
      $region109: #{tpu_custom_call.1} parent=5 // pred_check
        _
      $region110: #{tpu_custom_call.1} parent=5 // pred_check_branch
        %756 = sbr.rel (%p753) target = $region112
      $region111: #{tpu_custom_call.1} parent=5 // pred_region
        %s757 = ssub.s32 %s39, 1
        // Predicated region
        $region113: #{tpu_custom_call.1} parent=111 // pred_check
          %p758 = pneg %p86
        $region114: #{tpu_custom_call.1} parent=111 // pred_check_branch
          %760 = sbr.rel (%p758) target = $region116
        $region115: #{tpu_custom_call.1} parent=111 // pred_region
          %761 = dma.done [#allocation3], 16
        $region116: #{tpu_custom_call.1} parent=111 // pred_fallthru
          _
        // Predicated region
        $region117: #{tpu_custom_call.1} parent=111 // pred_check
          %p762 = pneg %p107
        $region118: #{tpu_custom_call.1} parent=111 // pred_check_branch
          %764 = sbr.rel (%p762) target = $region120
        $region119: #{tpu_custom_call.1} parent=111 // pred_region
          %765 = dma.done [#allocation6], 16
        $region120: #{tpu_custom_call.1} parent=111 // pred_fallthru
          _
        // Predicated region
        $region121: #{tpu_custom_call.1} parent=111 // pred_check
          %p766 = pneg %p128
        $region122: #{tpu_custom_call.1} parent=111 // pred_check_branch
          %768 = sbr.rel (%p766) target = $region124
        $region123: #{tpu_custom_call.1} parent=111 // pred_region
          %769 = dma.done [#allocation6], 16
        $region124: #{tpu_custom_call.1} parent=111 // pred_fallthru
          _
        // Predicated region
        $region125: #{tpu_custom_call.1} parent=111 // pred_check
          %p770 = pneg %p149
        $region126: #{tpu_custom_call.1} parent=111 // pred_check_branch
          %772 = sbr.rel (%p770) target = $region128
        $region127: #{tpu_custom_call.1} parent=111 // pred_region
          %773 = dma.done [#allocation9], 16
        $region128: #{tpu_custom_call.1} parent=111 // pred_fallthru
          _
        // Predicated region
        $region129: #{tpu_custom_call.1} parent=111 // pred_check
          %p774 = pneg %p170
        $region130: #{tpu_custom_call.1} parent=111 // pred_check_branch
          %776 = sbr.rel (%p774) target = $region132
        $region131: #{tpu_custom_call.1} parent=111 // pred_region
          %777 = dma.done [#allocation9], 16
        $region132: #{tpu_custom_call.1} parent=111 // pred_fallthru
          _
        // Predicated region
        $region133: #{tpu_custom_call.1} parent=111 // pred_check
          %p778 = pneg %p191
        $region134: #{tpu_custom_call.1} parent=111 // pred_check_branch
          %780 = sbr.rel (%p778) target = $region136
        $region135: #{tpu_custom_call.1} parent=111 // pred_region
          %781 = dma.done [#allocation12], 16
        $region136: #{tpu_custom_call.1} parent=111 // pred_fallthru
          _
        // Predicated region
        $region137: #{tpu_custom_call.1} parent=111 // pred_check
          %p782 = pneg %p296
        $region138: #{tpu_custom_call.1} parent=111 // pred_check_branch
          %784 = sbr.rel (%p782) target = $region140
        $region139: #{tpu_custom_call.1} parent=111 // pred_region
          %785 = dma.done [#allocation12], 64
        $region140: #{tpu_custom_call.1} parent=111 // pred_fallthru
          _
        // Predicated region
        $region141: #{tpu_custom_call.1} parent=111 // pred_check
          %p786 = pneg %p317
        $region142: #{tpu_custom_call.1} parent=111 // pred_check_branch
          %788 = sbr.rel (%p786) target = $region144
        $region143: #{tpu_custom_call.1} parent=111 // pred_region
          %789 = dma.done [#allocation15], 64
        $region144: #{tpu_custom_call.1} parent=111 // pred_fallthru
          _
        // Predicated region
        $region145: #{tpu_custom_call.1} parent=111 // pred_check
          %p790 = pneg %p338
        $region146: #{tpu_custom_call.1} parent=111 // pred_check_branch
          %792 = sbr.rel (%p790) target = $region148
        $region147: #{tpu_custom_call.1} parent=111 // pred_region
          %793 = dma.done [#allocation15], 16
        $region148: #{tpu_custom_call.1} parent=111 // pred_fallthru
          _
        // Predicated region
        $region149: #{tpu_custom_call.1} parent=111 // pred_check
          %p794 = pneg %p359
        $region150: #{tpu_custom_call.1} parent=111 // pred_check_branch
          %796 = sbr.rel (%p794) target = $region152
        $region151: #{tpu_custom_call.1} parent=111 // pred_region
          %797 = dma.done [#allocation18], 16
        $region152: #{tpu_custom_call.1} parent=111 // pred_fallthru
          _
        // Predicated region
        $region153: #{tpu_custom_call.1} parent=111 // pred_check
          %p798 = pneg %p401
        $region154: #{tpu_custom_call.1} parent=111 // pred_check_branch
          %800 = sbr.rel (%p798) target = $region156
        $region155: #{tpu_custom_call.1} parent=111 // pred_region
          %801 = dma.done [#allocation18], 16
        $region156: #{tpu_custom_call.1} parent=111 // pred_fallthru
          _
        // Predicated region
        $region157: #{tpu_custom_call.1} parent=111 // pred_check
          %p802 = pneg %p422
        $region158: #{tpu_custom_call.1} parent=111 // pred_check_branch
          %804 = sbr.rel (%p802) target = $region160
        $region159: #{tpu_custom_call.1} parent=111 // pred_region
          %805 = dma.done [#allocation21], 16
        $region160: #{tpu_custom_call.1} parent=111 // pred_fallthru
          _
        // Predicated region
        $region161: #{tpu_custom_call.1} parent=111 // pred_check
          %p806 = pneg %p506
        $region162: #{tpu_custom_call.1} parent=111 // pred_check_branch
          %808 = sbr.rel (%p806) target = $region164
        $region163: #{tpu_custom_call.1} parent=111 // pred_region
          %809 = dma.done [#allocation21], 256
        $region164: #{tpu_custom_call.1} parent=111 // pred_fallthru
          _
        %p810 = scmp.lt.s32.totalorder %s44, 1
        %s811 = scalar_select %p810, %s44, 1
        %s812 = smul.addr %s811, 8
        %s813 = scalar_lea.vmem %s0, %s812
        %p814 = pneg %p65
        %p815 = pneg %p62
        %p816 = pneg %p86
        %p817 = pneg %p83
        %p818 = pneg %p107
        %p819 = pneg %p104
        %p820 = pneg %p128
        %p821 = pneg %p125
        %p822 = pneg %p149
        %p823 = pneg %p146
        %p824 = pneg %p170
        %p825 = pneg %p167
        %p826 = pneg %p191
        %p827 = pneg %p188
        %p828 = pneg %p212
        %p829 = pneg %p209
        %p830 = pneg %p233
        %p831 = pneg %p230
        %p832 = pneg %p254
        %p833 = pneg %p251
        %p834 = pneg %p275
        %p835 = pneg %p272
        %p836 = pneg %p296
        %p837 = pneg %p293
        %p838 = pneg %p317
        %p839 = pneg %p314
        %p840 = pneg %p338
        %p841 = pneg %p335
        %p842 = pneg %p359
        %p843 = pneg %p356
        %p844 = pneg %p380
        %p845 = pneg %p377
        %p846 = pneg %p401
        %p847 = pneg %p398
        %p848 = pneg %p422
        %p849 = pneg %p419
        %p850 = pneg %p443
        %p851 = pneg %p440
        %p852 = pneg %p464
        %p853 = pneg %p461
        %p854 = pneg %p485
        %p855 = pneg %p482
        %p856 = pneg %p506
        %p857 = pneg %p503
        %p858 = pneg %p527
        %p859 = pneg %p524
        %p860 = pneg %p553
        %p861 = pneg %p550
        %s862 = sand.u32 %s540, 1
        %s863 = scalar_lea.sflag [#allocation4], %s862
        %s864 = sand.u32 %s540, 1
        %s865 = smul.addr %s864, 8
        %s866 = scalar_lea.vmem [#allocation23], %s865
        %p867 = scmp.lt.s32.totalorder %s44, 1
        %s868 = scalar_select %p867, %s44, 1
        %s869 = smul.addr %s868, 8
        %s870 = scalar_lea.vmem %s0, %s869
        %v872 = vld [vmem:[%s870] sm:$0xff]
        %vm873 = vcmask 261120
        %v874 = vsel %vm873, %v872, 0.0
        %875 = vadd.xlane.f32.xlu0 %v874
        %v876 = vpop.xlane.xlu0 %875
        %v877 = vrcp.pop 32.0
        %v878 = vmul.f32 %v876, %v877
        %v879 = vsub.f32 %v872, %v878
        %v880 = vmul.f32 %v879, %v879
        %v881 = vsel %vm873, %v880, 0.0
        %882 = vadd.xlane.f32.xlu0 %v881
        %v883 = vpop.xlane.xlu0 %882
        %v884 = vmul.f32 %v883, %v877
        %v885 = vadd.f32 %v884, 1e-05
        %v886 = vrsqrt.pop %v885
        %v887 = vmul.f32 %v879, %v886
        %v888 = vld [vmem:[#allocation2] sm:$0x1]
        %v890 = vlaneseq
        %v891 = vshrl.u32 %v890, 7
        %v892 = vsub.s32 0, %v891
        %v893 = vrot.slane %v888, %v892
        %v895 = vmul.f32 %v887, %v893
        %v896 = vld [vmem:[#allocation5] sm:$0x1]
        %v898 = vlaneseq
        %v899 = vshrl.u32 %v898, 7
        %v900 = vsub.s32 0, %v899
        %v901 = vrot.slane %v896, %v900
        %v903 = vadd.f32 %v895, %v901
        %v904 = vrot.slane %v903, 7
        %v905 = vlaneseq
        %v906 = vshrl.u32 %v905, 7
        %vm907 = vcmp.eq.s32.totalorder %v906, 0
        %v908 = vsel %vm907, 0.0, %v904
        %v909 = vld [vmem:[#allocation7] sm:$0x1]
        %v910 = vsub.f32 %v903, %v908
        %v912 = vlaneseq
        %v913 = vshrl.u32 %v912, 7
        %v914 = vsub.s32 0, %v913
        %v915 = vrot.slane %v909, %v914
        %v917 = vmul.f32 %v915, %v910
        %v918 = vadd.f32 %v908, %v917
        %v919 = vpack.c.bf16 %v918, %v918
        %v920 = vld [vmem:[%s7] sm:$0xf]
        %v921 = vld [vmem:[%s7 + $0x4] sm:$0xf]
        %v922 = vld [vmem:[%s7 + $0x8] sm:$0xf]
        %v923 = vld [vmem:[%s7 + $0xc] sm:$0xf]
        %v928 = vunpack.c.l.b16 %v920
        %v929 = vunpack.c.l.b16 %v921
        %v930 = vunpack.c.l.b16 %v922
        %v931 = vunpack.c.l.b16 %v923
        %v932 = vpack.c.b16 %v929, %v928
        %v933 = vpack.c.b16 %v931, %v930
        %v937 = vsel %vm873, %v919, 0
        %939 = vmatprep.subr.bf16.mxu0 0
        %940 = vmatpush1.bf16.msra.mxu0 %v932
        %941 = vmatprep.subr.bf16.mxu0 0
        %942 = vmatpush1.bf16.msra.mxu0 %v933
        %943 = vmatprep.subr.bf16.mxu0 0
        %944 = vmatpush1.bf16.msra.mxu0 0
        %945 = vmatprep.subr.bf16.mxu0 0
        %946 = vmatpush1.bf16.msra.mxu0 0
        %947 = vmatprep.subr.bf16.mxu0 0
        %948 = vmatpush1.bf16.msra.mxu0 0
        %949 = vmatprep.subr.bf16.mxu0 0
        %950 = vmatpush1.bf16.msra.mxu0 0
        %951 = vmatprep.subr.bf16.mxu0 0
        %952 = vmatpush1.bf16.msra.mxu0 0
        %953 = vmatprep.subr.bf16.mxu0 0
        %954 = vmatpush1.bf16.msra.mxu0 0
        %955 = vmatprep.subr.bf16.mxu0 0
        %956 = vmatpush1.bf16.msra.mxu0 0
        %957 = vmatprep.subr.bf16.mxu0 0
        %958 = vmatpush1.bf16.msra.mxu0 0
        %959 = vmatprep.subr.bf16.mxu0 0
        %960 = vmatpush1.bf16.msra.mxu0 0
        %961 = vmatprep.subr.bf16.mxu0 0
        %962 = vmatpush1.bf16.msra.mxu0 0
        %963 = vmatprep.subr.bf16.mxu0 0
        %964 = vmatpush1.bf16.msra.mxu0 0
        %965 = vmatprep.subr.bf16.mxu0 0
        %966 = vmatpush1.bf16.msra.mxu0 0
        %967 = vmatprep.subr.bf16.mxu0 0
        %968 = vmatpush1.bf16.msra.mxu0 0
        %969 = vmatprep.subr.bf16.mxu0 0
        %970 = vmatpush1.bf16.msra.mxu0 0
        %971 = vmatprep.mubr.bf16.mxu0 0
        %972 = vmatmul.mubr.bf16.gmra.mrb[0].mxu0 %v937
        %v973 = vpop.f32.mrb[0].mxu0
        %v974 = vadd.f32 0.0, %v973
        %v975 = vpop.f32.mrb[0].mxu0
        %v976 = vpop.f32.mrb[0].mxu0
        %v977 = vpop.f32.mrb[0].mxu0
        %978 = vdwg.mxu0
        %v979 = vld [vmem:[#allocation8] sm:$0x1]
        %v981 = vlaneseq
        %v982 = vshrl.u32 %v981, 7
        %v983 = vsub.s32 0, %v982
        %v984 = vrot.slane %v979, %v983
        %v986 = vmul.f32 %v984, %v910
        %v987 = vadd.f32 %v908, %v986
        %v988 = vpack.c.bf16 %v987, %v987
        %v989 = vld [vmem:[%s8] sm:$0xf]
        %v990 = vld [vmem:[%s8 + $0x4] sm:$0xf]
        %v991 = vld [vmem:[%s8 + $0x8] sm:$0xf]
        %v992 = vld [vmem:[%s8 + $0xc] sm:$0xf]
        %v997 = vunpack.c.l.b16 %v989
        %v998 = vunpack.c.l.b16 %v990
        %v999 = vunpack.c.l.b16 %v991
        %v1000 = vunpack.c.l.b16 %v992
        %v1001 = vpack.c.b16 %v998, %v997
        %v1002 = vpack.c.b16 %v1000, %v999
        %v1006 = vsel %vm873, %v988, 0
        %1008 = vmatprep.subr.bf16.mxu0 0
        %1009 = vmatpush1.bf16.msra.mxu0 %v1001
        %1010 = vmatprep.subr.bf16.mxu0 0
        %1011 = vmatpush1.bf16.msra.mxu0 %v1002
        %1012 = vmatprep.subr.bf16.mxu0 0
        %1013 = vmatpush1.bf16.msra.mxu0 0
        %1014 = vmatprep.subr.bf16.mxu0 0
        %1015 = vmatpush1.bf16.msra.mxu0 0
        %1016 = vmatprep.subr.bf16.mxu0 0
        %1017 = vmatpush1.bf16.msra.mxu0 0
        %1018 = vmatprep.subr.bf16.mxu0 0
        %1019 = vmatpush1.bf16.msra.mxu0 0
        %1020 = vmatprep.subr.bf16.mxu0 0
        %1021 = vmatpush1.bf16.msra.mxu0 0
        %1022 = vmatprep.subr.bf16.mxu0 0
        %1023 = vmatpush1.bf16.msra.mxu0 0
        %1024 = vmatprep.subr.bf16.mxu0 0
        %1025 = vmatpush1.bf16.msra.mxu0 0
        %1026 = vmatprep.subr.bf16.mxu0 0
        %1027 = vmatpush1.bf16.msra.mxu0 0
        %1028 = vmatprep.subr.bf16.mxu0 0
        %1029 = vmatpush1.bf16.msra.mxu0 0
        %1030 = vmatprep.subr.bf16.mxu0 0
        %1031 = vmatpush1.bf16.msra.mxu0 0
        %1032 = vmatprep.subr.bf16.mxu0 0
        %1033 = vmatpush1.bf16.msra.mxu0 0
        %1034 = vmatprep.subr.bf16.mxu0 0
        %1035 = vmatpush1.bf16.msra.mxu0 0
        %1036 = vmatprep.subr.bf16.mxu0 0
        %1037 = vmatpush1.bf16.msra.mxu0 0
        %1038 = vmatprep.subr.bf16.mxu0 0
        %1039 = vmatpush1.bf16.msra.mxu0 0
        %1040 = vmatprep.mubr.bf16.mxu0 0
        %1041 = vmatmul.mubr.bf16.gmra.mrb[0].mxu0 %v1006
        %v1042 = vpop.f32.mrb[0].mxu0
        %v1043 = vadd.f32 0.0, %v1042
        %v1044 = vpop.f32.mrb[0].mxu0
        %v1045 = vpop.f32.mrb[0].mxu0
        %v1046 = vpop.f32.mrb[0].mxu0
        %1047 = vdwg.mxu0
        %v1048 = vld [vmem:[#allocation10] sm:$0x1]
        %v1050 = vlaneseq
        %v1051 = vshrl.u32 %v1050, 7
        %v1052 = vsub.s32 0, %v1051
        %v1053 = vrot.slane %v1048, %v1052
        %v1055 = vmul.f32 %v1053, %v910
        %v1056 = vadd.f32 %v908, %v1055
        %v1057 = vpack.c.bf16 %v1056, %v1056
        %v1058 = vld [vmem:[%s9] sm:$0xf]
        %v1059 = vld [vmem:[%s9 + $0x4] sm:$0xf]
        %v1060 = vld [vmem:[%s9 + $0x8] sm:$0xf]
        %v1061 = vld [vmem:[%s9 + $0xc] sm:$0xf]
        %v1066 = vunpack.c.l.b16 %v1058
        %v1067 = vunpack.c.l.b16 %v1059
        %v1068 = vunpack.c.l.b16 %v1060
        %v1069 = vunpack.c.l.b16 %v1061
        %v1070 = vpack.c.b16 %v1067, %v1066
        %v1071 = vpack.c.b16 %v1069, %v1068
        %v1075 = vsel %vm873, %v1057, 0
        %1077 = vmatprep.subr.bf16.mxu0 0
        %1078 = vmatpush1.bf16.msra.mxu0 %v1070
        %1079 = vmatprep.subr.bf16.mxu0 0
        %1080 = vmatpush1.bf16.msra.mxu0 %v1071
        %1081 = vmatprep.subr.bf16.mxu0 0
        %1082 = vmatpush1.bf16.msra.mxu0 0
        %1083 = vmatprep.subr.bf16.mxu0 0
        %1084 = vmatpush1.bf16.msra.mxu0 0
        %1085 = vmatprep.subr.bf16.mxu0 0
        %1086 = vmatpush1.bf16.msra.mxu0 0
        %1087 = vmatprep.subr.bf16.mxu0 0
        %1088 = vmatpush1.bf16.msra.mxu0 0
        %1089 = vmatprep.subr.bf16.mxu0 0
        %1090 = vmatpush1.bf16.msra.mxu0 0
        %1091 = vmatprep.subr.bf16.mxu0 0
        %1092 = vmatpush1.bf16.msra.mxu0 0
        %1093 = vmatprep.subr.bf16.mxu0 0
        %1094 = vmatpush1.bf16.msra.mxu0 0
        %1095 = vmatprep.subr.bf16.mxu0 0
        %1096 = vmatpush1.bf16.msra.mxu0 0
        %1097 = vmatprep.subr.bf16.mxu0 0
        %1098 = vmatpush1.bf16.msra.mxu0 0
        %1099 = vmatprep.subr.bf16.mxu0 0
        %1100 = vmatpush1.bf16.msra.mxu0 0
        %1101 = vmatprep.subr.bf16.mxu0 0
        %1102 = vmatpush1.bf16.msra.mxu0 0
        %1103 = vmatprep.subr.bf16.mxu0 0
        %1104 = vmatpush1.bf16.msra.mxu0 0
        %1105 = vmatprep.subr.bf16.mxu0 0
        %1106 = vmatpush1.bf16.msra.mxu0 0
        %1107 = vmatprep.subr.bf16.mxu0 0
        %1108 = vmatpush1.bf16.msra.mxu0 0
        %1109 = vmatprep.mubr.bf16.mxu0 0
        %1110 = vmatmul.mubr.bf16.gmra.mrb[0].mxu0 %v1075
        %v1111 = vpop.f32.mrb[0].mxu0
        %v1112 = vadd.f32 0.0, %v1111
        %v1113 = vpop.f32.mrb[0].mxu0
        %v1114 = vpop.f32.mrb[0].mxu0
        %v1115 = vpop.f32.mrb[0].mxu0
        %1116 = vdwg.mxu0
        %v1117 = vld [vmem:[#allocation11] sm:$0x1]
        %v1119 = vlaneseq
        %v1120 = vshrl.u32 %v1119, 7
        %v1121 = vsub.s32 0, %v1120
        %v1122 = vrot.slane %v1117, %v1121
        %v1124 = vmul.f32 %v1122, %v910
        %v1125 = vadd.f32 %v908, %v1124
        %v1126 = vpack.c.bf16 %v1125, %v1125
        %v1127 = vld [vmem:[%s10] sm:$0xf]
        %v1128 = vld [vmem:[%s10 + $0x4] sm:$0xf]
        %v1129 = vld [vmem:[%s10 + $0x8] sm:$0xf]
        %v1130 = vld [vmem:[%s10 + $0xc] sm:$0xf]
        %v1135 = vunpack.c.l.b16 %v1127
        %v1136 = vunpack.c.l.b16 %v1128
        %v1137 = vunpack.c.l.b16 %v1129
        %v1138 = vunpack.c.l.b16 %v1130
        %v1139 = vpack.c.b16 %v1136, %v1135
        %v1140 = vpack.c.b16 %v1138, %v1137
        %v1144 = vsel %vm873, %v1126, 0
        %1146 = vmatprep.subr.bf16.mxu0 0
        %1147 = vmatpush1.bf16.msra.mxu0 %v1139
        %1148 = vmatprep.subr.bf16.mxu0 0
        %1149 = vmatpush1.bf16.msra.mxu0 %v1140
        %1150 = vmatprep.subr.bf16.mxu0 0
        %1151 = vmatpush1.bf16.msra.mxu0 0
        %1152 = vmatprep.subr.bf16.mxu0 0
        %1153 = vmatpush1.bf16.msra.mxu0 0
        %1154 = vmatprep.subr.bf16.mxu0 0
        %1155 = vmatpush1.bf16.msra.mxu0 0
        %1156 = vmatprep.subr.bf16.mxu0 0
        %1157 = vmatpush1.bf16.msra.mxu0 0
        %1158 = vmatprep.subr.bf16.mxu0 0
        %1159 = vmatpush1.bf16.msra.mxu0 0
        %1160 = vmatprep.subr.bf16.mxu0 0
        %1161 = vmatpush1.bf16.msra.mxu0 0
        %1162 = vmatprep.subr.bf16.mxu0 0
        %1163 = vmatpush1.bf16.msra.mxu0 0
        %1164 = vmatprep.subr.bf16.mxu0 0
        %1165 = vmatpush1.bf16.msra.mxu0 0
        %1166 = vmatprep.subr.bf16.mxu0 0
        %1167 = vmatpush1.bf16.msra.mxu0 0
        %1168 = vmatprep.subr.bf16.mxu0 0
        %1169 = vmatpush1.bf16.msra.mxu0 0
        %1170 = vmatprep.subr.bf16.mxu0 0
        %1171 = vmatpush1.bf16.msra.mxu0 0
        %1172 = vmatprep.subr.bf16.mxu0 0
        %1173 = vmatpush1.bf16.msra.mxu0 0
        %1174 = vmatprep.subr.bf16.mxu0 0
        %1175 = vmatpush1.bf16.msra.mxu0 0
        %1176 = vmatprep.subr.bf16.mxu0 0
        %1177 = vmatpush1.bf16.msra.mxu0 0
        %1178 = vmatprep.mubr.bf16.mxu0 0
        %1179 = vmatmul.mubr.bf16.gmra.mrb[0].mxu0 %v1144
        %v1180 = vpop.f32.mrb[0].mxu0
        %v1181 = vadd.f32 0.0, %v1180
        %v1182 = vpop.f32.mrb[0].mxu0
        %v1183 = vpop.f32.mrb[0].mxu0
        %v1184 = vpop.f32.mrb[0].mxu0
        %1185 = vdwg.mxu0
        %v1186 = vxor.u32 %v1181, 2147483648
        %v1187 = vmul.f32 %v1186, 1.442695
        %v1188 = vpow.pop %v1187
        %v1189 = vadd.f32 %v1188, 1.0
        %v1190 = vrcp.pop %v1189
        %v1191 = vmul.f32 1.0, %v1190
        %v1192 = vmul.f32 %v1181, %v1191
        %1194 = vrot.lane.b32.xlu0 %v974, 120
        %v1195 = vpop.permute.xlu0 %1194
        %1197 = vrot.lane.b32.xlu0 %v974, 112
        %v1198 = vpop.permute.xlu0 %1197
        %1200 = vrot.lane.b32.xlu0 %v974, 104
        %v1201 = vpop.permute.xlu0 %1200
        %v1203 = vcombine.low %v974, %v1198
        %v1204 = vcombine.high %v974, %v1198
        %v1206 = vunpack.c.l.s4 1983009808
        %v1207 = vunpack.c.0.s8 %v1206
        %v1208 = vlaneseq
        %v1209 = vshrl.u32 %v1208, 7
        %v1210 = vsub.s32 %v1207, %v1209
        %v1211 = vrot.slane %v1203, %v1210
        %v1213 = vunpack.c.l.s4 1983009808
        %v1214 = vunpack.c.0.s8 %v1213
        %v1215 = vlaneseq
        %v1216 = vshrl.u32 %v1215, 7
        %v1217 = vsub.s32 %v1214, %v1216
        %v1218 = vrot.slane %v1204, %v1217
        %v1219 = vcombine.low %v1195, %v1201
        %v1220 = vcombine.high %v1195, %v1201
        %v1222 = vunpack.c.l.s4 1983009808
        %v1223 = vunpack.c.0.s8 %v1222
        %v1224 = vlaneseq
        %v1225 = vshrl.u32 %v1224, 7
        %v1226 = vsub.s32 %v1223, %v1225
        %v1227 = vrot.slane %v1219, %v1226
        %v1229 = vunpack.c.l.s4 1983009808
        %v1230 = vunpack.c.0.s8 %v1229
        %v1231 = vlaneseq
        %v1232 = vshrl.u32 %v1231, 7
        %v1233 = vsub.s32 %v1230, %v1232
        %v1234 = vrot.slane %v1220, %v1233
        %v1235 = vcombine.low %v1211, %v1227
        %v1236 = vcombine.high %v1211, %v1227
        %v1238 = vunpack.c.l.s4 1934713408
        %v1239 = vunpack.c.0.s8 %v1238
        %v1240 = vlaneseq
        %v1241 = vshrl.u32 %v1240, 7
        %v1242 = vsub.s32 %v1239, %v1241
        %v1243 = vrot.slane %v1235, %v1242
        %v1245 = vunpack.c.l.s4 1934713408
        %v1246 = vunpack.c.0.s8 %v1245
        %v1247 = vlaneseq
        %v1248 = vshrl.u32 %v1247, 7
        %v1249 = vsub.s32 %v1246, %v1248
        %v1250 = vrot.slane %v1236, %v1249
        %v1251 = vcombine.low %v1218, %v1234
        %v1252 = vcombine.high %v1218, %v1234
        %v1254 = vunpack.c.l.s4 1934713408
        %v1255 = vunpack.c.0.s8 %v1254
        %v1256 = vlaneseq
        %v1257 = vshrl.u32 %v1256, 7
        %v1258 = vsub.s32 %v1255, %v1257
        %v1259 = vrot.slane %v1251, %v1258
        %v1261 = vunpack.c.l.s4 1934713408
        %v1262 = vunpack.c.0.s8 %v1261
        %v1263 = vlaneseq
        %v1264 = vshrl.u32 %v1263, 7
        %v1265 = vsub.s32 %v1262, %v1264
        %v1266 = vrot.slane %v1252, %v1265
        %v1267 = vcombine.high %v1243, 0.0
        %v1268 = vcombine.high %v1250, 0.0
        %v1269 = vcombine.high %v1259, 0.0
        %v1270 = vcombine.high %v1266, 0.0
        %v1271 = vcombine.low %v1243, %v1250
        %v1273 = vunpack.c.l.s4 1983009808
        %v1274 = vunpack.c.0.s8 %v1273
        %v1275 = vlaneseq
        %v1276 = vshrl.u32 %v1275, 7
        %v1277 = vsub.s32 %v1274, %v1276
        %v1278 = vrot.slane %v1271, %v1277
        %v1279 = vcombine.low %v1267, %v1268
        %v1281 = vunpack.c.l.s4 1983009808
        %v1282 = vunpack.c.0.s8 %v1281
        %v1283 = vlaneseq
        %v1284 = vshrl.u32 %v1283, 7
        %v1285 = vsub.s32 %v1282, %v1284
        %v1286 = vrot.slane %v1279, %v1285
        %v1287 = vcombine.low %v1259, %v1266
        %v1289 = vunpack.c.l.s4 1983009808
        %v1290 = vunpack.c.0.s8 %v1289
        %v1291 = vlaneseq
        %v1292 = vshrl.u32 %v1291, 7
        %v1293 = vsub.s32 %v1290, %v1292
        %v1294 = vrot.slane %v1287, %v1293
        %v1295 = vcombine.low %v1269, %v1270
        %v1297 = vunpack.c.l.s4 1983009808
        %v1298 = vunpack.c.0.s8 %v1297
        %v1299 = vlaneseq
        %v1300 = vshrl.u32 %v1299, 7
        %v1301 = vsub.s32 %v1298, %v1300
        %v1302 = vrot.slane %v1295, %v1301
        %v1303 = vcombine.low %v1278, %v1286
        %v1304 = vcombine.high %v1278, %v1286
        %v1306 = vunpack.c.l.s4 1934713408
        %v1307 = vunpack.c.0.s8 %v1306
        %v1308 = vlaneseq
        %v1309 = vshrl.u32 %v1308, 7
        %v1310 = vsub.s32 %v1307, %v1309
        %v1311 = vrot.slane %v1303, %v1310
        %v1313 = vunpack.c.l.s4 1934713408
        %v1314 = vunpack.c.0.s8 %v1313
        %v1315 = vlaneseq
        %v1316 = vshrl.u32 %v1315, 7
        %v1317 = vsub.s32 %v1314, %v1316
        %v1318 = vrot.slane %v1304, %v1317
        %v1319 = vcombine.low %v1294, %v1302
        %v1320 = vcombine.high %v1294, %v1302
        %v1322 = vunpack.c.l.s4 1934713408
        %v1323 = vunpack.c.0.s8 %v1322
        %v1324 = vlaneseq
        %v1325 = vshrl.u32 %v1324, 7
        %v1326 = vsub.s32 %v1323, %v1325
        %v1327 = vrot.slane %v1319, %v1326
        %v1329 = vunpack.c.l.s4 1934713408
        %v1330 = vunpack.c.0.s8 %v1329
        %v1331 = vlaneseq
        %v1332 = vshrl.u32 %v1331, 7
        %v1333 = vsub.s32 %v1330, %v1332
        %v1334 = vrot.slane %v1320, %v1333
        %v1335 = vcombine.low %v1311, %v1327
        %v1336 = vcombine.high %v1311, %v1327
        %v1337 = vcombine.low %v1318, %v1334
        %v1338 = vcombine.high %v1318, %v1334
        %1340 = vrot.lane.b32.xlu0 %v1043, 120
        %v1341 = vpop.permute.xlu0 %1340
        %1343 = vrot.lane.b32.xlu0 %v1043, 112
        %v1344 = vpop.permute.xlu0 %1343
        %1346 = vrot.lane.b32.xlu0 %v1043, 104
        %v1347 = vpop.permute.xlu0 %1346
        %v1349 = vcombine.low %v1043, %v1344
        %v1350 = vcombine.high %v1043, %v1344
        %v1352 = vunpack.c.l.s4 1983009808
        %v1353 = vunpack.c.0.s8 %v1352
        %v1354 = vlaneseq
        %v1355 = vshrl.u32 %v1354, 7
        %v1356 = vsub.s32 %v1353, %v1355
        %v1357 = vrot.slane %v1349, %v1356
        %v1359 = vunpack.c.l.s4 1983009808
        %v1360 = vunpack.c.0.s8 %v1359
        %v1361 = vlaneseq
        %v1362 = vshrl.u32 %v1361, 7
        %v1363 = vsub.s32 %v1360, %v1362
        %v1364 = vrot.slane %v1350, %v1363
        %v1365 = vcombine.low %v1341, %v1347
        %v1366 = vcombine.high %v1341, %v1347
        %v1368 = vunpack.c.l.s4 1983009808
        %v1369 = vunpack.c.0.s8 %v1368
        %v1370 = vlaneseq
        %v1371 = vshrl.u32 %v1370, 7
        %v1372 = vsub.s32 %v1369, %v1371
        %v1373 = vrot.slane %v1365, %v1372
        %v1375 = vunpack.c.l.s4 1983009808
        %v1376 = vunpack.c.0.s8 %v1375
        %v1377 = vlaneseq
        %v1378 = vshrl.u32 %v1377, 7
        %v1379 = vsub.s32 %v1376, %v1378
        %v1380 = vrot.slane %v1366, %v1379
        %v1381 = vcombine.low %v1357, %v1373
        %v1382 = vcombine.high %v1357, %v1373
        %v1384 = vunpack.c.l.s4 1934713408
        %v1385 = vunpack.c.0.s8 %v1384
        %v1386 = vlaneseq
        %v1387 = vshrl.u32 %v1386, 7
        %v1388 = vsub.s32 %v1385, %v1387
        %v1389 = vrot.slane %v1381, %v1388
        %v1391 = vunpack.c.l.s4 1934713408
        %v1392 = vunpack.c.0.s8 %v1391
        %v1393 = vlaneseq
        %v1394 = vshrl.u32 %v1393, 7
        %v1395 = vsub.s32 %v1392, %v1394
        %v1396 = vrot.slane %v1382, %v1395
        %v1397 = vcombine.low %v1364, %v1380
        %v1398 = vcombine.high %v1364, %v1380
        %v1400 = vunpack.c.l.s4 1934713408
        %v1401 = vunpack.c.0.s8 %v1400
        %v1402 = vlaneseq
        %v1403 = vshrl.u32 %v1402, 7
        %v1404 = vsub.s32 %v1401, %v1403
        %v1405 = vrot.slane %v1397, %v1404
        %v1407 = vunpack.c.l.s4 1934713408
        %v1408 = vunpack.c.0.s8 %v1407
        %v1409 = vlaneseq
        %v1410 = vshrl.u32 %v1409, 7
        %v1411 = vsub.s32 %v1408, %v1410
        %v1412 = vrot.slane %v1398, %v1411
        %v1413 = vcombine.high %v1389, 0.0
        %v1414 = vcombine.high %v1396, 0.0
        %v1415 = vcombine.high %v1405, 0.0
        %v1416 = vcombine.high %v1412, 0.0
        %v1417 = vcombine.low %v1389, %v1396
        %v1419 = vunpack.c.l.s4 1983009808
        %v1420 = vunpack.c.0.s8 %v1419
        %v1421 = vlaneseq
        %v1422 = vshrl.u32 %v1421, 7
        %v1423 = vsub.s32 %v1420, %v1422
        %v1424 = vrot.slane %v1417, %v1423
        %v1425 = vcombine.low %v1413, %v1414
        %v1427 = vunpack.c.l.s4 1983009808
        %v1428 = vunpack.c.0.s8 %v1427
        %v1429 = vlaneseq
        %v1430 = vshrl.u32 %v1429, 7
        %v1431 = vsub.s32 %v1428, %v1430
        %v1432 = vrot.slane %v1425, %v1431
        %v1433 = vcombine.low %v1405, %v1412
        %v1435 = vunpack.c.l.s4 1983009808
        %v1436 = vunpack.c.0.s8 %v1435
        %v1437 = vlaneseq
        %v1438 = vshrl.u32 %v1437, 7
        %v1439 = vsub.s32 %v1436, %v1438
        %v1440 = vrot.slane %v1433, %v1439
        %v1441 = vcombine.low %v1415, %v1416
        %v1443 = vunpack.c.l.s4 1983009808
        %v1444 = vunpack.c.0.s8 %v1443
        %v1445 = vlaneseq
        %v1446 = vshrl.u32 %v1445, 7
        %v1447 = vsub.s32 %v1444, %v1446
        %v1448 = vrot.slane %v1441, %v1447
        %v1449 = vcombine.low %v1424, %v1432
        %v1450 = vcombine.high %v1424, %v1432
        %v1452 = vunpack.c.l.s4 1934713408
        %v1453 = vunpack.c.0.s8 %v1452
        %v1454 = vlaneseq
        %v1455 = vshrl.u32 %v1454, 7
        %v1456 = vsub.s32 %v1453, %v1455
        %v1457 = vrot.slane %v1449, %v1456
        %v1459 = vunpack.c.l.s4 1934713408
        %v1460 = vunpack.c.0.s8 %v1459
        %v1461 = vlaneseq
        %v1462 = vshrl.u32 %v1461, 7
        %v1463 = vsub.s32 %v1460, %v1462
        %v1464 = vrot.slane %v1450, %v1463
        %v1465 = vcombine.low %v1440, %v1448
        %v1466 = vcombine.high %v1440, %v1448
        %v1468 = vunpack.c.l.s4 1934713408
        %v1469 = vunpack.c.0.s8 %v1468
        %v1470 = vlaneseq
        %v1471 = vshrl.u32 %v1470, 7
        %v1472 = vsub.s32 %v1469, %v1471
        %v1473 = vrot.slane %v1465, %v1472
        %v1475 = vunpack.c.l.s4 1934713408
        %v1476 = vunpack.c.0.s8 %v1475
        %v1477 = vlaneseq
        %v1478 = vshrl.u32 %v1477, 7
        %v1479 = vsub.s32 %v1476, %v1478
        %v1480 = vrot.slane %v1466, %v1479
        %v1481 = vcombine.low %v1457, %v1473
        %v1482 = vcombine.high %v1457, %v1473
        %v1483 = vcombine.low %v1464, %v1480
        %v1484 = vcombine.high %v1464, %v1480
        %1486 = vrot.lane.b32.xlu0 %v1112, 120
        %v1487 = vpop.permute.xlu0 %1486
        %1489 = vrot.lane.b32.xlu0 %v1112, 112
        %v1490 = vpop.permute.xlu0 %1489
        %1492 = vrot.lane.b32.xlu0 %v1112, 104
        %v1493 = vpop.permute.xlu0 %1492
        %v1495 = vcombine.low %v1112, %v1490
        %v1496 = vcombine.high %v1112, %v1490
        %v1498 = vunpack.c.l.s4 1983009808
        %v1499 = vunpack.c.0.s8 %v1498
        %v1500 = vlaneseq
        %v1501 = vshrl.u32 %v1500, 7
        %v1502 = vsub.s32 %v1499, %v1501
        %v1503 = vrot.slane %v1495, %v1502
        %v1505 = vunpack.c.l.s4 1983009808
        %v1506 = vunpack.c.0.s8 %v1505
        %v1507 = vlaneseq
        %v1508 = vshrl.u32 %v1507, 7
        %v1509 = vsub.s32 %v1506, %v1508
        %v1510 = vrot.slane %v1496, %v1509
        %v1511 = vcombine.low %v1487, %v1493
        %v1512 = vcombine.high %v1487, %v1493
        %v1514 = vunpack.c.l.s4 1983009808
        %v1515 = vunpack.c.0.s8 %v1514
        %v1516 = vlaneseq
        %v1517 = vshrl.u32 %v1516, 7
        %v1518 = vsub.s32 %v1515, %v1517
        %v1519 = vrot.slane %v1511, %v1518
        %v1521 = vunpack.c.l.s4 1983009808
        %v1522 = vunpack.c.0.s8 %v1521
        %v1523 = vlaneseq
        %v1524 = vshrl.u32 %v1523, 7
        %v1525 = vsub.s32 %v1522, %v1524
        %v1526 = vrot.slane %v1512, %v1525
        %v1527 = vcombine.low %v1503, %v1519
        %v1528 = vcombine.high %v1503, %v1519
        %v1530 = vunpack.c.l.s4 1934713408
        %v1531 = vunpack.c.0.s8 %v1530
        %v1532 = vlaneseq
        %v1533 = vshrl.u32 %v1532, 7
        %v1534 = vsub.s32 %v1531, %v1533
        %v1535 = vrot.slane %v1527, %v1534
        %v1537 = vunpack.c.l.s4 1934713408
        %v1538 = vunpack.c.0.s8 %v1537
        %v1539 = vlaneseq
        %v1540 = vshrl.u32 %v1539, 7
        %v1541 = vsub.s32 %v1538, %v1540
        %v1542 = vrot.slane %v1528, %v1541
        %v1543 = vcombine.low %v1510, %v1526
        %v1544 = vcombine.high %v1510, %v1526
        %v1546 = vunpack.c.l.s4 1934713408
        %v1547 = vunpack.c.0.s8 %v1546
        %v1548 = vlaneseq
        %v1549 = vshrl.u32 %v1548, 7
        %v1550 = vsub.s32 %v1547, %v1549
        %v1551 = vrot.slane %v1543, %v1550
        %v1553 = vunpack.c.l.s4 1934713408
        %v1554 = vunpack.c.0.s8 %v1553
        %v1555 = vlaneseq
        %v1556 = vshrl.u32 %v1555, 7
        %v1557 = vsub.s32 %v1554, %v1556
        %v1558 = vrot.slane %v1544, %v1557
        %v1559 = vcombine.high %v1535, 0.0
        %v1560 = vcombine.high %v1542, 0.0
        %v1561 = vcombine.high %v1551, 0.0
        %v1562 = vcombine.high %v1558, 0.0
        %v1563 = vcombine.low %v1535, %v1542
        %v1565 = vunpack.c.l.s4 1983009808
        %v1566 = vunpack.c.0.s8 %v1565
        %v1567 = vlaneseq
        %v1568 = vshrl.u32 %v1567, 7
        %v1569 = vsub.s32 %v1566, %v1568
        %v1570 = vrot.slane %v1563, %v1569
        %v1571 = vcombine.low %v1559, %v1560
        %v1573 = vunpack.c.l.s4 1983009808
        %v1574 = vunpack.c.0.s8 %v1573
        %v1575 = vlaneseq
        %v1576 = vshrl.u32 %v1575, 7
        %v1577 = vsub.s32 %v1574, %v1576
        %v1578 = vrot.slane %v1571, %v1577
        %v1579 = vcombine.low %v1551, %v1558
        %v1581 = vunpack.c.l.s4 1983009808
        %v1582 = vunpack.c.0.s8 %v1581
        %v1583 = vlaneseq
        %v1584 = vshrl.u32 %v1583, 7
        %v1585 = vsub.s32 %v1582, %v1584
        %v1586 = vrot.slane %v1579, %v1585
        %v1587 = vcombine.low %v1561, %v1562
        %v1589 = vunpack.c.l.s4 1983009808
        %v1590 = vunpack.c.0.s8 %v1589
        %v1591 = vlaneseq
        %v1592 = vshrl.u32 %v1591, 7
        %v1593 = vsub.s32 %v1590, %v1592
        %v1594 = vrot.slane %v1587, %v1593
        %v1595 = vcombine.low %v1570, %v1578
        %v1596 = vcombine.high %v1570, %v1578
        %v1598 = vunpack.c.l.s4 1934713408
        %v1599 = vunpack.c.0.s8 %v1598
        %v1600 = vlaneseq
        %v1601 = vshrl.u32 %v1600, 7
        %v1602 = vsub.s32 %v1599, %v1601
        %v1603 = vrot.slane %v1595, %v1602
        %v1605 = vunpack.c.l.s4 1934713408
        %v1606 = vunpack.c.0.s8 %v1605
        %v1607 = vlaneseq
        %v1608 = vshrl.u32 %v1607, 7
        %v1609 = vsub.s32 %v1606, %v1608
        %v1610 = vrot.slane %v1596, %v1609
        %v1611 = vcombine.low %v1586, %v1594
        %v1612 = vcombine.high %v1586, %v1594
        %v1614 = vunpack.c.l.s4 1934713408
        %v1615 = vunpack.c.0.s8 %v1614
        %v1616 = vlaneseq
        %v1617 = vshrl.u32 %v1616, 7
        %v1618 = vsub.s32 %v1615, %v1617
        %v1619 = vrot.slane %v1611, %v1618
        %v1621 = vunpack.c.l.s4 1934713408
        %v1622 = vunpack.c.0.s8 %v1621
        %v1623 = vlaneseq
        %v1624 = vshrl.u32 %v1623, 7
        %v1625 = vsub.s32 %v1622, %v1624
        %v1626 = vrot.slane %v1612, %v1625
        %v1627 = vcombine.low %v1603, %v1619
        %v1628 = vcombine.high %v1603, %v1619
        %v1629 = vcombine.low %v1610, %v1626
        %v1630 = vcombine.high %v1610, %v1626
        %v1631 = vld [vmem:[#allocation13] sm:$0xf]
        %v1632 = vmul.f32 %v1631, 1.442695
        %v1633 = vpow.pop %v1632
        %v1636 = vunpack.c.l.s4 1966171168
        %v1637 = vunpack.c.0.s8 %v1636
        %v1638 = vlaneseq
        %v1639 = vshrl.u32 %v1638, 7
        %v1640 = vsub.s32 %v1637, %v1639
        %v1641 = vrot.slane %v1633, %v1640
        %v1642 = vcombine.high %v1641, %v1641
        %v1644 = vunpack.c.l.s4 1966171168
        %v1645 = vunpack.c.0.s8 %v1644
        %v1646 = vlaneseq
        %v1647 = vshrl.u32 %v1646, 7
        %v1648 = vsub.s32 %v1645, %v1647
        %v1649 = vrot.slane %v1641, %v1648
        %v1651 = vunpack.c.l.s4 1966171168
        %v1652 = vunpack.c.0.s8 %v1651
        %v1653 = vlaneseq
        %v1654 = vshrl.u32 %v1653, 7
        %v1655 = vsub.s32 %v1652, %v1654
        %v1656 = vrot.slane %v1642, %v1655
        %v1657 = vcombine.high %v1649, %v1649
        %v1658 = vcombine.high %v1656, %v1656
        %v1659 = vld [vmem:[#allocation14] sm:$0xf]
        %v1662 = vunpack.c.l.s4 1966171168
        %v1663 = vunpack.c.0.s8 %v1662
        %v1664 = vlaneseq
        %v1665 = vshrl.u32 %v1664, 7
        %v1666 = vsub.s32 %v1663, %v1665
        %v1667 = vrot.slane %v1659, %v1666
        %v1668 = vcombine.high %v1667, %v1667
        %v1670 = vunpack.c.l.s4 1966171168
        %v1671 = vunpack.c.0.s8 %v1670
        %v1672 = vlaneseq
        %v1673 = vshrl.u32 %v1672, 7
        %v1674 = vsub.s32 %v1671, %v1673
        %v1675 = vrot.slane %v1667, %v1674
        %v1677 = vunpack.c.l.s4 1966171168
        %v1678 = vunpack.c.0.s8 %v1677
        %v1679 = vlaneseq
        %v1680 = vshrl.u32 %v1679, 7
        %v1681 = vsub.s32 %v1678, %v1680
        %v1682 = vrot.slane %v1668, %v1681
        %v1683 = vcombine.high %v1675, %v1675
        %v1684 = vcombine.high %v1682, %v1682
        %v1685 = vcvt.s32.f32 %v906
        %v1686 = vlaneseq
        %v1687 = vand.u32 %v1686, 127
        %vm1688 = vcmp.gt.s32.totalorder %v906, %v1687
        %v1689 = vsub.f32 %v1685, 4.0
        %v1690 = vsub.f32 0.0, %v1689
        %v1691 = vlaneseq
        %v1692 = vshrl.u32 %v1691, 7
        %v1693 = vsub.s32 0, %v1692
        %v1694 = vrot.slane %v1649, %v1693
        %v1695 = vlaneseq
        %v1696 = vshrl.u32 %v1695, 7
        %v1697 = vsub.s32 0, %v1696
        %v1698 = vrot.slane %v1656, %v1697
        %v1699 = vlaneseq
        %v1700 = vshrl.u32 %v1699, 7
        %v1701 = vsub.s32 0, %v1700
        %v1702 = vrot.slane %v1657, %v1701
        %v1703 = vlaneseq
        %v1704 = vshrl.u32 %v1703, 7
        %v1705 = vsub.s32 0, %v1704
        %v1706 = vrot.slane %v1658, %v1705
        %v1711 = vmul.f32 %v1690, %v1694
        %v1712 = vmul.f32 %v1690, %v1698
        %v1713 = vmul.f32 %v1690, %v1702
        %v1714 = vmul.f32 %v1690, %v1706
        %v1715 = vmul.f32 %v1711, 1.442695
        %v1716 = vpow.pop %v1715
        %v1717 = vmul.f32 %v1712, 1.442695
        %v1718 = vpow.pop %v1717
        %v1719 = vmul.f32 %v1713, 1.442695
        %v1720 = vpow.pop %v1719
        %v1721 = vmul.f32 %v1714, 1.442695
        %v1722 = vpow.pop %v1721
        %v1723 = vadd.f32 %v1685, 1.0
        %v1724 = vsub.f32 %v1723, 4.0
        %v1725 = vmul.f32 %v1724, %v1694
        %v1726 = vmul.f32 %v1724, %v1698
        %v1727 = vmul.f32 %v1724, %v1702
        %v1728 = vmul.f32 %v1724, %v1706
        %v1729 = vmul.f32 %v1725, 1.442695
        %v1730 = vpow.pop %v1729
        %v1731 = vmul.f32 %v1726, 1.442695
        %v1732 = vpow.pop %v1731
        %v1733 = vmul.f32 %v1727, 1.442695
        %v1734 = vpow.pop %v1733
        %v1735 = vmul.f32 %v1728, 1.442695
        %v1736 = vpow.pop %v1735
        %v1737 = vmul.f32 %v1627, %v1716
        %v1738 = vmul.f32 %v1628, %v1718
        %v1739 = vmul.f32 %v1629, %v1720
        %v1740 = vmul.f32 %v1630, %v1722
        %v1741 = vmul.f32 %v1335, %v1730
        %v1742 = vmul.f32 %v1336, %v1732
        %v1743 = vmul.f32 %v1337, %v1734
        %v1744 = vmul.f32 %v1338, %v1736
        %vm1745 = vcmask 64512
        %v1747 = vsel %vm1745, %v1737, 0
        %v1750 = vsel %vm1745, %v1741, 0
        %1752 = vmatprep.subr.mxu0 0.0
        %1753 = vmatpush1.xpose.msra.mxu0 %v1750
        %1754 = vmatprep.subr.mxu0 0.0
        %1755 = vmatpush1.xpose.msra.mxu0 0.0
        %1756 = vmatprep.subr.mxu0 0.0
        %1757 = vmatpush1.xpose.msra.mxu0 0.0
        %1758 = vmatprep.subr.mxu0 0.0
        %1759 = vmatpush1.xpose.msra.mxu0 0.0
        %1760 = vmatprep.subr.mxu0 0.0
        %1761 = vmatpush1.xpose.msra.mxu0 0.0
        %1762 = vmatprep.subr.mxu0 0.0
        %1763 = vmatpush1.xpose.msra.mxu0 0.0
        %1764 = vmatprep.subr.mxu0 0.0
        %1765 = vmatpush1.xpose.msra.mxu0 0.0
        %1766 = vmatprep.subr.mxu0 0.0
        %1767 = vmatpush1.xpose.msra.mxu0 0.0
        %1768 = vmatprep.subr.mxu0 0.0
        %1769 = vmatpush1.xpose.msra.mxu0 0.0
        %1770 = vmatprep.subr.mxu0 0.0
        %1771 = vmatpush1.xpose.msra.mxu0 0.0
        %1772 = vmatprep.subr.mxu0 0.0
        %1773 = vmatpush1.xpose.msra.mxu0 0.0
        %1774 = vmatprep.subr.mxu0 0.0
        %1775 = vmatpush1.xpose.msra.mxu0 0.0
        %1776 = vmatprep.subr.mxu0 0.0
        %1777 = vmatpush1.xpose.msra.mxu0 0.0
        %1778 = vmatprep.subr.mxu0 0.0
        %1779 = vmatpush1.xpose.msra.mxu0 0.0
        %1780 = vmatprep.subr.mxu0 0.0
        %1781 = vmatpush1.xpose.msra.mxu0 0.0
        %1782 = vmatprep.subr.mxu0 0.0
        %1783 = vmatpush1.xpose.msra.mxu0 0.0
        %1784 = vmatprep.subr.mxu0 0.0
        %1785 = vmatpush1.xpose.msra.mxu0 0.0
        %1786 = vmatprep.subr.mxu0 0.0
        %1787 = vmatpush1.xpose.msra.mxu0 0.0
        %1788 = vmatprep.subr.mxu0 0.0
        %1789 = vmatpush1.xpose.msra.mxu0 0.0
        %1790 = vmatprep.subr.mxu0 0.0
        %1791 = vmatpush1.xpose.msra.mxu0 0.0
        %1792 = vmatprep.subr.mxu0 0.0
        %1793 = vmatpush1.xpose.msra.mxu0 0.0
        %1794 = vmatprep.subr.mxu0 0.0
        %1795 = vmatpush1.xpose.msra.mxu0 0.0
        %1796 = vmatprep.subr.mxu0 0.0
        %1797 = vmatpush1.xpose.msra.mxu0 0.0
        %1798 = vmatprep.subr.mxu0 0.0
        %1799 = vmatpush1.xpose.msra.mxu0 0.0
        %1800 = vmatprep.subr.mxu0 0.0
        %1801 = vmatpush1.xpose.msra.mxu0 0.0
        %1802 = vmatprep.subr.mxu0 0.0
        %1803 = vmatpush1.xpose.msra.mxu0 0.0
        %1804 = vmatprep.subr.mxu0 0.0
        %1805 = vmatpush1.xpose.msra.mxu0 0.0
        %1806 = vmatprep.subr.mxu0 0.0
        %1807 = vmatpush1.xpose.msra.mxu0 0.0
        %1808 = vmatprep.subr.mxu0 0.0
        %1809 = vmatpush1.xpose.msra.mxu0 0.0
        %1810 = vmatprep.subr.mxu0 0.0
        %1811 = vmatpush1.xpose.msra.mxu0 0.0
        %1812 = vmatprep.subr.mxu0 0.0
        %1813 = vmatpush1.xpose.msra.mxu0 0.0
        %1814 = vmatprep.subr.mxu0 0.0
        %1815 = vmatpush1.xpose.msra.mxu0 0.0
        %1816 = vmatprep.mubr.f32.mxu0 0.0
        %1817 = vmatmul.mubr.f32.gmra.mrb[0].mxu0 %v1747
        %v1818 = vpop.f32.mrb[0].mxu0
        %v1819 = vadd.f32 0.0, %v1818
        %v1820 = vpop.f32.mrb[0].mxu0
        %1821 = vdwg.mxu0
        %v1823 = vsel %vm1745, %v1738, 0
        %v1826 = vsel %vm1745, %v1742, 0
        %1828 = vmatprep.subr.mxu0 0.0
        %1829 = vmatpush1.xpose.msra.mxu0 %v1826
        %1830 = vmatprep.subr.mxu0 0.0
        %1831 = vmatpush1.xpose.msra.mxu0 0.0
        %1832 = vmatprep.subr.mxu0 0.0
        %1833 = vmatpush1.xpose.msra.mxu0 0.0
        %1834 = vmatprep.subr.mxu0 0.0
        %1835 = vmatpush1.xpose.msra.mxu0 0.0
        %1836 = vmatprep.subr.mxu0 0.0
        %1837 = vmatpush1.xpose.msra.mxu0 0.0
        %1838 = vmatprep.subr.mxu0 0.0
        %1839 = vmatpush1.xpose.msra.mxu0 0.0
        %1840 = vmatprep.subr.mxu0 0.0
        %1841 = vmatpush1.xpose.msra.mxu0 0.0
        %1842 = vmatprep.subr.mxu0 0.0
        %1843 = vmatpush1.xpose.msra.mxu0 0.0
        %1844 = vmatprep.subr.mxu0 0.0
        %1845 = vmatpush1.xpose.msra.mxu0 0.0
        %1846 = vmatprep.subr.mxu0 0.0
        %1847 = vmatpush1.xpose.msra.mxu0 0.0
        %1848 = vmatprep.subr.mxu0 0.0
        %1849 = vmatpush1.xpose.msra.mxu0 0.0
        %1850 = vmatprep.subr.mxu0 0.0
        %1851 = vmatpush1.xpose.msra.mxu0 0.0
        %1852 = vmatprep.subr.mxu0 0.0
        %1853 = vmatpush1.xpose.msra.mxu0 0.0
        %1854 = vmatprep.subr.mxu0 0.0
        %1855 = vmatpush1.xpose.msra.mxu0 0.0
        %1856 = vmatprep.subr.mxu0 0.0
        %1857 = vmatpush1.xpose.msra.mxu0 0.0
        %1858 = vmatprep.subr.mxu0 0.0
        %1859 = vmatpush1.xpose.msra.mxu0 0.0
        %1860 = vmatprep.subr.mxu0 0.0
        %1861 = vmatpush1.xpose.msra.mxu0 0.0
        %1862 = vmatprep.subr.mxu0 0.0
        %1863 = vmatpush1.xpose.msra.mxu0 0.0
        %1864 = vmatprep.subr.mxu0 0.0
        %1865 = vmatpush1.xpose.msra.mxu0 0.0
        %1866 = vmatprep.subr.mxu0 0.0
        %1867 = vmatpush1.xpose.msra.mxu0 0.0
        %1868 = vmatprep.subr.mxu0 0.0
        %1869 = vmatpush1.xpose.msra.mxu0 0.0
        %1870 = vmatprep.subr.mxu0 0.0
        %1871 = vmatpush1.xpose.msra.mxu0 0.0
        %1872 = vmatprep.subr.mxu0 0.0
        %1873 = vmatpush1.xpose.msra.mxu0 0.0
        %1874 = vmatprep.subr.mxu0 0.0
        %1875 = vmatpush1.xpose.msra.mxu0 0.0
        %1876 = vmatprep.subr.mxu0 0.0
        %1877 = vmatpush1.xpose.msra.mxu0 0.0
        %1878 = vmatprep.subr.mxu0 0.0
        %1879 = vmatpush1.xpose.msra.mxu0 0.0
        %1880 = vmatprep.subr.mxu0 0.0
        %1881 = vmatpush1.xpose.msra.mxu0 0.0
        %1882 = vmatprep.subr.mxu0 0.0
        %1883 = vmatpush1.xpose.msra.mxu0 0.0
        %1884 = vmatprep.subr.mxu0 0.0
        %1885 = vmatpush1.xpose.msra.mxu0 0.0
        %1886 = vmatprep.subr.mxu0 0.0
        %1887 = vmatpush1.xpose.msra.mxu0 0.0
        %1888 = vmatprep.subr.mxu0 0.0
        %1889 = vmatpush1.xpose.msra.mxu0 0.0
        %1890 = vmatprep.subr.mxu0 0.0
        %1891 = vmatpush1.xpose.msra.mxu0 0.0
        %1892 = vmatprep.mubr.f32.mxu0 0.0
        %1893 = vmatmul.mubr.f32.gmra.mrb[0].mxu0 %v1823
        %v1894 = vpop.f32.mrb[0].mxu0
        %v1895 = vadd.f32 0.0, %v1894
        %v1896 = vpop.f32.mrb[0].mxu0
        %1897 = vdwg.mxu0
        %v1899 = vsel %vm1745, %v1739, 0
        %v1902 = vsel %vm1745, %v1743, 0
        %1904 = vmatprep.subr.mxu0 0.0
        %1905 = vmatpush1.xpose.msra.mxu0 %v1902
        %1906 = vmatprep.subr.mxu0 0.0
        %1907 = vmatpush1.xpose.msra.mxu0 0.0
        %1908 = vmatprep.subr.mxu0 0.0
        %1909 = vmatpush1.xpose.msra.mxu0 0.0
        %1910 = vmatprep.subr.mxu0 0.0
        %1911 = vmatpush1.xpose.msra.mxu0 0.0
        %1912 = vmatprep.subr.mxu0 0.0
        %1913 = vmatpush1.xpose.msra.mxu0 0.0
        %1914 = vmatprep.subr.mxu0 0.0
        %1915 = vmatpush1.xpose.msra.mxu0 0.0
        %1916 = vmatprep.subr.mxu0 0.0
        %1917 = vmatpush1.xpose.msra.mxu0 0.0
        %1918 = vmatprep.subr.mxu0 0.0
        %1919 = vmatpush1.xpose.msra.mxu0 0.0
        %1920 = vmatprep.subr.mxu0 0.0
        %1921 = vmatpush1.xpose.msra.mxu0 0.0
        %1922 = vmatprep.subr.mxu0 0.0
        %1923 = vmatpush1.xpose.msra.mxu0 0.0
        %1924 = vmatprep.subr.mxu0 0.0
        %1925 = vmatpush1.xpose.msra.mxu0 0.0
        %1926 = vmatprep.subr.mxu0 0.0
        %1927 = vmatpush1.xpose.msra.mxu0 0.0
        %1928 = vmatprep.subr.mxu0 0.0
        %1929 = vmatpush1.xpose.msra.mxu0 0.0
        %1930 = vmatprep.subr.mxu0 0.0
        %1931 = vmatpush1.xpose.msra.mxu0 0.0
        %1932 = vmatprep.subr.mxu0 0.0
        %1933 = vmatpush1.xpose.msra.mxu0 0.0
        %1934 = vmatprep.subr.mxu0 0.0
        %1935 = vmatpush1.xpose.msra.mxu0 0.0
        %1936 = vmatprep.subr.mxu0 0.0
        %1937 = vmatpush1.xpose.msra.mxu0 0.0
        %1938 = vmatprep.subr.mxu0 0.0
        %1939 = vmatpush1.xpose.msra.mxu0 0.0
        %1940 = vmatprep.subr.mxu0 0.0
        %1941 = vmatpush1.xpose.msra.mxu0 0.0
        %1942 = vmatprep.subr.mxu0 0.0
        %1943 = vmatpush1.xpose.msra.mxu0 0.0
        %1944 = vmatprep.subr.mxu0 0.0
        %1945 = vmatpush1.xpose.msra.mxu0 0.0
        %1946 = vmatprep.subr.mxu0 0.0
        %1947 = vmatpush1.xpose.msra.mxu0 0.0
        %1948 = vmatprep.subr.mxu0 0.0
        %1949 = vmatpush1.xpose.msra.mxu0 0.0
        %1950 = vmatprep.subr.mxu0 0.0
        %1951 = vmatpush1.xpose.msra.mxu0 0.0
        %1952 = vmatprep.subr.mxu0 0.0
        %1953 = vmatpush1.xpose.msra.mxu0 0.0
        %1954 = vmatprep.subr.mxu0 0.0
        %1955 = vmatpush1.xpose.msra.mxu0 0.0
        %1956 = vmatprep.subr.mxu0 0.0
        %1957 = vmatpush1.xpose.msra.mxu0 0.0
        %1958 = vmatprep.subr.mxu0 0.0
        %1959 = vmatpush1.xpose.msra.mxu0 0.0
        %1960 = vmatprep.subr.mxu0 0.0
        %1961 = vmatpush1.xpose.msra.mxu0 0.0
        %1962 = vmatprep.subr.mxu0 0.0
        %1963 = vmatpush1.xpose.msra.mxu0 0.0
        %1964 = vmatprep.subr.mxu0 0.0
        %1965 = vmatpush1.xpose.msra.mxu0 0.0
        %1966 = vmatprep.subr.mxu0 0.0
        %1967 = vmatpush1.xpose.msra.mxu0 0.0
        %1968 = vmatprep.mubr.f32.mxu0 0.0
        %1969 = vmatmul.mubr.f32.gmra.mrb[0].mxu0 %v1899
        %v1970 = vpop.f32.mrb[0].mxu0
        %v1971 = vadd.f32 0.0, %v1970
        %v1972 = vpop.f32.mrb[0].mxu0
        %1973 = vdwg.mxu0
        %v1975 = vsel %vm1745, %v1740, 0
        %v1978 = vsel %vm1745, %v1744, 0
        %1980 = vmatprep.subr.mxu0 0.0
        %1981 = vmatpush1.xpose.msra.mxu0 %v1978
        %1982 = vmatprep.subr.mxu0 0.0
        %1983 = vmatpush1.xpose.msra.mxu0 0.0
        %1984 = vmatprep.subr.mxu0 0.0
        %1985 = vmatpush1.xpose.msra.mxu0 0.0
        %1986 = vmatprep.subr.mxu0 0.0
        %1987 = vmatpush1.xpose.msra.mxu0 0.0
        %1988 = vmatprep.subr.mxu0 0.0
        %1989 = vmatpush1.xpose.msra.mxu0 0.0
        %1990 = vmatprep.subr.mxu0 0.0
        %1991 = vmatpush1.xpose.msra.mxu0 0.0
        %1992 = vmatprep.subr.mxu0 0.0
        %1993 = vmatpush1.xpose.msra.mxu0 0.0
        %1994 = vmatprep.subr.mxu0 0.0
        %1995 = vmatpush1.xpose.msra.mxu0 0.0
        %1996 = vmatprep.subr.mxu0 0.0
        %1997 = vmatpush1.xpose.msra.mxu0 0.0
        %1998 = vmatprep.subr.mxu0 0.0
        %1999 = vmatpush1.xpose.msra.mxu0 0.0
        %2000 = vmatprep.subr.mxu0 0.0
        %2001 = vmatpush1.xpose.msra.mxu0 0.0
        %2002 = vmatprep.subr.mxu0 0.0
        %2003 = vmatpush1.xpose.msra.mxu0 0.0
        %2004 = vmatprep.subr.mxu0 0.0
        %2005 = vmatpush1.xpose.msra.mxu0 0.0
        %2006 = vmatprep.subr.mxu0 0.0
        %2007 = vmatpush1.xpose.msra.mxu0 0.0
        %2008 = vmatprep.subr.mxu0 0.0
        %2009 = vmatpush1.xpose.msra.mxu0 0.0
        %2010 = vmatprep.subr.mxu0 0.0
        %2011 = vmatpush1.xpose.msra.mxu0 0.0
        %2012 = vmatprep.subr.mxu0 0.0
        %2013 = vmatpush1.xpose.msra.mxu0 0.0
        %2014 = vmatprep.subr.mxu0 0.0
        %2015 = vmatpush1.xpose.msra.mxu0 0.0
        %2016 = vmatprep.subr.mxu0 0.0
        %2017 = vmatpush1.xpose.msra.mxu0 0.0
        %2018 = vmatprep.subr.mxu0 0.0
        %2019 = vmatpush1.xpose.msra.mxu0 0.0
        %2020 = vmatprep.subr.mxu0 0.0
        %2021 = vmatpush1.xpose.msra.mxu0 0.0
        %2022 = vmatprep.subr.mxu0 0.0
        %2023 = vmatpush1.xpose.msra.mxu0 0.0
        %2024 = vmatprep.subr.mxu0 0.0
        %2025 = vmatpush1.xpose.msra.mxu0 0.0
        %2026 = vmatprep.subr.mxu0 0.0
        %2027 = vmatpush1.xpose.msra.mxu0 0.0
        %2028 = vmatprep.subr.mxu0 0.0
        %2029 = vmatpush1.xpose.msra.mxu0 0.0
        %2030 = vmatprep.subr.mxu0 0.0
        %2031 = vmatpush1.xpose.msra.mxu0 0.0
        %2032 = vmatprep.subr.mxu0 0.0
        %2033 = vmatpush1.xpose.msra.mxu0 0.0
        %2034 = vmatprep.subr.mxu0 0.0
        %2035 = vmatpush1.xpose.msra.mxu0 0.0
        %2036 = vmatprep.subr.mxu0 0.0
        %2037 = vmatpush1.xpose.msra.mxu0 0.0
        %2038 = vmatprep.subr.mxu0 0.0
        %2039 = vmatpush1.xpose.msra.mxu0 0.0
        %2040 = vmatprep.subr.mxu0 0.0
        %2041 = vmatpush1.xpose.msra.mxu0 0.0
        %2042 = vmatprep.subr.mxu0 0.0
        %2043 = vmatpush1.xpose.msra.mxu0 0.0
        %2044 = vmatprep.mubr.f32.mxu0 0.0
        %2045 = vmatmul.mubr.f32.gmra.mrb[0].mxu0 %v1975
        %v2046 = vpop.f32.mrb[0].mxu0
        %v2047 = vadd.f32 0.0, %v2046
        %v2048 = vpop.f32.mrb[0].mxu0
        %2049 = vdwg.mxu0
        %v2050 = vsel %vm1688, 1, 0
        %vm2051 = vcmp.eq.s32.totalorder %v2050, 1
        %v2052 = vsel %vm2051, %v1819, 0.0
        %v2053 = vsel %vm2051, %v1895, 0.0
        %v2054 = vsel %vm2051, %v1971, 0.0
        %v2055 = vsel %vm2051, %v2047, 0.0
        %v2056 = vlaneseq
        %v2057 = vshrl.u32 %v2056, 7
        %v2058 = vsub.s32 0, %v2057
        %v2059 = vrot.slane %v1675, %v2058
        %v2060 = vlaneseq
        %v2061 = vshrl.u32 %v2060, 7
        %v2062 = vsub.s32 0, %v2061
        %v2063 = vrot.slane %v1682, %v2062
        %v2064 = vlaneseq
        %v2065 = vshrl.u32 %v2064, 7
        %v2066 = vsub.s32 0, %v2065
        %v2067 = vrot.slane %v1683, %v2066
        %v2068 = vlaneseq
        %v2069 = vshrl.u32 %v2068, 7
        %v2070 = vsub.s32 0, %v2069
        %v2071 = vrot.slane %v1684, %v2070
        %v2076 = vmul.f32 %v1627, %v2059
        %v2077 = vmul.f32 %v1628, %v2063
        %v2078 = vmul.f32 %v1629, %v2067
        %v2079 = vmul.f32 %v1630, %v2071
        %v2080 = vmul.f32 %v2076, %v1335
        %v2081 = vmul.f32 %v2077, %v1336
        %v2082 = vmul.f32 %v2078, %v1337
        %v2083 = vmul.f32 %v2079, %v1338
        %v2084 = vsel %vm1745, %v2080, 0.0
        %2085 = vadd.xlane.f32.xlu0 %v2084
        %v2086 = vpop.xlane.xlu0 %2085
        %v2087 = vsel %vm1745, %v2081, 0.0
        %2088 = vadd.xlane.f32.xlu0 %v2087
        %v2089 = vpop.xlane.xlu0 %2088
        %v2090 = vsel %vm1745, %v2082, 0.0
        %2091 = vadd.xlane.f32.xlu0 %v2090
        %v2092 = vpop.xlane.xlu0 %2091
        %v2093 = vsel %vm1745, %v2083, 0.0
        %2094 = vadd.xlane.f32.xlu0 %v2093
        %v2095 = vpop.xlane.xlu0 %2094
        %v2096 = vmul.f32 %v2086, %v1481
        %v2097 = vmul.f32 %v2089, %v1482
        %v2098 = vmul.f32 %v2092, %v1483
        %v2099 = vmul.f32 %v2095, %v1484
        %v2101 = vsel %vm1745, %v2052, 0
        %2103 = vmatprep.subr.mxu0 0.0
        %2104 = vmatpush1.msra.mxu0 %v1481
        %2105 = vmatprep.subr.mxu0 0.0
        %2106 = vmatpush1.msra.mxu0 0.0
        %2107 = vmatprep.subr.mxu0 0.0
        %2108 = vmatpush1.msra.mxu0 0.0
        %2109 = vmatprep.subr.mxu0 0.0
        %2110 = vmatpush1.msra.mxu0 0.0
        %2111 = vmatprep.subr.mxu0 0.0
        %2112 = vmatpush1.msra.mxu0 0.0
        %2113 = vmatprep.subr.mxu0 0.0
        %2114 = vmatpush1.msra.mxu0 0.0
        %2115 = vmatprep.subr.mxu0 0.0
        %2116 = vmatpush1.msra.mxu0 0.0
        %2117 = vmatprep.subr.mxu0 0.0
        %2118 = vmatpush1.msra.mxu0 0.0
        %2119 = vmatprep.subr.mxu0 0.0
        %2120 = vmatpush1.msra.mxu0 0.0
        %2121 = vmatprep.subr.mxu0 0.0
        %2122 = vmatpush1.msra.mxu0 0.0
        %2123 = vmatprep.subr.mxu0 0.0
        %2124 = vmatpush1.msra.mxu0 0.0
        %2125 = vmatprep.subr.mxu0 0.0
        %2126 = vmatpush1.msra.mxu0 0.0
        %2127 = vmatprep.subr.mxu0 0.0
        %2128 = vmatpush1.msra.mxu0 0.0
        %2129 = vmatprep.subr.mxu0 0.0
        %2130 = vmatpush1.msra.mxu0 0.0
        %2131 = vmatprep.subr.mxu0 0.0
        %2132 = vmatpush1.msra.mxu0 0.0
        %2133 = vmatprep.subr.mxu0 0.0
        %2134 = vmatpush1.msra.mxu0 0.0
        %2135 = vmatprep.subr.mxu0 0.0
        %2136 = vmatpush1.msra.mxu0 0.0
        %2137 = vmatprep.subr.mxu0 0.0
        %2138 = vmatpush1.msra.mxu0 0.0
        %2139 = vmatprep.subr.mxu0 0.0
        %2140 = vmatpush1.msra.mxu0 0.0
        %2141 = vmatprep.subr.mxu0 0.0
        %2142 = vmatpush1.msra.mxu0 0.0
        %2143 = vmatprep.subr.mxu0 0.0
        %2144 = vmatpush1.msra.mxu0 0.0
        %2145 = vmatprep.subr.mxu0 0.0
        %2146 = vmatpush1.msra.mxu0 0.0
        %2147 = vmatprep.subr.mxu0 0.0
        %2148 = vmatpush1.msra.mxu0 0.0
        %2149 = vmatprep.subr.mxu0 0.0
        %2150 = vmatpush1.msra.mxu0 0.0
        %2151 = vmatprep.subr.mxu0 0.0
        %2152 = vmatpush1.msra.mxu0 0.0
        %2153 = vmatprep.subr.mxu0 0.0
        %2154 = vmatpush1.msra.mxu0 0.0
        %2155 = vmatprep.subr.mxu0 0.0
        %2156 = vmatpush1.msra.mxu0 0.0
        %2157 = vmatprep.subr.mxu0 0.0
        %2158 = vmatpush1.msra.mxu0 0.0
        %2159 = vmatprep.subr.mxu0 0.0
        %2160 = vmatpush1.msra.mxu0 0.0
        %2161 = vmatprep.subr.mxu0 0.0
        %2162 = vmatpush1.msra.mxu0 0.0
        %2163 = vmatprep.subr.mxu0 0.0
        %2164 = vmatpush1.msra.mxu0 0.0
        %2165 = vmatprep.subr.mxu0 0.0
        %2166 = vmatpush1.msra.mxu0 0.0
        %2167 = vmatprep.mubr.f32.mxu0 0.0
        %2168 = vmatmul.mubr.f32.gmra.mrb[0].mxu0 %v2101
        %v2169 = vpop.f32.mrb[0].mxu0
        %v2170 = vadd.f32 %v2096, %v2169
        %v2171 = vpop.f32.mrb[0].mxu0
        %2172 = vdwg.mxu0
        %v2174 = vsel %vm1745, %v2053, 0
        %2176 = vmatprep.subr.mxu0 0.0
        %2177 = vmatpush1.msra.mxu0 %v1482
        %2178 = vmatprep.subr.mxu0 0.0
        %2179 = vmatpush1.msra.mxu0 0.0
        %2180 = vmatprep.subr.mxu0 0.0
        %2181 = vmatpush1.msra.mxu0 0.0
        %2182 = vmatprep.subr.mxu0 0.0
        %2183 = vmatpush1.msra.mxu0 0.0
        %2184 = vmatprep.subr.mxu0 0.0
        %2185 = vmatpush1.msra.mxu0 0.0
        %2186 = vmatprep.subr.mxu0 0.0
        %2187 = vmatpush1.msra.mxu0 0.0
        %2188 = vmatprep.subr.mxu0 0.0
        %2189 = vmatpush1.msra.mxu0 0.0
        %2190 = vmatprep.subr.mxu0 0.0
        %2191 = vmatpush1.msra.mxu0 0.0
        %2192 = vmatprep.subr.mxu0 0.0
        %2193 = vmatpush1.msra.mxu0 0.0
        %2194 = vmatprep.subr.mxu0 0.0
        %2195 = vmatpush1.msra.mxu0 0.0
        %2196 = vmatprep.subr.mxu0 0.0
        %2197 = vmatpush1.msra.mxu0 0.0
        %2198 = vmatprep.subr.mxu0 0.0
        %2199 = vmatpush1.msra.mxu0 0.0
        %2200 = vmatprep.subr.mxu0 0.0
        %2201 = vmatpush1.msra.mxu0 0.0
        %2202 = vmatprep.subr.mxu0 0.0
        %2203 = vmatpush1.msra.mxu0 0.0
        %2204 = vmatprep.subr.mxu0 0.0
        %2205 = vmatpush1.msra.mxu0 0.0
        %2206 = vmatprep.subr.mxu0 0.0
        %2207 = vmatpush1.msra.mxu0 0.0
        %2208 = vmatprep.subr.mxu0 0.0
        %2209 = vmatpush1.msra.mxu0 0.0
        %2210 = vmatprep.subr.mxu0 0.0
        %2211 = vmatpush1.msra.mxu0 0.0
        %2212 = vmatprep.subr.mxu0 0.0
        %2213 = vmatpush1.msra.mxu0 0.0
        %2214 = vmatprep.subr.mxu0 0.0
        %2215 = vmatpush1.msra.mxu0 0.0
        %2216 = vmatprep.subr.mxu0 0.0
        %2217 = vmatpush1.msra.mxu0 0.0
        %2218 = vmatprep.subr.mxu0 0.0
        %2219 = vmatpush1.msra.mxu0 0.0
        %2220 = vmatprep.subr.mxu0 0.0
        %2221 = vmatpush1.msra.mxu0 0.0
        %2222 = vmatprep.subr.mxu0 0.0
        %2223 = vmatpush1.msra.mxu0 0.0
        %2224 = vmatprep.subr.mxu0 0.0
        %2225 = vmatpush1.msra.mxu0 0.0
        %2226 = vmatprep.subr.mxu0 0.0
        %2227 = vmatpush1.msra.mxu0 0.0
        %2228 = vmatprep.subr.mxu0 0.0
        %2229 = vmatpush1.msra.mxu0 0.0
        %2230 = vmatprep.subr.mxu0 0.0
        %2231 = vmatpush1.msra.mxu0 0.0
        %2232 = vmatprep.subr.mxu0 0.0
        %2233 = vmatpush1.msra.mxu0 0.0
        %2234 = vmatprep.subr.mxu0 0.0
        %2235 = vmatpush1.msra.mxu0 0.0
        %2236 = vmatprep.subr.mxu0 0.0
        %2237 = vmatpush1.msra.mxu0 0.0
        %2238 = vmatprep.subr.mxu0 0.0
        %2239 = vmatpush1.msra.mxu0 0.0
        %2240 = vmatprep.mubr.f32.mxu0 0.0
        %2241 = vmatmul.mubr.f32.gmra.mrb[0].mxu0 %v2174
        %v2242 = vpop.f32.mrb[0].mxu0
        %v2243 = vadd.f32 %v2097, %v2242
        %v2244 = vpop.f32.mrb[0].mxu0
        %2245 = vdwg.mxu0
        %v2247 = vsel %vm1745, %v2054, 0
        %2249 = vmatprep.subr.mxu0 0.0
        %2250 = vmatpush1.msra.mxu0 %v1483
        %2251 = vmatprep.subr.mxu0 0.0
        %2252 = vmatpush1.msra.mxu0 0.0
        %2253 = vmatprep.subr.mxu0 0.0
        %2254 = vmatpush1.msra.mxu0 0.0
        %2255 = vmatprep.subr.mxu0 0.0
        %2256 = vmatpush1.msra.mxu0 0.0
        %2257 = vmatprep.subr.mxu0 0.0
        %2258 = vmatpush1.msra.mxu0 0.0
        %2259 = vmatprep.subr.mxu0 0.0
        %2260 = vmatpush1.msra.mxu0 0.0
        %2261 = vmatprep.subr.mxu0 0.0
        %2262 = vmatpush1.msra.mxu0 0.0
        %2263 = vmatprep.subr.mxu0 0.0
        %2264 = vmatpush1.msra.mxu0 0.0
        %2265 = vmatprep.subr.mxu0 0.0
        %2266 = vmatpush1.msra.mxu0 0.0
        %2267 = vmatprep.subr.mxu0 0.0
        %2268 = vmatpush1.msra.mxu0 0.0
        %2269 = vmatprep.subr.mxu0 0.0
        %2270 = vmatpush1.msra.mxu0 0.0
        %2271 = vmatprep.subr.mxu0 0.0
        %2272 = vmatpush1.msra.mxu0 0.0
        %2273 = vmatprep.subr.mxu0 0.0
        %2274 = vmatpush1.msra.mxu0 0.0
        %2275 = vmatprep.subr.mxu0 0.0
        %2276 = vmatpush1.msra.mxu0 0.0
        %2277 = vmatprep.subr.mxu0 0.0
        %2278 = vmatpush1.msra.mxu0 0.0
        %2279 = vmatprep.subr.mxu0 0.0
        %2280 = vmatpush1.msra.mxu0 0.0
        %2281 = vmatprep.subr.mxu0 0.0
        %2282 = vmatpush1.msra.mxu0 0.0
        %2283 = vmatprep.subr.mxu0 0.0
        %2284 = vmatpush1.msra.mxu0 0.0
        %2285 = vmatprep.subr.mxu0 0.0
        %2286 = vmatpush1.msra.mxu0 0.0
        %2287 = vmatprep.subr.mxu0 0.0
        %2288 = vmatpush1.msra.mxu0 0.0
        %2289 = vmatprep.subr.mxu0 0.0
        %2290 = vmatpush1.msra.mxu0 0.0
        %2291 = vmatprep.subr.mxu0 0.0
        %2292 = vmatpush1.msra.mxu0 0.0
        %2293 = vmatprep.subr.mxu0 0.0
        %2294 = vmatpush1.msra.mxu0 0.0
        %2295 = vmatprep.subr.mxu0 0.0
        %2296 = vmatpush1.msra.mxu0 0.0
        %2297 = vmatprep.subr.mxu0 0.0
        %2298 = vmatpush1.msra.mxu0 0.0
        %2299 = vmatprep.subr.mxu0 0.0
        %2300 = vmatpush1.msra.mxu0 0.0
        %2301 = vmatprep.subr.mxu0 0.0
        %2302 = vmatpush1.msra.mxu0 0.0
        %2303 = vmatprep.subr.mxu0 0.0
        %2304 = vmatpush1.msra.mxu0 0.0
        %2305 = vmatprep.subr.mxu0 0.0
        %2306 = vmatpush1.msra.mxu0 0.0
        %2307 = vmatprep.subr.mxu0 0.0
        %2308 = vmatpush1.msra.mxu0 0.0
        %2309 = vmatprep.subr.mxu0 0.0
        %2310 = vmatpush1.msra.mxu0 0.0
        %2311 = vmatprep.subr.mxu0 0.0
        %2312 = vmatpush1.msra.mxu0 0.0
        %2313 = vmatprep.mubr.f32.mxu0 0.0
        %2314 = vmatmul.mubr.f32.gmra.mrb[0].mxu0 %v2247
        %v2315 = vpop.f32.mrb[0].mxu0
        %v2316 = vadd.f32 %v2098, %v2315
        %v2317 = vpop.f32.mrb[0].mxu0
        %2318 = vdwg.mxu0
        %v2320 = vsel %vm1745, %v2055, 0
        %2322 = vmatprep.subr.mxu0 0.0
        %2323 = vmatpush1.msra.mxu0 %v1484
        %2324 = vmatprep.subr.mxu0 0.0
        %2325 = vmatpush1.msra.mxu0 0.0
        %2326 = vmatprep.subr.mxu0 0.0
        %2327 = vmatpush1.msra.mxu0 0.0
        %2328 = vmatprep.subr.mxu0 0.0
        %2329 = vmatpush1.msra.mxu0 0.0
        %2330 = vmatprep.subr.mxu0 0.0
        %2331 = vmatpush1.msra.mxu0 0.0
        %2332 = vmatprep.subr.mxu0 0.0
        %2333 = vmatpush1.msra.mxu0 0.0
        %2334 = vmatprep.subr.mxu0 0.0
        %2335 = vmatpush1.msra.mxu0 0.0
        %2336 = vmatprep.subr.mxu0 0.0
        %2337 = vmatpush1.msra.mxu0 0.0
        %2338 = vmatprep.subr.mxu0 0.0
        %2339 = vmatpush1.msra.mxu0 0.0
        %2340 = vmatprep.subr.mxu0 0.0
        %2341 = vmatpush1.msra.mxu0 0.0
        %2342 = vmatprep.subr.mxu0 0.0
        %2343 = vmatpush1.msra.mxu0 0.0
        %2344 = vmatprep.subr.mxu0 0.0
        %2345 = vmatpush1.msra.mxu0 0.0
        %2346 = vmatprep.subr.mxu0 0.0
        %2347 = vmatpush1.msra.mxu0 0.0
        %2348 = vmatprep.subr.mxu0 0.0
        %2349 = vmatpush1.msra.mxu0 0.0
        %2350 = vmatprep.subr.mxu0 0.0
        %2351 = vmatpush1.msra.mxu0 0.0
        %2352 = vmatprep.subr.mxu0 0.0
        %2353 = vmatpush1.msra.mxu0 0.0
        %2354 = vmatprep.subr.mxu0 0.0
        %2355 = vmatpush1.msra.mxu0 0.0
        %2356 = vmatprep.subr.mxu0 0.0
        %2357 = vmatpush1.msra.mxu0 0.0
        %2358 = vmatprep.subr.mxu0 0.0
        %2359 = vmatpush1.msra.mxu0 0.0
        %2360 = vmatprep.subr.mxu0 0.0
        %2361 = vmatpush1.msra.mxu0 0.0
        %2362 = vmatprep.subr.mxu0 0.0
        %2363 = vmatpush1.msra.mxu0 0.0
        %2364 = vmatprep.subr.mxu0 0.0
        %2365 = vmatpush1.msra.mxu0 0.0
        %2366 = vmatprep.subr.mxu0 0.0
        %2367 = vmatpush1.msra.mxu0 0.0
        %2368 = vmatprep.subr.mxu0 0.0
        %2369 = vmatpush1.msra.mxu0 0.0
        %2370 = vmatprep.subr.mxu0 0.0
        %2371 = vmatpush1.msra.mxu0 0.0
        %2372 = vmatprep.subr.mxu0 0.0
        %2373 = vmatpush1.msra.mxu0 0.0
        %2374 = vmatprep.subr.mxu0 0.0
        %2375 = vmatpush1.msra.mxu0 0.0
        %2376 = vmatprep.subr.mxu0 0.0
        %2377 = vmatpush1.msra.mxu0 0.0
        %2378 = vmatprep.subr.mxu0 0.0
        %2379 = vmatpush1.msra.mxu0 0.0
        %2380 = vmatprep.subr.mxu0 0.0
        %2381 = vmatpush1.msra.mxu0 0.0
        %2382 = vmatprep.subr.mxu0 0.0
        %2383 = vmatpush1.msra.mxu0 0.0
        %2384 = vmatprep.subr.mxu0 0.0
        %2385 = vmatpush1.msra.mxu0 0.0
        %2386 = vmatprep.mubr.f32.mxu0 0.0
        %2387 = vmatmul.mubr.f32.gmra.mrb[0].mxu0 %v2320
        %v2388 = vpop.f32.mrb[0].mxu0
        %v2389 = vadd.f32 %v2099, %v2388
        %v2390 = vpop.f32.mrb[0].mxu0
        %2391 = vdwg.mxu0
        %v2392 = vsel %vm1745, %v2170, 0.0
        %2393 = vadd.xlane.f32.xlu0 %v2392
        %v2394 = vpop.xlane.xlu0 %2393
        %v2395 = vsel %vm1745, %v2243, 0.0
        %2396 = vadd.xlane.f32.xlu0 %v2395
        %v2397 = vpop.xlane.xlu0 %2396
        %v2398 = vsel %vm1745, %v2316, 0.0
        %2399 = vadd.xlane.f32.xlu0 %v2398
        %v2400 = vpop.xlane.xlu0 %2399
        %v2401 = vsel %vm1745, %v2389, 0.0
        %2402 = vadd.xlane.f32.xlu0 %v2401
        %v2403 = vpop.xlane.xlu0 %2402
        %v2404 = vrcp.pop 8.0
        %v2405 = vmul.f32 %v2394, %v2404
        %v2406 = vmul.f32 %v2397, %v2404
        %v2407 = vmul.f32 %v2400, %v2404
        %v2408 = vmul.f32 %v2403, %v2404
        %v2409 = vsub.f32 %v2170, %v2405
        %v2410 = vsub.f32 %v2243, %v2406
        %v2411 = vsub.f32 %v2316, %v2407
        %v2412 = vsub.f32 %v2389, %v2408
        %v2413 = vmul.f32 %v2409, %v2409
        %v2414 = vmul.f32 %v2410, %v2410
        %v2415 = vmul.f32 %v2411, %v2411
        %v2416 = vmul.f32 %v2412, %v2412
        %v2417 = vsel %vm1745, %v2413, 0.0
        %2418 = vadd.xlane.f32.xlu0 %v2417
        %v2419 = vpop.xlane.xlu0 %2418
        %v2420 = vsel %vm1745, %v2414, 0.0
        %2421 = vadd.xlane.f32.xlu0 %v2420
        %v2422 = vpop.xlane.xlu0 %2421
        %v2423 = vsel %vm1745, %v2415, 0.0
        %2424 = vadd.xlane.f32.xlu0 %v2423
        %v2425 = vpop.xlane.xlu0 %2424
        %v2426 = vsel %vm1745, %v2416, 0.0
        %2427 = vadd.xlane.f32.xlu0 %v2426
        %v2428 = vpop.xlane.xlu0 %2427
        %v2429 = vmul.f32 %v2419, %v2404
        %v2430 = vmul.f32 %v2422, %v2404
        %v2431 = vmul.f32 %v2425, %v2404
        %v2432 = vmul.f32 %v2428, %v2404
        %v2433 = vadd.f32 %v2429, 1e-05
        %v2434 = vadd.f32 %v2430, 1e-05
        %v2435 = vadd.f32 %v2431, 1e-05
        %v2436 = vadd.f32 %v2432, 1e-05
        %v2437 = vrsqrt.pop %v2433
        %v2438 = vrsqrt.pop %v2434
        %v2439 = vrsqrt.pop %v2435
        %v2440 = vrsqrt.pop %v2436
        %v2441 = vmul.f32 %v2409, %v2437
        %v2442 = vmul.f32 %v2410, %v2438
        %v2443 = vmul.f32 %v2411, %v2439
        %v2444 = vmul.f32 %v2412, %v2440
        %v2445 = vcombine.low %v2441, %v2443
        %v2446 = vcombine.high %v2441, %v2443
        %v2448 = vunpack.c.l.s4 1983009808
        %v2449 = vunpack.c.0.s8 %v2448
        %v2450 = vlaneseq
        %v2451 = vshrl.u32 %v2450, 7
        %v2452 = vsub.s32 %v2449, %v2451
        %v2453 = vrot.slane %v2445, %v2452
        %v2455 = vunpack.c.l.s4 1983009808
        %v2456 = vunpack.c.0.s8 %v2455
        %v2457 = vlaneseq
        %v2458 = vshrl.u32 %v2457, 7
        %v2459 = vsub.s32 %v2456, %v2458
        %v2460 = vrot.slane %v2446, %v2459
        %v2461 = vcombine.low %v2442, %v2444
        %v2462 = vcombine.high %v2442, %v2444
        %v2464 = vunpack.c.l.s4 1983009808
        %v2465 = vunpack.c.0.s8 %v2464
        %v2466 = vlaneseq
        %v2467 = vshrl.u32 %v2466, 7
        %v2468 = vsub.s32 %v2465, %v2467
        %v2469 = vrot.slane %v2461, %v2468
        %v2471 = vunpack.c.l.s4 1983009808
        %v2472 = vunpack.c.0.s8 %v2471
        %v2473 = vlaneseq
        %v2474 = vshrl.u32 %v2473, 7
        %v2475 = vsub.s32 %v2472, %v2474
        %v2476 = vrot.slane %v2462, %v2475
        %v2477 = vcombine.low %v2453, %v2469
        %v2478 = vcombine.high %v2453, %v2469
        %v2480 = vunpack.c.l.s4 1934713408
        %v2481 = vunpack.c.0.s8 %v2480
        %v2482 = vlaneseq
        %v2483 = vshrl.u32 %v2482, 7
        %v2484 = vsub.s32 %v2481, %v2483
        %v2485 = vrot.slane %v2477, %v2484
        %v2487 = vunpack.c.l.s4 1934713408
        %v2488 = vunpack.c.0.s8 %v2487
        %v2489 = vlaneseq
        %v2490 = vshrl.u32 %v2489, 7
        %v2491 = vsub.s32 %v2488, %v2490
        %v2492 = vrot.slane %v2478, %v2491
        %v2493 = vcombine.low %v2460, %v2476
        %v2494 = vcombine.high %v2460, %v2476
        %v2496 = vunpack.c.l.s4 1934713408
        %v2497 = vunpack.c.0.s8 %v2496
        %v2498 = vlaneseq
        %v2499 = vshrl.u32 %v2498, 7
        %v2500 = vsub.s32 %v2497, %v2499
        %v2501 = vrot.slane %v2493, %v2500
        %v2503 = vunpack.c.l.s4 1934713408
        %v2504 = vunpack.c.0.s8 %v2503
        %v2505 = vlaneseq
        %v2506 = vshrl.u32 %v2505, 7
        %v2507 = vsub.s32 %v2504, %v2506
        %v2508 = vrot.slane %v2494, %v2507
        %v2509 = vcombine.high %v2485, 0.0
        %v2510 = vcombine.high %v2492, 0.0
        %v2511 = vcombine.high %v2501, 0.0
        %v2512 = vcombine.high %v2508, 0.0
        %v2513 = vcombine.low %v2485, %v2492
        %v2515 = vunpack.c.l.s4 1983009808
        %v2516 = vunpack.c.0.s8 %v2515
        %v2517 = vlaneseq
        %v2518 = vshrl.u32 %v2517, 7
        %v2519 = vsub.s32 %v2516, %v2518
        %v2520 = vrot.slane %v2513, %v2519
        %v2521 = vcombine.low %v2509, %v2510
        %v2523 = vunpack.c.l.s4 1983009808
        %v2524 = vunpack.c.0.s8 %v2523
        %v2525 = vlaneseq
        %v2526 = vshrl.u32 %v2525, 7
        %v2527 = vsub.s32 %v2524, %v2526
        %v2528 = vrot.slane %v2521, %v2527
        %v2529 = vcombine.low %v2501, %v2508
        %v2531 = vunpack.c.l.s4 1983009808
        %v2532 = vunpack.c.0.s8 %v2531
        %v2533 = vlaneseq
        %v2534 = vshrl.u32 %v2533, 7
        %v2535 = vsub.s32 %v2532, %v2534
        %v2536 = vrot.slane %v2529, %v2535
        %v2537 = vcombine.low %v2511, %v2512
        %v2539 = vunpack.c.l.s4 1983009808
        %v2540 = vunpack.c.0.s8 %v2539
        %v2541 = vlaneseq
        %v2542 = vshrl.u32 %v2541, 7
        %v2543 = vsub.s32 %v2540, %v2542
        %v2544 = vrot.slane %v2537, %v2543
        %v2545 = vcombine.low %v2520, %v2528
        %v2546 = vcombine.high %v2520, %v2528
        %v2548 = vunpack.c.l.s4 1934713408
        %v2549 = vunpack.c.0.s8 %v2548
        %v2550 = vlaneseq
        %v2551 = vshrl.u32 %v2550, 7
        %v2552 = vsub.s32 %v2549, %v2551
        %v2553 = vrot.slane %v2545, %v2552
        %v2555 = vunpack.c.l.s4 1934713408
        %v2556 = vunpack.c.0.s8 %v2555
        %v2557 = vlaneseq
        %v2558 = vshrl.u32 %v2557, 7
        %v2559 = vsub.s32 %v2556, %v2558
        %v2560 = vrot.slane %v2546, %v2559
        %v2561 = vcombine.low %v2536, %v2544
        %v2562 = vcombine.high %v2536, %v2544
        %v2564 = vunpack.c.l.s4 1934713408
        %v2565 = vunpack.c.0.s8 %v2564
        %v2566 = vlaneseq
        %v2567 = vshrl.u32 %v2566, 7
        %v2568 = vsub.s32 %v2565, %v2567
        %v2569 = vrot.slane %v2561, %v2568
        %v2571 = vunpack.c.l.s4 1934713408
        %v2572 = vunpack.c.0.s8 %v2571
        %v2573 = vlaneseq
        %v2574 = vshrl.u32 %v2573, 7
        %v2575 = vsub.s32 %v2572, %v2574
        %v2576 = vrot.slane %v2562, %v2575
        %v2577 = vcombine.low %v2553, %v2569
        %v2578 = vcombine.high %v2553, %v2569
        %v2579 = vcombine.low %v2560, %v2576
        %v2580 = vcombine.high %v2560, %v2576
        %2582 = vrot.lane.b32.xlu0 %v2578, 8
        %v2583 = vpop.permute.xlu0 %2582
        %2586 = vrot.lane.b32.xlu0 %v2579, 16
        %v2587 = vpop.permute.xlu0 %2586
        %2590 = vrot.lane.b32.xlu0 %v2580, 24
        %v2591 = vpop.permute.xlu0 %2590
        %v2593 = vsel %vm1745, %v2577, %v2583
        %vm2594 = vcmask 130048
        %v2595 = vsel %vm2594, %v2593, %v2587
        %vm2596 = vcmask 195584
        %v2597 = vsel %vm2596, %v2595, %v2591
        %v2598 = vld [vmem:[#allocation16] sm:$0x1]
        %v2600 = vlaneseq
        %v2601 = vshrl.u32 %v2600, 7
        %v2602 = vsub.s32 0, %v2601
        %v2603 = vrot.slane %v2598, %v2602
        %v2605 = vmul.f32 %v2597, %v2603
        %v2606 = vld [vmem:[#allocation17] sm:$0x1]
        %v2608 = vlaneseq
        %v2609 = vshrl.u32 %v2608, 7
        %v2610 = vsub.s32 0, %v2609
        %v2611 = vrot.slane %v2606, %v2610
        %v2613 = vadd.f32 %v2605, %v2611
        %v2614 = vmul.f32 %v2613, %v1192
        %v2615 = vpack.c.bf16 %v2614, %v2614
        %v2616 = vld [vmem:[%s15] sm:$0xf]
        %v2617 = vld [vmem:[%s15 + $0x4] sm:$0xf]
        %v2618 = vld [vmem:[%s15 + $0x8] sm:$0xf]
        %v2619 = vld [vmem:[%s15 + $0xc] sm:$0xf]
        %v2624 = vunpack.c.l.b16 %v2616
        %v2625 = vunpack.c.l.b16 %v2617
        %v2626 = vunpack.c.l.b16 %v2618
        %v2627 = vunpack.c.l.b16 %v2619
        %v2628 = vpack.c.b16 %v2625, %v2624
        %v2629 = vpack.c.b16 %v2627, %v2626
        %v2633 = vsel %vm873, %v2615, 0
        %2635 = vmatprep.subr.bf16.mxu0 0
        %2636 = vmatpush1.bf16.msra.mxu0 %v2628
        %2637 = vmatprep.subr.bf16.mxu0 0
        %2638 = vmatpush1.bf16.msra.mxu0 %v2629
        %2639 = vmatprep.subr.bf16.mxu0 0
        %2640 = vmatpush1.bf16.msra.mxu0 0
        %2641 = vmatprep.subr.bf16.mxu0 0
        %2642 = vmatpush1.bf16.msra.mxu0 0
        %2643 = vmatprep.subr.bf16.mxu0 0
        %2644 = vmatpush1.bf16.msra.mxu0 0
        %2645 = vmatprep.subr.bf16.mxu0 0
        %2646 = vmatpush1.bf16.msra.mxu0 0
        %2647 = vmatprep.subr.bf16.mxu0 0
        %2648 = vmatpush1.bf16.msra.mxu0 0
        %2649 = vmatprep.subr.bf16.mxu0 0
        %2650 = vmatpush1.bf16.msra.mxu0 0
        %2651 = vmatprep.subr.bf16.mxu0 0
        %2652 = vmatpush1.bf16.msra.mxu0 0
        %2653 = vmatprep.subr.bf16.mxu0 0
        %2654 = vmatpush1.bf16.msra.mxu0 0
        %2655 = vmatprep.subr.bf16.mxu0 0
        %2656 = vmatpush1.bf16.msra.mxu0 0
        %2657 = vmatprep.subr.bf16.mxu0 0
        %2658 = vmatpush1.bf16.msra.mxu0 0
        %2659 = vmatprep.subr.bf16.mxu0 0
        %2660 = vmatpush1.bf16.msra.mxu0 0
        %2661 = vmatprep.subr.bf16.mxu0 0
        %2662 = vmatpush1.bf16.msra.mxu0 0
        %2663 = vmatprep.subr.bf16.mxu0 0
        %2664 = vmatpush1.bf16.msra.mxu0 0
        %2665 = vmatprep.subr.bf16.mxu0 0
        %2666 = vmatpush1.bf16.msra.mxu0 0
        %2667 = vmatprep.mubr.bf16.mxu0 0
        %2668 = vmatmul.mubr.bf16.gmra.mrb[0].mxu0 %v2633
        %v2669 = vpop.f32.mrb[0].mxu0
        %v2670 = vadd.f32 0.0, %v2669
        %v2671 = vpop.f32.mrb[0].mxu0
        %v2672 = vpop.f32.mrb[0].mxu0
        %v2673 = vpop.f32.mrb[0].mxu0
        %2674 = vdwg.mxu0
        %v2675 = vadd.f32 %v872, %v2670
        %v2676 = vsel %vm873, %v2675, 0.0
        %2677 = vadd.xlane.f32.xlu0 %v2676
        %v2678 = vpop.xlane.xlu0 %2677
        %v2679 = vmul.f32 %v2678, %v877
        %v2680 = vsub.f32 %v2675, %v2679
        %v2681 = vmul.f32 %v2680, %v2680
        %v2682 = vsel %vm873, %v2681, 0.0
        %2683 = vadd.xlane.f32.xlu0 %v2682
        %v2684 = vpop.xlane.xlu0 %2683
        %v2685 = vmul.f32 %v2684, %v877
        %v2686 = vadd.f32 %v2685, 1e-05
        %v2687 = vrsqrt.pop %v2686
        %v2688 = vmul.f32 %v2680, %v2687
        %v2689 = vld [vmem:[#allocation19] sm:$0x1]
        %v2691 = vlaneseq
        %v2692 = vshrl.u32 %v2691, 7
        %v2693 = vsub.s32 0, %v2692
        %v2694 = vrot.slane %v2689, %v2693
        %v2696 = vmul.f32 %v2688, %v2694
        %v2697 = vld [vmem:[#allocation20] sm:$0x1]
        %v2699 = vlaneseq
        %v2700 = vshrl.u32 %v2699, 7
        %v2701 = vsub.s32 0, %v2700
        %v2702 = vrot.slane %v2697, %v2701
        %v2704 = vadd.f32 %v2696, %v2702
        %v2705 = vrot.slane %v2704, 7
        %v2706 = vsel %vm907, 0.0, %v2705
        %v2707 = vld [vmem:[%s18] sm:$0x1]
        %v2708 = vld [vmem:[%s19] sm:$0x1]
        %v2709 = vsub.f32 %v2704, %v2706
        %v2711 = vlaneseq
        %v2712 = vshrl.u32 %v2711, 7
        %v2713 = vsub.s32 0, %v2712
        %v2714 = vrot.slane %v2707, %v2713
        %v2716 = vmul.f32 %v2714, %v2709
        %v2717 = vadd.f32 %v2706, %v2716
        %v2719 = vlaneseq
        %v2720 = vshrl.u32 %v2719, 7
        %v2721 = vsub.s32 0, %v2720
        %v2722 = vrot.slane %v2708, %v2721
        %v2724 = vmul.f32 %v2722, %v2709
        %v2725 = vadd.f32 %v2706, %v2724
        %v2726 = vpack.c.bf16 %v2717, %v2717
        %v2727 = vld [vmem:[%s20] sm:$0xf]
        %v2728 = vld [vmem:[%s20 + $0x4] sm:$0xf]
        %v2729 = vld [vmem:[%s20 + $0x8] sm:$0xf]
        %v2730 = vld [vmem:[%s20 + $0xc] sm:$0xf]
        %v2735 = vunpack.c.l.b16 %v2727
        %v2736 = vunpack.c.l.b16 %v2728
        %v2737 = vunpack.c.l.b16 %v2729
        %v2738 = vunpack.c.l.b16 %v2730
        %v2739 = vpack.c.b16 %v2736, %v2735
        %v2740 = vpack.c.b16 %v2738, %v2737
        %v2744 = vsel %vm873, %v2726, 0
        %2746 = vmatprep.subr.bf16.mxu0 0
        %2747 = vmatpush1.bf16.msra.mxu0 %v2739
        %2748 = vmatprep.subr.bf16.mxu0 0
        %2749 = vmatpush1.bf16.msra.mxu0 %v2740
        %2750 = vmatprep.subr.bf16.mxu0 0
        %2751 = vmatpush1.bf16.msra.mxu0 0
        %2752 = vmatprep.subr.bf16.mxu0 0
        %2753 = vmatpush1.bf16.msra.mxu0 0
        %2754 = vmatprep.subr.bf16.mxu0 0
        %2755 = vmatpush1.bf16.msra.mxu0 0
        %2756 = vmatprep.subr.bf16.mxu0 0
        %2757 = vmatpush1.bf16.msra.mxu0 0
        %2758 = vmatprep.subr.bf16.mxu0 0
        %2759 = vmatpush1.bf16.msra.mxu0 0
        %2760 = vmatprep.subr.bf16.mxu0 0
        %2761 = vmatpush1.bf16.msra.mxu0 0
        %2762 = vmatprep.subr.bf16.mxu0 0
        %2763 = vmatpush1.bf16.msra.mxu0 0
        %2764 = vmatprep.subr.bf16.mxu0 0
        %2765 = vmatpush1.bf16.msra.mxu0 0
        %2766 = vmatprep.subr.bf16.mxu0 0
        %2767 = vmatpush1.bf16.msra.mxu0 0
        %2768 = vmatprep.subr.bf16.mxu0 0
        %2769 = vmatpush1.bf16.msra.mxu0 0
        %2770 = vmatprep.subr.bf16.mxu0 0
        %2771 = vmatpush1.bf16.msra.mxu0 0
        %2772 = vmatprep.subr.bf16.mxu0 0
        %2773 = vmatpush1.bf16.msra.mxu0 0
        %2774 = vmatprep.subr.bf16.mxu0 0
        %2775 = vmatpush1.bf16.msra.mxu0 0
        %2776 = vmatprep.subr.bf16.mxu0 0
        %2777 = vmatpush1.bf16.msra.mxu0 0
        %2778 = vmatprep.mubr.bf16.mxu0 0
        %2779 = vmatmul.mubr.bf16.gmra.mrb[0].mxu0 %v2744
        %v2780 = vpop.f32.mrb[0].mxu0
        %v2781 = vadd.f32 0.0, %v2780
        %v2782 = vpop.f32.mrb[0].mxu0
        %v2783 = vpop.f32.mrb[0].mxu0
        %v2784 = vpop.f32.mrb[0].mxu0
        %2785 = vdwg.mxu0
        %v2786 = vmax.f32 %v2781, 0.0
        %v2787 = vmul.f32 %v2786, %v2786
        %v2788 = vpack.c.bf16 %v2787, %v2787
        %v2789 = vld [vmem:[%s22] sm:$0xf]
        %v2790 = vld [vmem:[%s22 + $0x4] sm:$0xf]
        %v2791 = vld [vmem:[%s22 + $0x8] sm:$0xf]
        %v2792 = vld [vmem:[%s22 + $0xc] sm:$0xf]
        %v2793 = vld [vmem:[%s22 + $0x10] sm:$0xf]
        %v2794 = vld [vmem:[%s22 + $0x14] sm:$0xf]
        %v2795 = vld [vmem:[%s22 + $0x18] sm:$0xf]
        %v2796 = vld [vmem:[%s22 + $0x1c] sm:$0xf]
        %v2797 = vld [vmem:[%s22 + $0x20] sm:$0xf]
        %v2798 = vld [vmem:[%s22 + $0x24] sm:$0xf]
        %v2799 = vld [vmem:[%s22 + $0x28] sm:$0xf]
        %v2800 = vld [vmem:[%s22 + $0x2c] sm:$0xf]
        %v2813 = vunpack.c.l.b16 %v2789
        %v2814 = vunpack.c.l.b16 %v2790
        %v2815 = vunpack.c.l.b16 %v2791
        %v2816 = vunpack.c.l.b16 %v2792
        %v2817 = vunpack.c.l.b16 %v2793
        %v2818 = vunpack.c.l.b16 %v2794
        %v2819 = vunpack.c.l.b16 %v2795
        %v2820 = vunpack.c.l.b16 %v2796
        %v2821 = vunpack.c.l.b16 %v2797
        %v2822 = vunpack.c.l.b16 %v2798
        %v2823 = vunpack.c.l.b16 %v2799
        %v2824 = vunpack.c.l.b16 %v2800
        %v2825 = vpack.c.b16 %v2814, %v2813
        %v2826 = vpack.c.b16 %v2816, %v2815
        %v2827 = vpack.c.b16 %v2818, %v2817
        %v2828 = vpack.c.b16 %v2820, %v2819
        %v2829 = vpack.c.b16 %v2822, %v2821
        %v2830 = vpack.c.b16 %v2824, %v2823
        %vm2837 = vcmask 785408
        %v2839 = vsel %vm2837, %v2788, 0
        %2841 = vmatprep.subr.bf16.mxu0 0
        %2842 = vmatpush1.bf16.msra.mxu0 %v2825
        %2843 = vmatprep.subr.bf16.mxu0 0
        %2844 = vmatpush1.bf16.msra.mxu0 %v2826
        %2845 = vmatprep.subr.bf16.mxu0 0
        %2846 = vmatpush1.bf16.msra.mxu0 %v2827
        %2847 = vmatprep.subr.bf16.mxu0 0
        %2848 = vmatpush1.bf16.msra.mxu0 %v2828
        %2849 = vmatprep.subr.bf16.mxu0 0
        %2850 = vmatpush1.bf16.msra.mxu0 %v2829
        %2851 = vmatprep.subr.bf16.mxu0 0
        %2852 = vmatpush1.bf16.msra.mxu0 %v2830
        %2853 = vmatprep.subr.bf16.mxu0 0
        %2854 = vmatpush1.bf16.msra.mxu0 0
        %2855 = vmatprep.subr.bf16.mxu0 0
        %2856 = vmatpush1.bf16.msra.mxu0 0
        %2857 = vmatprep.subr.bf16.mxu0 0
        %2858 = vmatpush1.bf16.msra.mxu0 0
        %2859 = vmatprep.subr.bf16.mxu0 0
        %2860 = vmatpush1.bf16.msra.mxu0 0
        %2861 = vmatprep.subr.bf16.mxu0 0
        %2862 = vmatpush1.bf16.msra.mxu0 0
        %2863 = vmatprep.subr.bf16.mxu0 0
        %2864 = vmatpush1.bf16.msra.mxu0 0
        %2865 = vmatprep.subr.bf16.mxu0 0
        %2866 = vmatpush1.bf16.msra.mxu0 0
        %2867 = vmatprep.subr.bf16.mxu0 0
        %2868 = vmatpush1.bf16.msra.mxu0 0
        %2869 = vmatprep.subr.bf16.mxu0 0
        %2870 = vmatpush1.bf16.msra.mxu0 0
        %2871 = vmatprep.subr.bf16.mxu0 0
        %2872 = vmatpush1.bf16.msra.mxu0 0
        %2873 = vmatprep.mubr.bf16.mxu0 0
        %2874 = vmatmul.mubr.bf16.gmra.mrb[0].mxu0 %v2839
        %v2875 = vpop.f32.mrb[0].mxu0
        %v2876 = vadd.f32 0.0, %v2875
        %v2877 = vpop.f32.mrb[0].mxu0
        %v2878 = vpop.f32.mrb[0].mxu0
        %v2879 = vpop.f32.mrb[0].mxu0
        %2880 = vdwg.mxu0
        %v2881 = vpack.c.bf16 %v2725, %v2725
        %v2882 = vld [vmem:[#allocation22] sm:$0xf]
        %v2883 = vld [vmem:[#allocation22 + $0x4] sm:$0xf]
        %v2884 = vld [vmem:[#allocation22 + $0x8] sm:$0xf]
        %v2885 = vld [vmem:[#allocation22 + $0xc] sm:$0xf]
        %v2890 = vunpack.c.l.b16 %v2882
        %v2891 = vunpack.c.l.b16 %v2883
        %v2892 = vunpack.c.l.b16 %v2884
        %v2893 = vunpack.c.l.b16 %v2885
        %v2894 = vpack.c.b16 %v2891, %v2890
        %v2895 = vpack.c.b16 %v2893, %v2892
        %v2899 = vsel %vm873, %v2881, 0
        %2901 = vmatprep.subr.bf16.mxu0 0
        %2902 = vmatpush1.bf16.msra.mxu0 %v2894
        %2903 = vmatprep.subr.bf16.mxu0 0
        %2904 = vmatpush1.bf16.msra.mxu0 %v2895
        %2905 = vmatprep.subr.bf16.mxu0 0
        %2906 = vmatpush1.bf16.msra.mxu0 0
        %2907 = vmatprep.subr.bf16.mxu0 0
        %2908 = vmatpush1.bf16.msra.mxu0 0
        %2909 = vmatprep.subr.bf16.mxu0 0
        %2910 = vmatpush1.bf16.msra.mxu0 0
        %2911 = vmatprep.subr.bf16.mxu0 0
        %2912 = vmatpush1.bf16.msra.mxu0 0
        %2913 = vmatprep.subr.bf16.mxu0 0
        %2914 = vmatpush1.bf16.msra.mxu0 0
        %2915 = vmatprep.subr.bf16.mxu0 0
        %2916 = vmatpush1.bf16.msra.mxu0 0
        %2917 = vmatprep.subr.bf16.mxu0 0
        %2918 = vmatpush1.bf16.msra.mxu0 0
        %2919 = vmatprep.subr.bf16.mxu0 0
        %2920 = vmatpush1.bf16.msra.mxu0 0
        %2921 = vmatprep.subr.bf16.mxu0 0
        %2922 = vmatpush1.bf16.msra.mxu0 0
        %2923 = vmatprep.subr.bf16.mxu0 0
        %2924 = vmatpush1.bf16.msra.mxu0 0
        %2925 = vmatprep.subr.bf16.mxu0 0
        %2926 = vmatpush1.bf16.msra.mxu0 0
        %2927 = vmatprep.subr.bf16.mxu0 0
        %2928 = vmatpush1.bf16.msra.mxu0 0
        %2929 = vmatprep.subr.bf16.mxu0 0
        %2930 = vmatpush1.bf16.msra.mxu0 0
        %2931 = vmatprep.subr.bf16.mxu0 0
        %2932 = vmatpush1.bf16.msra.mxu0 0
        %2933 = vmatprep.mubr.bf16.mxu0 0
        %2934 = vmatmul.mubr.bf16.gmra.mrb[0].mxu0 %v2899
        %v2935 = vpop.f32.mrb[0].mxu0
        %v2936 = vadd.f32 0.0, %v2935
        %v2937 = vpop.f32.mrb[0].mxu0
        %v2938 = vpop.f32.mrb[0].mxu0
        %v2939 = vpop.f32.mrb[0].mxu0
        %2940 = vdwg.mxu0
        %v2941 = vxor.u32 %v2936, 2147483648
        %v2942 = vmul.f32 %v2941, 1.442695
        %v2943 = vpow.pop %v2942
        %v2944 = vadd.f32 %v2943, 1.0
        %v2945 = vrcp.pop %v2944
        %v2946 = vmul.f32 1.0, %v2945
        %v2947 = vmul.f32 %v2946, %v2876
        %v2948 = vadd.f32 %v2675, %v2947
        %2949 = vst.msk [vmem:[%s866] sm:$0xff] %vm873, %v2948
        %s2950 = sand.u32 %s540, 1
        %s2951 = scalar_lea.sflag [#allocation4], %s2950
        %s2952 = sand.u32 %s540, 1
        %s2953 = smul.addr %s2952, 8
        %s2954 = scalar_lea.vmem [#allocation23], %s2953
        // Predicated region
        $region165: #{tpu_custom_call.1} parent=111 // pred_check
          %p2955 = pneg %p550
        $region166: #{tpu_custom_call.1} parent=111 // pred_check_branch
          %2957 = sbr.rel (%p2955) target = $region168
        $region167: #{tpu_custom_call.1} parent=111 // pred_region
          %s2959 = ssub.s32 128, 128
          %2960 = vsyncadd %s2951, %s2959
          %s2961 = smul.addr %s44, 128
          %s2962 = scalar_lea.hbm %s23, %s2961
          %s2964 = sshll.u32 %s2954, 4
          %s2965 = int_to_ptr.vmem [resolvable:$true] %s2964
          %2967 = dma.vmem_to_hbm [thread:$0]  %s2965, 128, %s2962, %s2951
        $region168: #{tpu_custom_call.1} parent=111 // pred_fallthru
          _
      $region112: #{tpu_custom_call.1} parent=5 // pred_fallthru
        _
      %p2968 = scmp.le.s32.totalorder 2, %s39
      // Predicated region
      $region169: #{tpu_custom_call.1} parent=5 // pred_check
        %p2969 = pneg %p2968
      $region170: #{tpu_custom_call.1} parent=5 // pred_check_branch
        %2971 = sbr.rel (%p2969) target = $region172
      $region171: #{tpu_custom_call.1} parent=5 // pred_region
        %s2972 = ssub.s32 %s39, 2
        // Predicated region
        $region173: #{tpu_custom_call.1} parent=171 // pred_check
          %p2973 = pneg %p556
        $region174: #{tpu_custom_call.1} parent=171 // pred_check_branch
          %2975 = sbr.rel (%p2973) target = $region176
        $region175: #{tpu_custom_call.1} parent=171 // pred_region
          %s2976 = sand.u32 %s541, 1
          %s2977 = scalar_lea.sflag [#allocation4], %s2976
          %s2978 = sand.u32 %s541, 1
          %s2979 = smul.addr %s2978, 8
          %s2980 = scalar_lea.vmem [#allocation23], %s2979
          %2981 = dma.done %s2977, 128
        $region176: #{tpu_custom_call.1} parent=171 // pred_fallthru
          _
      $region172: #{tpu_custom_call.1} parent=5 // pred_fallthru
        _
    $region6: #{tpu_custom_call.1} parent=1 // loop_footer
      %s43 = sadd.s32 1, %s39
    $region7: #{tpu_custom_call.1} parent=1 // loop_footer_branch
      %38 = sbr.rel target = $region3
    $region8: #{tpu_custom_call.1} parent=1 // loop_exit
      _
    %2982 = vsyncpa [#allocation3], 1
    %s2983 = scalar_lea.sflag [#allocation3], 1
    %2984 = vsyncpa %s2983, 1
    %2985 = vsyncpa [#allocation6], 1
    %2986 = vsyncpa [#allocation9], 1
    %2987 = vsyncpa [#allocation12], 1
    %2988 = vsyncpa [#allocation15], 1
    %2989 = vsyncpa [#allocation18], 1
    %2990 = vsyncpa [#allocation21], 1
    %2991 = vsyncpa [#allocation4], 1
    %s2992 = scalar_lea.sflag [#allocation4], 1
    %2993 = vsyncpa %s2992, 1

</llo_original>
